<compile_context>
chip_gen: v5e
topology: v5e:2x2
jax: 0.10.0
libtpu: 0.0.40
codegen_flags: <defaults>
</compile_context>

<pallas_src>
import functools
import numpy as np
import jax
import jax.numpy as jnp
from jax.experimental import pallas as pl
from jax.experimental.pallas import tpu as pltpu

# small shapes consistent with the module's forward: x is [B, H, W, dim]
BATCH, H, W, DIM, NUM_HEADS = 2, 16, 16, 32, 4
HEAD_DIM = DIM // NUM_HEADS
SEQ = H * W
SCALE = HEAD_DIM ** -0.5


# ------------------------------ Pallas kernel --------------------------------
def _fused_attention_kernel(x_ref, w_ref, b_ref, bproj_ref, o_ref, *,
                            num_heads):
    """One grid step == one batch image.

    Fused-weight layout (columns of w_ref, [D, (2+heads)*D]):
        [ Wq*scale | Wk | Wv_0 @ Wproj_0 | ... | Wv_{H-1} @ Wproj_{H-1} ]
    so the output projection is already folded into each head's V slab and the
    per-head PV matmul accumulates directly into the final [S, D] result.
    """
    S, D = x_ref.shape[1], x_ref.shape[2]
    hd = D // num_heads
    x = x_ref[0]                                                  # [S, D] f32

    # ---- fused projection (MXU: bf16 x bf16 -> f32 accumulate; bias f32) ----
    qkvp = jnp.dot(x.astype(jnp.bfloat16), w_ref[...],
                   preferred_element_type=jnp.float32) + b_ref[...]  # [S, (2+H)D]

    q_all = qkvp[:, :D]                         # [S, D]   (scale already folded)
    kT = qkvp[:, D:2 * D].T                     # [D, S]   ONE slab transpose

    acc = jnp.zeros((S, D), jnp.float32)        # per-image output accumulator
    for h in range(num_heads):                  # statically unrolled; temporaries
        q_h = q_all[:, h * hd:(h + 1) * hd]     # [S, hd]   die each iteration
        kT_h = kT[h * hd:(h + 1) * hd, :]       # [hd, S]  sublane-aligned slice
        s = jnp.dot(q_h.astype(jnp.bfloat16), kT_h.astype(jnp.bfloat16),
                    preferred_element_type=jnp.float32)          # [S, S] f32
        # softmax statistics stay in f32 (no bf16 VPU/EUP path on v5e).
        s = s - jnp.max(s, axis=-1, keepdims=True)
        p = jnp.exp(s)                                           # unnormalized
        rsum = jnp.sum(p, axis=-1, keepdims=True)                # [S, 1]
        vp_h = qkvp[:, (2 + h) * D:(3 + h) * D]                  # [S, D] = V'_h
        pv = jnp.dot(p.astype(jnp.bfloat16), vp_h.astype(jnp.bfloat16),
                     preferred_element_type=jnp.float32)         # [S, D]
        # deferred softmax normalization: scale the [S, D] result, not [S, S].
        acc = acc + pv * pl.reciprocal(rsum, approx=True)

    o_ref[0] = (acc + bproj_ref[...]).astype(o_ref.dtype)


# -------------------------- wrapper / param fusion ----------------------------
def _fuse_params(p, num_heads, scale):
    """Fold scale into Q and the output projection into per-head V weights."""
    D = p["proj_w"].shape[0]
    hd = D // num_heads
    Wqkv, bqkv = p["qkv_w"], p["qkv_b"]           # [D, 3D], [3D]
    Wproj, bproj = p["proj_w"], p["proj_b"]       # [D, D],  [D]
    Wq, Wk, Wv = Wqkv[:, :D], Wqkv[:, D:2 * D], Wqkv[:, 2 * D:]
    bq, bk, bv = bqkv[:D], bqkv[D:2 * D], bqkv[2 * D:]
    wv_parts, bv_parts = [], []
    for h in range(num_heads):
        Wproj_h = Wproj[h * hd:(h + 1) * hd, :]               # [hd, D]
        wv_parts.append(Wv[:, h * hd:(h + 1) * hd] @ Wproj_h)  # [D, D]
        bv_parts.append(bv[h * hd:(h + 1) * hd] @ Wproj_h)     # [D]
    w_fused = jnp.concatenate([Wq * scale, Wk] + wv_parts, axis=1)   # [D,(2+H)D]
    b_fused = jnp.concatenate([bq * scale, bk] + bv_parts)           # [(2+H)D]
    # weights pre-cast to bf16 (static operand: no per-step cast, half the DMA)
    return (w_fused.astype(jnp.bfloat16),
            b_fused.astype(jnp.float32).reshape(1, -1),
            bproj.astype(jnp.float32).reshape(1, -1))


def attention_forward(x_bhwc, params):
    """Attention.forward (use_rel_pos=False): x [B,H,W,D] -> [B,H,W,D]."""
    # TODO(synk): use_rel_pos=True path (get_rel_pos interpolation +
    # add_decomposed_rel_pos) is not implemented; module default is False.
    B, Hh, Ww, D = x_bhwc.shape
    S = Hh * Ww
    NF = (2 + NUM_HEADS) * D
    x = x_bhwc.reshape(B, S, D)
    w_fused, b_fused, bproj = _fuse_params(params, NUM_HEADS, SCALE)
    out = pl.pallas_call(
        functools.partial(_fused_attention_kernel, num_heads=NUM_HEADS),
        out_shape=jax.ShapeDtypeStruct((B, S, D), jnp.float32),
        grid=(B,),  # 2-wide parallel axis: one image per v7x TensorCore
        in_specs=[
            pl.BlockSpec((1, S, D), lambda b: (b, 0, 0)),   # x (per image)
            pl.BlockSpec((D, NF), lambda b: (0, 0)),        # fused weight (bf16)
            pl.BlockSpec((1, NF), lambda b: (0, 0)),        # fused bias (f32)
            pl.BlockSpec((1, D), lambda b: (0, 0)),         # proj bias (f32)
        ],
        out_specs=pl.BlockSpec((1, S, D), lambda b: (b, 0, 0)),
        compiler_params=pltpu.CompilerParams(
            dimension_semantics=("parallel",)),
    )(x, w_fused, b_fused, bproj)
    return out.reshape(B, Hh, Ww, D)


# ----------------------- deterministic synthetic params ----------------------
def make_params(key):
    k1, k2, k3, k4 = jax.random.split(key, 4)
    # torch nn.Linear layout is [out, in]; store transposed for x @ W form.
    qkv_w_t = 0.02 * jax.random.normal(k1, (3 * DIM, DIM), jnp.float32)
    proj_w_t = 0.02 * jax.random.normal(k3, (DIM, DIM), jnp.float32)
    return {
        "qkv_w": qkv_w_t.T,                                       # [D, 3D]
        "qkv_b": 0.02 * jax.random.normal(k2, (3 * DIM,), jnp.float32),
        "proj_w": proj_w_t.T,                                     # [D, D]
        "proj_b": 0.02 * jax.random.normal(k4, (DIM,), jnp.float32),
    }


# -------------------------- pure-JAX reference check -------------------------
def ref_attention(x_bhwc, p):
    B, Hh, Ww, D = x_bhwc.shape
    S = Hh * Ww
    qkv = x_bhwc.reshape(B, S, D) @ p["qkv_w"] + p["qkv_b"]
    qkv = qkv.reshape(B, S, 3, NUM_HEADS, HEAD_DIM).transpose(2, 0, 3, 1, 4)
    qkv = qkv.reshape(3, B * NUM_HEADS, S, HEAD_DIM)
    q, k, v = qkv[0], qkv[1], qkv[2]
    attn = jax.nn.softmax((q * SCALE) @ jnp.swapaxes(k, -2, -1), axis=-1)
    o = (attn @ v).reshape(B, NUM_HEADS, Hh, Ww, HEAD_DIM)
    o = o.transpose(0, 2, 3, 1, 4).reshape(B, S, D)
    o = o @ p["proj_w"] + p["proj_b"]
    return o.reshape(B, Hh, Ww, D)


if __name__ == "__main__":
    key = jax.random.PRNGKey(0)
    kx, kp = jax.random.split(key)
    x = jax.random.normal(kx, (BATCH, H, W, DIM), jnp.float32)
    params = make_params(kp)

    out = jax.block_until_ready(jax.jit(attention_forward)(x, params))
    assert out.shape == (BATCH, H, W, DIM), out.shape

    ref = jax.block_until_ready(ref_attention(x, params))
    err = float(jnp.max(jnp.abs(out - ref)))
    if not np.allclose(np.asarray(out), np.asarray(ref), rtol=1e-3, atol=5e-3):
        raise SystemExit(f"kernel/reference mismatch, max|diff| = {err}")
    print("KERNEL_OK")
</pallas_src>

<mosaic_0001>
module attributes {stable_mosaic.version = 11 : i64} {
  func.func @_fused_attention_kernel(%arg0: i32, %arg1: memref<1x256x32xf32, #tpu.memory_space<vmem>>, %arg2: memref<32x192xbf16, #tpu.memory_space<vmem>>, %arg3: memref<1x192xf32, #tpu.memory_space<vmem>>, %arg4: memref<1x32xf32, #tpu.memory_space<vmem>>, %arg5: memref<1x256x32xf32, #tpu.memory_space<vmem>>) attributes {dimension_semantics = [#tpu.dimension_semantics<parallel>], iteration_bounds = array<i64: 2>, scalar_prefetch = 0 : i64, scratch_operands = 0 : i64, tpu.core_type = #tpu.core_type<tc>, window_params = [{transform_indices = @transform_0, window_bounds = array<i64: 1, 256, 32>}, {pipeline_mode = #tpu.pipeline_mode<synchronous>, transform_indices = @transform_1, window_bounds = array<i64: 32, 192>}, {pipeline_mode = #tpu.pipeline_mode<synchronous>, transform_indices = @transform_2, window_bounds = array<i64: 1, 192>}, {pipeline_mode = #tpu.pipeline_mode<synchronous>, transform_indices = @transform_3, window_bounds = array<i64: 1, 32>}, {transform_indices = @transform_4, window_bounds = array<i64: 1, 256, 32>}]} {
    %c0 = arith.constant 0 : index
    %c0_0 = arith.constant 0 : index
    %c0_1 = arith.constant 0 : index
    %0 = vector.load %arg1[%c0, %c0_0, %c0_1] : memref<1x256x32xf32, #tpu.memory_space<vmem>>, vector<1x256x32xf32>
    %1 = vector.shape_cast %0 : vector<1x256x32xf32> to vector<256x32xf32>
    %2 = arith.truncf %1 : vector<256x32xf32> to vector<256x32xbf16>
    %c0_2 = arith.constant 0 : index
    %c0_3 = arith.constant 0 : index
    %3 = vector.load %arg2[%c0_2, %c0_3] : memref<32x192xbf16, #tpu.memory_space<vmem>>, vector<32x192xbf16>
    %cst = arith.constant dense<0.000000e+00> : vector<256x192xf32>
    %4 = tpu.matmul %2, %3, %cst {dimension_numbers = #tpu.dot_dimension_numbers<[1], [0], [0], [1], [0, 0, 1, 1], [], []>} : vector<256x32xbf16>, vector<32x192xbf16>, vector<256x192xf32> -> vector<256x192xf32>
    %c0_4 = arith.constant 0 : index
    %c0_5 = arith.constant 0 : index
    %5 = vector.load %arg3[%c0_4, %c0_5] : memref<1x192xf32, #tpu.memory_space<vmem>>, vector<1x192xf32>
    %6 = vector.broadcast %5 : vector<1x192xf32> to vector<256x192xf32>
    %7 = arith.addf %4, %6 : vector<256x192xf32>
    %8 = vector.extract_strided_slice %7 {offsets = [0, 0], sizes = [256, 32], strides = [1, 1]} : vector<256x192xf32> to vector<256x32xf32>
    %9 = vector.extract_strided_slice %7 {offsets = [0, 32], sizes = [256, 32], strides = [1, 1]} : vector<256x192xf32> to vector<256x32xf32>
    %10 = tpu.transpose %9, [1, 0] : vector<256x32xf32> -> vector<32x256xf32>
    %cst_6 = arith.constant 0.000000e+00 : f32
    %11 = vector.broadcast %cst_6 : f32 to vector<256x32xf32>
    %12 = vector.extract_strided_slice %8 {offsets = [0, 0], sizes = [256, 8], strides = [1, 1]} : vector<256x32xf32> to vector<256x8xf32>
    %13 = vector.extract_strided_slice %10 {offsets = [0, 0], sizes = [8, 256], strides = [1, 1]} : vector<32x256xf32> to vector<8x256xf32>
    %14 = arith.truncf %12 : vector<256x8xf32> to vector<256x8xbf16>
    %15 = arith.truncf %13 : vector<8x256xf32> to vector<8x256xbf16>
    %cst_7 = arith.constant dense<0.000000e+00> : vector<256x256xf32>
    %16 = tpu.matmul %14, %15, %cst_7 {dimension_numbers = #tpu.dot_dimension_numbers<[1], [0], [0], [1], [0, 0, 1, 1], [], []>} : vector<256x8xbf16>, vector<8x256xbf16>, vector<256x256xf32> -> vector<256x256xf32>
    %cst_8 = arith.constant dense<0xFF800000> : vector<256xf32>
    %17 = vector.multi_reduction <maximumf>, %16, %cst_8 [1] : vector<256x256xf32> to vector<256xf32>
    %18 = vector.shape_cast %17 : vector<256xf32> to vector<256x1xf32>
    %19 = vector.broadcast %18 : vector<256x1xf32> to vector<256x256xf32>
    %20 = arith.subf %16, %19 : vector<256x256xf32>
    %21 = math.exp %20 : vector<256x256xf32>
    %cst_9 = arith.constant dense<0.000000e+00> : vector<256xf32>
    %22 = vector.multi_reduction <add>, %21, %cst_9 [1] : vector<256x256xf32> to vector<256xf32>
    %23 = vector.shape_cast %22 : vector<256xf32> to vector<256x1xf32>
    %24 = vector.extract_strided_slice %7 {offsets = [0, 64], sizes = [256, 32], strides = [1, 1]} : vector<256x192xf32> to vector<256x32xf32>
    %25 = arith.truncf %21 : vector<256x256xf32> to vector<256x256xbf16>
    %26 = arith.truncf %24 : vector<256x32xf32> to vector<256x32xbf16>
    %cst_10 = arith.constant dense<0.000000e+00> : vector<256x32xf32>
    %27 = tpu.matmul %25, %26, %cst_10 {dimension_numbers = #tpu.dot_dimension_numbers<[1], [0], [0], [1], [0, 0, 1, 1], [], []>} : vector<256x256xbf16>, vector<256x32xbf16>, vector<256x32xf32> -> vector<256x32xf32>
    %28 = tpu.reciprocal %23 {approx = true} : vector<256x1xf32> -> vector<256x1xf32>
    %29 = vector.broadcast %28 : vector<256x1xf32> to vector<256x32xf32>
    %30 = arith.mulf %27, %29 : vector<256x32xf32>
    %31 = arith.addf %11, %30 : vector<256x32xf32>
    %32 = vector.extract_strided_slice %8 {offsets = [0, 8], sizes = [256, 8], strides = [1, 1]} : vector<256x32xf32> to vector<256x8xf32>
    %33 = vector.extract_strided_slice %10 {offsets = [8, 0], sizes = [8, 256], strides = [1, 1]} : vector<32x256xf32> to vector<8x256xf32>
    %34 = arith.truncf %32 : vector<256x8xf32> to vector<256x8xbf16>
    %35 = arith.truncf %33 : vector<8x256xf32> to vector<8x256xbf16>
    %cst_11 = arith.constant dense<0.000000e+00> : vector<256x256xf32>
    %36 = tpu.matmul %34, %35, %cst_11 {dimension_numbers = #tpu.dot_dimension_numbers<[1], [0], [0], [1], [0, 0, 1, 1], [], []>} : vector<256x8xbf16>, vector<8x256xbf16>, vector<256x256xf32> -> vector<256x256xf32>
    %cst_12 = arith.constant dense<0xFF800000> : vector<256xf32>
    %37 = vector.multi_reduction <maximumf>, %36, %cst_12 [1] : vector<256x256xf32> to vector<256xf32>
    %38 = vector.shape_cast %37 : vector<256xf32> to vector<256x1xf32>
    %39 = vector.broadcast %38 : vector<256x1xf32> to vector<256x256xf32>
    %40 = arith.subf %36, %39 : vector<256x256xf32>
    %41 = math.exp %40 : vector<256x256xf32>
    %cst_13 = arith.constant dense<0.000000e+00> : vector<256xf32>
    %42 = vector.multi_reduction <add>, %41, %cst_13 [1] : vector<256x256xf32> to vector<256xf32>
    %43 = vector.shape_cast %42 : vector<256xf32> to vector<256x1xf32>
    %44 = vector.extract_strided_slice %7 {offsets = [0, 96], sizes = [256, 32], strides = [1, 1]} : vector<256x192xf32> to vector<256x32xf32>
    %45 = arith.truncf %41 : vector<256x256xf32> to vector<256x256xbf16>
    %46 = arith.truncf %44 : vector<256x32xf32> to vector<256x32xbf16>
    %cst_14 = arith.constant dense<0.000000e+00> : vector<256x32xf32>
    %47 = tpu.matmul %45, %46, %cst_14 {dimension_numbers = #tpu.dot_dimension_numbers<[1], [0], [0], [1], [0, 0, 1, 1], [], []>} : vector<256x256xbf16>, vector<256x32xbf16>, vector<256x32xf32> -> vector<256x32xf32>
    %48 = tpu.reciprocal %43 {approx = true} : vector<256x1xf32> -> vector<256x1xf32>
    %49 = vector.broadcast %48 : vector<256x1xf32> to vector<256x32xf32>
    %50 = arith.mulf %47, %49 : vector<256x32xf32>
    %51 = arith.addf %31, %50 : vector<256x32xf32>
    %52 = vector.extract_strided_slice %8 {offsets = [0, 16], sizes = [256, 8], strides = [1, 1]} : vector<256x32xf32> to vector<256x8xf32>
    %53 = vector.extract_strided_slice %10 {offsets = [16, 0], sizes = [8, 256], strides = [1, 1]} : vector<32x256xf32> to vector<8x256xf32>
    %54 = arith.truncf %52 : vector<256x8xf32> to vector<256x8xbf16>
    %55 = arith.truncf %53 : vector<8x256xf32> to vector<8x256xbf16>
    %cst_15 = arith.constant dense<0.000000e+00> : vector<256x256xf32>
    %56 = tpu.matmul %54, %55, %cst_15 {dimension_numbers = #tpu.dot_dimension_numbers<[1], [0], [0], [1], [0, 0, 1, 1], [], []>} : vector<256x8xbf16>, vector<8x256xbf16>, vector<256x256xf32> -> vector<256x256xf32>
    %cst_16 = arith.constant dense<0xFF800000> : vector<256xf32>
    %57 = vector.multi_reduction <maximumf>, %56, %cst_16 [1] : vector<256x256xf32> to vector<256xf32>
    %58 = vector.shape_cast %57 : vector<256xf32> to vector<256x1xf32>
    %59 = vector.broadcast %58 : vector<256x1xf32> to vector<256x256xf32>
    %60 = arith.subf %56, %59 : vector<256x256xf32>
    %61 = math.exp %60 : vector<256x256xf32>
    %cst_17 = arith.constant dense<0.000000e+00> : vector<256xf32>
    %62 = vector.multi_reduction <add>, %61, %cst_17 [1] : vector<256x256xf32> to vector<256xf32>
    %63 = vector.shape_cast %62 : vector<256xf32> to vector<256x1xf32>
    %64 = vector.extract_strided_slice %7 {offsets = [0, 128], sizes = [256, 32], strides = [1, 1]} : vector<256x192xf32> to vector<256x32xf32>
    %65 = arith.truncf %61 : vector<256x256xf32> to vector<256x256xbf16>
    %66 = arith.truncf %64 : vector<256x32xf32> to vector<256x32xbf16>
    %cst_18 = arith.constant dense<0.000000e+00> : vector<256x32xf32>
    %67 = tpu.matmul %65, %66, %cst_18 {dimension_numbers = #tpu.dot_dimension_numbers<[1], [0], [0], [1], [0, 0, 1, 1], [], []>} : vector<256x256xbf16>, vector<256x32xbf16>, vector<256x32xf32> -> vector<256x32xf32>
    %68 = tpu.reciprocal %63 {approx = true} : vector<256x1xf32> -> vector<256x1xf32>
    %69 = vector.broadcast %68 : vector<256x1xf32> to vector<256x32xf32>
    %70 = arith.mulf %67, %69 : vector<256x32xf32>
    %71 = arith.addf %51, %70 : vector<256x32xf32>
    %72 = vector.extract_strided_slice %8 {offsets = [0, 24], sizes = [256, 8], strides = [1, 1]} : vector<256x32xf32> to vector<256x8xf32>
    %73 = vector.extract_strided_slice %10 {offsets = [24, 0], sizes = [8, 256], strides = [1, 1]} : vector<32x256xf32> to vector<8x256xf32>
    %74 = arith.truncf %72 : vector<256x8xf32> to vector<256x8xbf16>
    %75 = arith.truncf %73 : vector<8x256xf32> to vector<8x256xbf16>
    %cst_19 = arith.constant dense<0.000000e+00> : vector<256x256xf32>
    %76 = tpu.matmul %74, %75, %cst_19 {dimension_numbers = #tpu.dot_dimension_numbers<[1], [0], [0], [1], [0, 0, 1, 1], [], []>} : vector<256x8xbf16>, vector<8x256xbf16>, vector<256x256xf32> -> vector<256x256xf32>
    %cst_20 = arith.constant dense<0xFF800000> : vector<256xf32>
    %77 = vector.multi_reduction <maximumf>, %76, %cst_20 [1] : vector<256x256xf32> to vector<256xf32>
    %78 = vector.shape_cast %77 : vector<256xf32> to vector<256x1xf32>
    %79 = vector.broadcast %78 : vector<256x1xf32> to vector<256x256xf32>
    %80 = arith.subf %76, %79 : vector<256x256xf32>
    %81 = math.exp %80 : vector<256x256xf32>
    %cst_21 = arith.constant dense<0.000000e+00> : vector<256xf32>
    %82 = vector.multi_reduction <add>, %81, %cst_21 [1] : vector<256x256xf32> to vector<256xf32>
    %83 = vector.shape_cast %82 : vector<256xf32> to vector<256x1xf32>
    %84 = vector.extract_strided_slice %7 {offsets = [0, 160], sizes = [256, 32], strides = [1, 1]} : vector<256x192xf32> to vector<256x32xf32>
    %85 = arith.truncf %81 : vector<256x256xf32> to vector<256x256xbf16>
    %86 = arith.truncf %84 : vector<256x32xf32> to vector<256x32xbf16>
    %cst_22 = arith.constant dense<0.000000e+00> : vector<256x32xf32>
    %87 = tpu.matmul %85, %86, %cst_22 {dimension_numbers = #tpu.dot_dimension_numbers<[1], [0], [0], [1], [0, 0, 1, 1], [], []>} : vector<256x256xbf16>, vector<256x32xbf16>, vector<256x32xf32> -> vector<256x32xf32>
    %88 = tpu.reciprocal %83 {approx = true} : vector<256x1xf32> -> vector<256x1xf32>
    %89 = vector.broadcast %88 : vector<256x1xf32> to vector<256x32xf32>
    %90 = arith.mulf %87, %89 : vector<256x32xf32>
    %91 = arith.addf %71, %90 : vector<256x32xf32>
    %c0_23 = arith.constant 0 : index
    %c0_24 = arith.constant 0 : index
    %92 = vector.load %arg4[%c0_23, %c0_24] : memref<1x32xf32, #tpu.memory_space<vmem>>, vector<1x32xf32>
    %93 = vector.broadcast %92 : vector<1x32xf32> to vector<256x32xf32>
    %94 = arith.addf %91, %93 : vector<256x32xf32>
    %c0_25 = arith.constant 0 : index
    %c0_26 = arith.constant 0 : index
    %c0_27 = arith.constant 0 : index
    %95 = vector.load %arg5[%c0_25, %c0_26, %c0_27] : memref<1x256x32xf32, #tpu.memory_space<vmem>>, vector<1x256x32xf32>
    %96 = vector.shape_cast %95 : vector<1x256x32xf32> to vector<256x32xf32>
    %97 = vector.shape_cast %94 : vector<256x32xf32> to vector<1x256x32xf32>
    tpu.vector_store %arg5[%c0_25, %c0_26, %c0_27], %97 {strides = array<i32>} : memref<1x256x32xf32, #tpu.memory_space<vmem>>, vector<1x256x32xf32>,
    return
  }
  func.func @transform_0(%arg0: i32) -> (i32, i32, i32) {
    %c0_i32 = arith.constant 0 : i32
    %c0_i32_0 = arith.constant 0 : i32
    %c0_i32_1 = arith.constant 0 : i32
    return %arg0, %c0_i32, %c0_i32_0 : i32, i32, i32
  }
  func.func @transform_1(%arg0: i32) -> (i32, i32) {
    %c0_i32 = arith.constant 0 : i32
    %c0_i32_0 = arith.constant 0 : i32
    %c0_i32_1 = arith.constant 0 : i32
    return %c0_i32, %c0_i32_0 : i32, i32
  }
  func.func @transform_2(%arg0: i32) -> (i32, i32) {
    %c0_i32 = arith.constant 0 : i32
    %c0_i32_0 = arith.constant 0 : i32
    %c0_i32_1 = arith.constant 0 : i32
    return %c0_i32, %c0_i32_0 : i32, i32
  }
  func.func @transform_3(%arg0: i32) -> (i32, i32) {
    %c0_i32 = arith.constant 0 : i32
    %c0_i32_0 = arith.constant 0 : i32
    %c0_i32_1 = arith.constant 0 : i32
    return %c0_i32, %c0_i32_0 : i32, i32
  }
  func.func @transform_4(%arg0: i32) -> (i32, i32, i32) {
    %c0_i32 = arith.constant 0 : i32
    %c0_i32_0 = arith.constant 0 : i32
    %c0_i32_1 = arith.constant 0 : i32
    return %arg0, %c0_i32, %c0_i32_0 : i32, i32, i32
  }
}

</mosaic_0001>

<llo_original>
// kernel: attention_forward.1
$region0: #{attention_forward.1}
  #allocation0 [shape = 'u32[]', space=smem, size = 0x4, offset = 0x4, fixed_abs, tag = 'smem constant byte address 0x4 - core index']
  #allocation1 [shape = 'u32[72,128]{1,0:T(1,128)}', space=vmem, size = 0x9000, scoped, tag = 'internal scratch']
  %s0 = inlined_call_operand.hbm [shape: f32[2,256,32], index: 0, kind: input, shape index: {}]
  %s1 = inlined_call_operand.vmem [shape: bf16[32,192], index: 1, kind: input, shape index: {}]
  %s2 = inlined_call_operand.vmem [shape: f32[1,192], index: 2, kind: input, shape index: {}]
  %s3 = inlined_call_operand.vmem [shape: f32[1,32], index: 3, kind: input, shape index: {}]
  %s4 = inlined_call_operand.hbm [shape: f32[2,256,32], index: 4, kind: output, shape index: {}]
  %s5 = sld [smem:[#allocation0]]
  $region53: #{attention_forward.1} parent=0
    _
  %s7 = ssub.s32 1, %s5
  %s8 = scalar_select 0, %s7, %s5
  $region1: #{attention_forward.1} parent=0
    #allocation2 [shape = 'u8[262144]{0}', space=vmem, size = 0x40000, scoped, tag = 'input window, operand 0']
    #allocation3 [shape = 's32[2]{0}', space=sflag, size = 0x8, scoped, tag = 'scoped memory for attention_forward.1']
    #allocation4 [shape = 's32[2]{0}', space=sflag, size = 0x8, scoped, tag = 'scoped memory for attention_forward.1']
    #allocation5 [shape = 'u8[262144]{0}', space=vmem, size = 0x40000, scoped, tag = 'output window, operand 0']
    %9 = vsyncpa [#allocation3], 0
    %s10 = scalar_lea.sflag [#allocation3], 1
    %11 = vsyncpa %s10, 0
    %12 = vsyncpa [#allocation4], 0
    %s13 = scalar_lea.sflag [#allocation4], 1
    %14 = vsyncpa %s13, 0
    loop: start=0, step=1, limit=4
    $region2: #{attention_forward.1} parent=1 // loop_pre_header
      _
    $region3: #{attention_forward.1} parent=1 // loop_header
      %s16 = sphi 0, %s20
      %p17 = scmp.ge.s32.totalorder %s16, 4
      %s26 = sphi 0, %s28
      %s29 = sphi 0, %s26
      %s30 = sphi 0, %s29
      %s46 = sphi 0, %s30
      %s50 = sphi 0, %s50
      %s52 = sphi 0, %s50
      %s53 = sphi 0, %s52
      %s67 = sphi 0, %s53
      %s71 = sphi 0, %s71
      %s73 = sphi 0, %s71
      %s74 = sphi 0, %s73
      %s88 = sphi 0, %s74
      %s92 = sphi 0, %s92
      %s94 = sphi 0, %s92
      %s95 = sphi 0, %s94
      %s109 = sphi 0, %s95
      %s115 = sphi 0, %s117
      %s118 = sphi 0, %s115
      %s119 = sphi 0, %s118
      %s135 = sphi 0, %s119
    $region4: #{attention_forward.1} parent=1 // loop_header_branch
      %19 = sbr.rel (%p17) target = $region8
    $region5: #{attention_forward.1} parent=1 // loop_body
      %s21 = ssub.s32 %s16, 1
      %s22 = ssub.s32 %s16, 2
      %s23 = sadd.s32 %s16, 1
      %s24 = ssub.s32 %s16, %s23
      %p25 = scmp.eq.s32.totalorder %s24, 0
      %s27 = sadd.s32 %s26, 1
      %s28 = scalar_select %p25, %s26, %s27
      %p31 = pneg %p25
      %p32 = scmp.eq.s32.totalorder %s16, 1
      %p33 = por %p31, %p32
      %p34 = scmp.ne.s32.totalorder %s26, %s29
      %p35 = scmp.eq.s32.totalorder %s16, 0
      %p36 = por %p34, %p35
      %p37 = scmp.ne.s32.totalorder %s26, %s29
      %p38 = scmp.eq.s32.totalorder %s21, 1
      %p39 = por %p37, %p38
      %p40 = scmp.ne.s32.totalorder %s29, %s30
      %p41 = scmp.eq.s32.totalorder %s21, 0
      %p42 = por %p40, %p41
      %p43 = scmp.ne.s32.totalorder %s29, %s30
      %p44 = scmp.eq.s32.totalorder %s22, 1
      %p45 = por %p43, %p44
      %p47 = scmp.ne.s32.totalorder %s30, %s46
      %p48 = scmp.eq.s32.totalorder %s22, 0
      %p49 = por %p47, %p48
      %s51 = sadd.s32 %s50, 1
      %p54 = scmp.eq.s32.totalorder %s16, 1
      %p55 = scmp.ne.s32.totalorder %s50, %s52
      %p56 = scmp.eq.s32.totalorder %s16, 0
      %p57 = por %p55, %p56
      %p58 = scmp.ne.s32.totalorder %s50, %s52
      %p59 = scmp.eq.s32.totalorder %s21, 1
      %p60 = por %p58, %p59
      %p61 = scmp.ne.s32.totalorder %s52, %s53
      %p62 = scmp.eq.s32.totalorder %s21, 0
      %p63 = por %p61, %p62
      %p64 = scmp.ne.s32.totalorder %s52, %s53
      %p65 = scmp.eq.s32.totalorder %s22, 1
      %p66 = por %p64, %p65
      %p68 = scmp.ne.s32.totalorder %s53, %s67
      %p69 = scmp.eq.s32.totalorder %s22, 0
      %p70 = por %p68, %p69
      %s72 = sadd.s32 %s71, 1
      %p75 = scmp.eq.s32.totalorder %s16, 1
      %p76 = scmp.ne.s32.totalorder %s71, %s73
      %p77 = scmp.eq.s32.totalorder %s16, 0
      %p78 = por %p76, %p77
      %p79 = scmp.ne.s32.totalorder %s71, %s73
      %p80 = scmp.eq.s32.totalorder %s21, 1
      %p81 = por %p79, %p80
      %p82 = scmp.ne.s32.totalorder %s73, %s74
      %p83 = scmp.eq.s32.totalorder %s21, 0
      %p84 = por %p82, %p83
      %p85 = scmp.ne.s32.totalorder %s73, %s74
      %p86 = scmp.eq.s32.totalorder %s22, 1
      %p87 = por %p85, %p86
      %p89 = scmp.ne.s32.totalorder %s74, %s88
      %p90 = scmp.eq.s32.totalorder %s22, 0
      %p91 = por %p89, %p90
      %s93 = sadd.s32 %s92, 1
      %p96 = scmp.eq.s32.totalorder %s16, 1
      %p97 = scmp.ne.s32.totalorder %s92, %s94
      %p98 = scmp.eq.s32.totalorder %s16, 0
      %p99 = por %p97, %p98
      %p100 = scmp.ne.s32.totalorder %s92, %s94
      %p101 = scmp.eq.s32.totalorder %s21, 1
      %p102 = por %p100, %p101
      %p103 = scmp.ne.s32.totalorder %s94, %s95
      %p104 = scmp.eq.s32.totalorder %s21, 0
      %p105 = por %p103, %p104
      %p106 = scmp.ne.s32.totalorder %s94, %s95
      %p107 = scmp.eq.s32.totalorder %s22, 1
      %p108 = por %p106, %p107
      %p110 = scmp.ne.s32.totalorder %s95, %s109
      %p111 = scmp.eq.s32.totalorder %s22, 0
      %p112 = por %p110, %p111
      %s113 = ssub.s32 %s16, %s23
      %p114 = scmp.eq.s32.totalorder %s113, 0
      %s116 = sadd.s32 %s115, 1
      %s117 = scalar_select %p114, %s115, %s116
      %p120 = pneg %p114
      %p121 = scmp.eq.s32.totalorder %s16, 1
      %p122 = por %p120, %p121
      %p123 = scmp.ne.s32.totalorder %s115, %s118
      %p124 = scmp.eq.s32.totalorder %s16, 0
      %p125 = por %p123, %p124
      %p126 = scmp.ne.s32.totalorder %s115, %s118
      %p127 = scmp.eq.s32.totalorder %s21, 1
      %p128 = por %p126, %p127
      %p129 = scmp.ne.s32.totalorder %s118, %s119
      %p130 = scmp.eq.s32.totalorder %s21, 0
      %p131 = por %p129, %p130
      %p132 = scmp.ne.s32.totalorder %s118, %s119
      %p133 = scmp.eq.s32.totalorder %s22, 1
      %p134 = por %p132, %p133
      %p136 = scmp.ne.s32.totalorder %s119, %s135
      %p137 = scmp.eq.s32.totalorder %s22, 0
      %p138 = por %p136, %p137
      %p139 = scmp.le.s32.totalorder 1, %s16
      %p140 = scmp.lt.s32.totalorder %s16, 3
      %p141 = pnand %p139, %p140
      %p142 = pneg %p141
      // Predicated region
      $region9: #{attention_forward.1} parent=5 // pred_check
        _
      $region10: #{attention_forward.1} parent=5 // pred_check_branch
        %144 = sbr.rel (%p141) target = $region12
      $region11: #{attention_forward.1} parent=5 // pred_region
        %s145 = ssub.s32 %s16, 1
        // Predicated region
        $region13: #{attention_forward.1} parent=11 // pred_check
          %p146 = pneg %p63
        $region14: #{attention_forward.1} parent=11 // pred_check_branch
          %148 = sbr.rel (%p146) target = $region16
        $region15: #{attention_forward.1} parent=11 // pred_region
          _
        $region16: #{attention_forward.1} parent=11 // pred_fallthru
          _
        // Predicated region
        $region17: #{attention_forward.1} parent=11 // pred_check
          %p149 = pneg %p84
        $region18: #{attention_forward.1} parent=11 // pred_check_branch
          %151 = sbr.rel (%p149) target = $region20
        $region19: #{attention_forward.1} parent=11 // pred_region
          _
        $region20: #{attention_forward.1} parent=11 // pred_fallthru
          _
        // Predicated region
        $region21: #{attention_forward.1} parent=11 // pred_check
          %p152 = pneg %p105
        $region22: #{attention_forward.1} parent=11 // pred_check_branch
          %154 = sbr.rel (%p152) target = $region24
        $region23: #{attention_forward.1} parent=11 // pred_region
          _
        $region24: #{attention_forward.1} parent=11 // pred_fallthru
          _
      $region12: #{attention_forward.1} parent=5 // pred_fallthru
        _
      %p155 = scmp.lt.s32.totalorder %s16, 2
      // Predicated region
      $region25: #{attention_forward.1} parent=5 // pred_check
        %p156 = pneg %p155
      $region26: #{attention_forward.1} parent=5 // pred_check_branch
        %158 = sbr.rel (%p156) target = $region28
      $region27: #{attention_forward.1} parent=5 // pred_region
        // Predicated region
        $region29: #{attention_forward.1} parent=27 // pred_check
          %p159 = pneg %p36
        $region30: #{attention_forward.1} parent=27 // pred_check_branch
          %161 = sbr.rel (%p159) target = $region32
        $region31: #{attention_forward.1} parent=27 // pred_region
          %s162 = sand.u32 %s26, 1
          %s163 = scalar_lea.sflag [#allocation3], %s162
          %s164 = sand.u32 %s26, 1
          %s165 = smul.addr %s164, 256
          %s166 = scalar_lea.vmem [#allocation2], %s165
          %168 = vsyncadd %s163, 0
          %s169 = smul.addr %s16, 32
          %s170 = smul.addr %s169, 8
          %s171 = scalar_lea.hbm %s0, %s170
          %s172 = sshll.u32 %s171, 4
          %s173 = int_to_ptr.hbm [resolvable:$true] %s172
          %s174 = sshll.u32 %s166, 4
          %s175 = int_to_ptr.vmem [resolvable:$true] %s174
          %180 = dma.hbm_to_vmem [thread:$0]  %s173, 4096, %s175, %s163, 128, 128, 8
        $region32: #{attention_forward.1} parent=27 // pred_fallthru
          _
      $region28: #{attention_forward.1} parent=5 // pred_fallthru
        _
      %p181 = scmp.le.s32.totalorder 1, %s16
      %p182 = scmp.lt.s32.totalorder %s16, 3
      %p183 = pnand %p181, %p182
      %p184 = pneg %p183
      // Predicated region
      $region33: #{attention_forward.1} parent=5 // pred_check
        _
      $region34: #{attention_forward.1} parent=5 // pred_check_branch
        %186 = sbr.rel (%p183) target = $region36
      $region35: #{attention_forward.1} parent=5 // pred_region
        %s187 = ssub.s32 %s16, 1
        %s188 = sand.u32 %s29, 1
        %s189 = scalar_lea.sflag [#allocation3], %s188
        %s190 = sand.u32 %s29, 1
        %s191 = smul.addr %s190, 256
        %s192 = scalar_lea.vmem [#allocation2], %s191
        // Predicated region
        $region37: #{attention_forward.1} parent=35 // pred_check
          %p193 = pneg %p42
        $region38: #{attention_forward.1} parent=35 // pred_check_branch
          %195 = sbr.rel (%p193) target = $region40
        $region39: #{attention_forward.1} parent=35 // pred_region
          %197 = dma.done %s189, 4096
        $region40: #{attention_forward.1} parent=35 // pred_fallthru
          _
        %s198 = sand.u32 %s29, 1
        %s199 = scalar_lea.sflag [#allocation3], %s198
        %s200 = sand.u32 %s29, 1
        %s201 = smul.addr %s200, 256
        %s202 = scalar_lea.vmem [#allocation2], %s201
        %p203 = pneg %p42
        %p204 = pneg %p39
        %p205 = pneg %p63
        %p206 = pneg %p60
        %p207 = pneg %p84
        %p208 = pneg %p81
        %p209 = pneg %p105
        %p210 = pneg %p102
        %p211 = pneg %p131
        %p212 = pneg %p128
        %s213 = sand.u32 %s118, 1
        %s214 = scalar_lea.sflag [#allocation4], %s213
        %s215 = sand.u32 %s118, 1
        %s216 = smul.addr %s215, 256
        %s217 = scalar_lea.vmem [#allocation5], %s216
        %v219 = vld [vmem:[%s192] sm:$0xff]
        %v220 = vld [vmem:[%s192 + $0x8] sm:$0xff]
        %v221 = vld [vmem:[%s192 + $0x10] sm:$0xff]
        %v222 = vld [vmem:[%s192 + $0x18] sm:$0xff]
        %v223 = vld [vmem:[%s192 + $0x20] sm:$0xff]
        %v224 = vld [vmem:[%s192 + $0x28] sm:$0xff]
        %v225 = vld [vmem:[%s192 + $0x30] sm:$0xff]
        %v226 = vld [vmem:[%s192 + $0x38] sm:$0xff]
        %v227 = vld [vmem:[%s192 + $0x40] sm:$0xff]
        %v228 = vld [vmem:[%s192 + $0x48] sm:$0xff]
        %v229 = vld [vmem:[%s192 + $0x50] sm:$0xff]
        %v230 = vld [vmem:[%s192 + $0x58] sm:$0xff]
        %v231 = vld [vmem:[%s192 + $0x60] sm:$0xff]
        %v232 = vld [vmem:[%s192 + $0x68] sm:$0xff]
        %v233 = vld [vmem:[%s192 + $0x70] sm:$0xff]
        %v234 = vld [vmem:[%s192 + $0x78] sm:$0xff]
        %v235 = vld [vmem:[%s192 + $0x80] sm:$0xff]
        %v236 = vld [vmem:[%s192 + $0x88] sm:$0xff]
        %v237 = vld [vmem:[%s192 + $0x90] sm:$0xff]
        %v238 = vld [vmem:[%s192 + $0x98] sm:$0xff]
        %v239 = vld [vmem:[%s192 + $0xa0] sm:$0xff]
        %v240 = vld [vmem:[%s192 + $0xa8] sm:$0xff]
        %v241 = vld [vmem:[%s192 + $0xb0] sm:$0xff]
        %v242 = vld [vmem:[%s192 + $0xb8] sm:$0xff]
        %v243 = vld [vmem:[%s192 + $0xc0] sm:$0xff]
        %v244 = vld [vmem:[%s192 + $0xc8] sm:$0xff]
        %v245 = vld [vmem:[%s192 + $0xd0] sm:$0xff]
        %v246 = vld [vmem:[%s192 + $0xd8] sm:$0xff]
        %v247 = vld [vmem:[%s192 + $0xe0] sm:$0xff]
        %v248 = vld [vmem:[%s192 + $0xe8] sm:$0xff]
        %v249 = vld [vmem:[%s192 + $0xf0] sm:$0xff]
        %v250 = vld [vmem:[%s192 + $0xf8] sm:$0xff]
        %v251 = vpack.c.bf16 %v220, %v219
        %v252 = vpack.c.bf16 %v222, %v221
        %v253 = vpack.c.bf16 %v224, %v223
        %v254 = vpack.c.bf16 %v226, %v225
        %v255 = vpack.c.bf16 %v228, %v227
        %v256 = vpack.c.bf16 %v230, %v229
        %v257 = vpack.c.bf16 %v232, %v231
        %v258 = vpack.c.bf16 %v234, %v233
        %v259 = vpack.c.bf16 %v236, %v235
        %v260 = vpack.c.bf16 %v238, %v237
        %v261 = vpack.c.bf16 %v240, %v239
        %v262 = vpack.c.bf16 %v242, %v241
        %v263 = vpack.c.bf16 %v244, %v243
        %v264 = vpack.c.bf16 %v246, %v245
        %v265 = vpack.c.bf16 %v248, %v247
        %v266 = vpack.c.bf16 %v250, %v249
        %v267 = vld [vmem:[%s1] sm:$0xff]
        %v268 = vld [vmem:[%s1 + $0x8] sm:$0xff]
        %v269 = vld [vmem:[%s1 + $0x10] sm:$0xff]
        %v270 = vld [vmem:[%s1 + $0x18] sm:$0xff]
        %v271 = vld [vmem:[%s2] sm:$0x3]
        %v273 = vperm.slane %v271, 0
        %v274 = vperm.slane %v271, 1
        %v281 = vunpack.c.l.b16 %v267
        %v282 = vunpack.c.h.b16 %v267
        %v283 = vunpack.c.l.b16 %v268
        %v284 = vunpack.c.h.b16 %v268
        %v285 = vunpack.c.l.b16 %v269
        %v286 = vunpack.c.h.b16 %v269
        %v287 = vunpack.c.l.b16 %v270
        %v288 = vunpack.c.h.b16 %v270
        %v289 = vpack.c.b16 %v283, %v281
        %v290 = vpack.c.b16 %v284, %v282
        %v291 = vpack.c.b16 %v287, %v285
        %v292 = vpack.c.b16 %v288, %v286
        %vm297 = vcmask 261120
        %v299 = vsel %vm297, %v251, 0
        %v302 = vsel %vm297, %v252, 0
        %v305 = vsel %vm297, %v253, 0
        %v308 = vsel %vm297, %v254, 0
        %v311 = vsel %vm297, %v255, 0
        %v314 = vsel %vm297, %v256, 0
        %v317 = vsel %vm297, %v257, 0
        %v320 = vsel %vm297, %v258, 0
        %v323 = vsel %vm297, %v259, 0
        %v326 = vsel %vm297, %v260, 0
        %v329 = vsel %vm297, %v261, 0
        %v332 = vsel %vm297, %v262, 0
        %v335 = vsel %vm297, %v263, 0
        %v338 = vsel %vm297, %v264, 0
        %v341 = vsel %vm297, %v265, 0
        %v344 = vsel %vm297, %v266, 0
        %346 = vmatpush.bf16.msra.mxu0 0
        %347 = vmatpush.bf16.msra.mxu0 0
        %348 = vmatpush.bf16.msra.mxu0 0
        %349 = vmatpush.bf16.msra.mxu0 0
        %350 = vmatpush.bf16.msra.mxu0 0
        %351 = vmatpush.bf16.msra.mxu0 0
        %352 = vmatpush.bf16.msra.mxu0 %v291
        %353 = vmatpush.bf16.msra.mxu0 %v289
        %354 = vmatmul.bf16.gmra.mxu0 %v299
        %v355 = vpop.f32.mrf.mxu0
        %v356 = vadd.f32 %v273, %v355
        %v357 = vpop.f32.mrf.mxu0
        %v358 = vadd.f32 %v273, %v357
        %359 = vmatmul.bf16.gmra.mxu0 %v302
        %v360 = vpop.f32.mrf.mxu0
        %v361 = vadd.f32 %v273, %v360
        %v362 = vpop.f32.mrf.mxu0
        %v363 = vadd.f32 %v273, %v362
        %364 = vmatmul.bf16.gmra.mxu0 %v305
        %v365 = vpop.f32.mrf.mxu0
        %v366 = vadd.f32 %v273, %v365
        %v367 = vpop.f32.mrf.mxu0
        %v368 = vadd.f32 %v273, %v367
        %369 = vmatmul.bf16.gmra.mxu0 %v308
        %v370 = vpop.f32.mrf.mxu0
        %v371 = vadd.f32 %v273, %v370
        %v372 = vpop.f32.mrf.mxu0
        %v373 = vadd.f32 %v273, %v372
        %374 = vmatmul.bf16.gmra.mxu0 %v311
        %v375 = vpop.f32.mrf.mxu0
        %v376 = vadd.f32 %v273, %v375
        %v377 = vpop.f32.mrf.mxu0
        %v378 = vadd.f32 %v273, %v377
        %379 = vmatmul.bf16.gmra.mxu0 %v314
        %v380 = vpop.f32.mrf.mxu0
        %v381 = vadd.f32 %v273, %v380
        %v382 = vpop.f32.mrf.mxu0
        %v383 = vadd.f32 %v273, %v382
        %384 = vmatmul.bf16.gmra.mxu0 %v317
        %v385 = vpop.f32.mrf.mxu0
        %v386 = vadd.f32 %v273, %v385
        %v387 = vpop.f32.mrf.mxu0
        %v388 = vadd.f32 %v273, %v387
        %389 = vmatmul.bf16.gmra.mxu0 %v320
        %v390 = vpop.f32.mrf.mxu0
        %v391 = vadd.f32 %v273, %v390
        %v392 = vpop.f32.mrf.mxu0
        %v393 = vadd.f32 %v273, %v392
        %394 = vmatmul.bf16.gmra.mxu0 %v323
        %v395 = vpop.f32.mrf.mxu0
        %v396 = vadd.f32 %v273, %v395
        %v397 = vpop.f32.mrf.mxu0
        %v398 = vadd.f32 %v273, %v397
        %399 = vmatmul.bf16.gmra.mxu0 %v326
        %v400 = vpop.f32.mrf.mxu0
        %v401 = vadd.f32 %v273, %v400
        %v402 = vpop.f32.mrf.mxu0
        %v403 = vadd.f32 %v273, %v402
        %404 = vmatmul.bf16.gmra.mxu0 %v329
        %v405 = vpop.f32.mrf.mxu0
        %v406 = vadd.f32 %v273, %v405
        %v407 = vpop.f32.mrf.mxu0
        %v408 = vadd.f32 %v273, %v407
        %409 = vmatmul.bf16.gmra.mxu0 %v332
        %v410 = vpop.f32.mrf.mxu0
        %v411 = vadd.f32 %v273, %v410
        %v412 = vpop.f32.mrf.mxu0
        %v413 = vadd.f32 %v273, %v412
        %414 = vmatmul.bf16.gmra.mxu0 %v335
        %v415 = vpop.f32.mrf.mxu0
        %v416 = vadd.f32 %v273, %v415
        %v417 = vpop.f32.mrf.mxu0
        %v418 = vadd.f32 %v273, %v417
        %419 = vmatmul.bf16.gmra.mxu0 %v338
        %v420 = vpop.f32.mrf.mxu0
        %v421 = vadd.f32 %v273, %v420
        %v422 = vpop.f32.mrf.mxu0
        %v423 = vadd.f32 %v273, %v422
        %424 = vmatmul.bf16.gmra.mxu0 %v341
        %v425 = vpop.f32.mrf.mxu0
        %v426 = vadd.f32 %v273, %v425
        %v427 = vpop.f32.mrf.mxu0
        %v428 = vadd.f32 %v273, %v427
        %429 = vmatmul.bf16.gmra.mxu0 %v344
        %v430 = vpop.f32.mrf.mxu0
        %v431 = vadd.f32 %v273, %v430
        %v432 = vpop.f32.mrf.mxu0
        %v433 = vadd.f32 %v273, %v432
        %434 = vdwg.mxu0
        %435 = vmatpush.bf16.msra.mxu0 0
        %436 = vmatpush.bf16.msra.mxu0 0
        %437 = vmatpush.bf16.msra.mxu0 0
        %438 = vmatpush.bf16.msra.mxu0 0
        %439 = vmatpush.bf16.msra.mxu0 0
        %440 = vmatpush.bf16.msra.mxu0 0
        %441 = vmatpush.bf16.msra.mxu0 %v292
        %442 = vmatpush.bf16.msra.mxu0 %v290
        %443 = vmatmul.bf16.gmra.mxu0 %v299
        %v444 = vpop.f32.mrf.mxu0
        %v445 = vadd.f32 %v274, %v444
        %v446 = vpop.f32.mrf.mxu0
        %v447 = vadd.f32 %v274, %v446
        %448 = vmatmul.bf16.gmra.mxu0 %v302
        %v449 = vpop.f32.mrf.mxu0
        %v450 = vadd.f32 %v274, %v449
        %v451 = vpop.f32.mrf.mxu0
        %v452 = vadd.f32 %v274, %v451
        %453 = vmatmul.bf16.gmra.mxu0 %v305
        %v454 = vpop.f32.mrf.mxu0
        %v455 = vadd.f32 %v274, %v454
        %v456 = vpop.f32.mrf.mxu0
        %v457 = vadd.f32 %v274, %v456
        %458 = vmatmul.bf16.gmra.mxu0 %v308
        %v459 = vpop.f32.mrf.mxu0
        %v460 = vadd.f32 %v274, %v459
        %v461 = vpop.f32.mrf.mxu0
        %v462 = vadd.f32 %v274, %v461
        %463 = vmatmul.bf16.gmra.mxu0 %v311
        %v464 = vpop.f32.mrf.mxu0
        %v465 = vadd.f32 %v274, %v464
        %v466 = vpop.f32.mrf.mxu0
        %v467 = vadd.f32 %v274, %v466
        %468 = vmatmul.bf16.gmra.mxu0 %v314
        %v469 = vpop.f32.mrf.mxu0
        %v470 = vadd.f32 %v274, %v469
        %v471 = vpop.f32.mrf.mxu0
        %v472 = vadd.f32 %v274, %v471
        %473 = vmatmul.bf16.gmra.mxu0 %v317
        %v474 = vpop.f32.mrf.mxu0
        %v475 = vadd.f32 %v274, %v474
        %v476 = vpop.f32.mrf.mxu0
        %v477 = vadd.f32 %v274, %v476
        %478 = vmatmul.bf16.gmra.mxu0 %v320
        %v479 = vpop.f32.mrf.mxu0
        %v480 = vadd.f32 %v274, %v479
        %v481 = vpop.f32.mrf.mxu0
        %v482 = vadd.f32 %v274, %v481
        %483 = vmatmul.bf16.gmra.mxu0 %v323
        %v484 = vpop.f32.mrf.mxu0
        %v485 = vadd.f32 %v274, %v484
        %v486 = vpop.f32.mrf.mxu0
        %v487 = vadd.f32 %v274, %v486
        %488 = vmatmul.bf16.gmra.mxu0 %v326
        %v489 = vpop.f32.mrf.mxu0
        %v490 = vadd.f32 %v274, %v489
        %v491 = vpop.f32.mrf.mxu0
        %v492 = vadd.f32 %v274, %v491
        %493 = vmatmul.bf16.gmra.mxu0 %v329
        %v494 = vpop.f32.mrf.mxu0
        %v495 = vadd.f32 %v274, %v494
        %v496 = vpop.f32.mrf.mxu0
        %v497 = vadd.f32 %v274, %v496
        %498 = vmatmul.bf16.gmra.mxu0 %v332
        %v499 = vpop.f32.mrf.mxu0
        %v500 = vadd.f32 %v274, %v499
        %v501 = vpop.f32.mrf.mxu0
        %v502 = vadd.f32 %v274, %v501
        %503 = vmatmul.bf16.gmra.mxu0 %v335
        %v504 = vpop.f32.mrf.mxu0
        %v505 = vadd.f32 %v274, %v504
        %v506 = vpop.f32.mrf.mxu0
        %v507 = vadd.f32 %v274, %v506
        %508 = vmatmul.bf16.gmra.mxu0 %v338
        %v509 = vpop.f32.mrf.mxu0
        %v510 = vadd.f32 %v274, %v509
        %v511 = vpop.f32.mrf.mxu0
        %v512 = vadd.f32 %v274, %v511
        %513 = vmatmul.bf16.gmra.mxu0 %v341
        %v514 = vpop.f32.mrf.mxu0
        %v515 = vadd.f32 %v274, %v514
        %v516 = vpop.f32.mrf.mxu0
        %v517 = vadd.f32 %v274, %v516
        %518 = vmatmul.bf16.gmra.mxu0 %v344
        %v519 = vpop.f32.mrf.mxu0
        %v520 = vadd.f32 %v274, %v519
        %v521 = vpop.f32.mrf.mxu0
        %v522 = vadd.f32 %v274, %v521
        %523 = vdwg.mxu0
        %556 = vrot.lane.b32.xlu0 %v356, 96
        %v557 = vpop.permute.xlu0 %556
        %558 = vrot.lane.b32.xlu0 %v358, 96
        %v559 = vpop.permute.xlu0 %558
        %560 = vrot.lane.b32.xlu0 %v361, 96
        %v561 = vpop.permute.xlu0 %560
        %562 = vrot.lane.b32.xlu0 %v363, 96
        %v563 = vpop.permute.xlu0 %562
        %564 = vrot.lane.b32.xlu0 %v366, 96
        %v565 = vpop.permute.xlu0 %564
        %566 = vrot.lane.b32.xlu0 %v368, 96
        %v567 = vpop.permute.xlu0 %566
        %568 = vrot.lane.b32.xlu0 %v371, 96
        %v569 = vpop.permute.xlu0 %568
        %570 = vrot.lane.b32.xlu0 %v373, 96
        %v571 = vpop.permute.xlu0 %570
        %572 = vrot.lane.b32.xlu0 %v376, 96
        %v573 = vpop.permute.xlu0 %572
        %574 = vrot.lane.b32.xlu0 %v378, 96
        %v575 = vpop.permute.xlu0 %574
        %576 = vrot.lane.b32.xlu0 %v381, 96
        %v577 = vpop.permute.xlu0 %576
        %578 = vrot.lane.b32.xlu0 %v383, 96
        %v579 = vpop.permute.xlu0 %578
        %580 = vrot.lane.b32.xlu0 %v386, 96
        %v581 = vpop.permute.xlu0 %580
        %582 = vrot.lane.b32.xlu0 %v388, 96
        %v583 = vpop.permute.xlu0 %582
        %584 = vrot.lane.b32.xlu0 %v391, 96
        %v585 = vpop.permute.xlu0 %584
        %586 = vrot.lane.b32.xlu0 %v393, 96
        %v587 = vpop.permute.xlu0 %586
        %588 = vrot.lane.b32.xlu0 %v396, 96
        %v589 = vpop.permute.xlu0 %588
        %590 = vrot.lane.b32.xlu0 %v398, 96
        %v591 = vpop.permute.xlu0 %590
        %592 = vrot.lane.b32.xlu0 %v401, 96
        %v593 = vpop.permute.xlu0 %592
        %594 = vrot.lane.b32.xlu0 %v403, 96
        %v595 = vpop.permute.xlu0 %594
        %596 = vrot.lane.b32.xlu0 %v406, 96
        %v597 = vpop.permute.xlu0 %596
        %598 = vrot.lane.b32.xlu0 %v408, 96
        %v599 = vpop.permute.xlu0 %598
        %600 = vrot.lane.b32.xlu0 %v411, 96
        %v601 = vpop.permute.xlu0 %600
        %602 = vrot.lane.b32.xlu0 %v413, 96
        %v603 = vpop.permute.xlu0 %602
        %604 = vrot.lane.b32.xlu0 %v416, 96
        %v605 = vpop.permute.xlu0 %604
        %606 = vrot.lane.b32.xlu0 %v418, 96
        %v607 = vpop.permute.xlu0 %606
        %608 = vrot.lane.b32.xlu0 %v421, 96
        %v609 = vpop.permute.xlu0 %608
        %610 = vrot.lane.b32.xlu0 %v423, 96
        %v611 = vpop.permute.xlu0 %610
        %612 = vrot.lane.b32.xlu0 %v426, 96
        %v613 = vpop.permute.xlu0 %612
        %614 = vrot.lane.b32.xlu0 %v428, 96
        %v615 = vpop.permute.xlu0 %614
        %616 = vrot.lane.b32.xlu0 %v431, 96
        %v617 = vpop.permute.xlu0 %616
        %618 = vrot.lane.b32.xlu0 %v433, 96
        %v619 = vpop.permute.xlu0 %618
        %652 = vxpose.xlu0.b32.start [1/16] %v557, 128
        %653 = vxpose.xlu0.b32.cont [2/16] %v559, 128
        %654 = vxpose.xlu0.b32.cont [3/16] %v561, 128
        %655 = vxpose.xlu0.b32.cont [4/16] %v563, 128
        %656 = vxpose.xlu0.b32.cont [5/16] %v565, 128
        %657 = vxpose.xlu0.b32.cont [6/16] %v567, 128
        %658 = vxpose.xlu0.b32.cont [7/16] %v569, 128
        %659 = vxpose.xlu0.b32.cont [8/16] %v571, 128
        %660 = vxpose.xlu0.b32.cont [9/16] %v573, 128
        %661 = vxpose.xlu0.b32.cont [10/16] %v575, 128
        %662 = vxpose.xlu0.b32.cont [11/16] %v577, 128
        %663 = vxpose.xlu0.b32.cont [12/16] %v579, 128
        %664 = vxpose.xlu0.b32.cont [13/16] %v581, 128
        %665 = vxpose.xlu0.b32.cont [14/16] %v583, 128
        %666 = vxpose.xlu0.b32.cont [15/16] %v585, 128
        %667 = vxpose.xlu0.b32.end [16/16] %v587, 128
        %v668 = vpop.trf.xlu0
        %v669 = vpop.trf.xlu0
        %v670 = vpop.trf.xlu0
        %v671 = vpop.trf.xlu0
        %v672 = vpop.trf.xlu0
        %v673 = vpop.trf.xlu0
        %v674 = vpop.trf.xlu0
        %v675 = vpop.trf.xlu0
        %v676 = vpop.trf.xlu0
        %v677 = vpop.trf.xlu0
        %v678 = vpop.trf.xlu0
        %v679 = vpop.trf.xlu0
        %v680 = vpop.trf.xlu0
        %v681 = vpop.trf.xlu0
        %v682 = vpop.trf.xlu0
        %v683 = vpop.trf.xlu0
        %684 = vxpose.xlu0.b32.start [1/16] %v589, 128
        %685 = vxpose.xlu0.b32.cont [2/16] %v591, 128
        %686 = vxpose.xlu0.b32.cont [3/16] %v593, 128
        %687 = vxpose.xlu0.b32.cont [4/16] %v595, 128
        %688 = vxpose.xlu0.b32.cont [5/16] %v597, 128
        %689 = vxpose.xlu0.b32.cont [6/16] %v599, 128
        %690 = vxpose.xlu0.b32.cont [7/16] %v601, 128
        %691 = vxpose.xlu0.b32.cont [8/16] %v603, 128
        %692 = vxpose.xlu0.b32.cont [9/16] %v605, 128
        %693 = vxpose.xlu0.b32.cont [10/16] %v607, 128
        %694 = vxpose.xlu0.b32.cont [11/16] %v609, 128
        %695 = vxpose.xlu0.b32.cont [12/16] %v611, 128
        %696 = vxpose.xlu0.b32.cont [13/16] %v613, 128
        %697 = vxpose.xlu0.b32.cont [14/16] %v615, 128
        %698 = vxpose.xlu0.b32.cont [15/16] %v617, 128
        %699 = vxpose.xlu0.b32.end [16/16] %v619, 128
        %v700 = vpop.trf.xlu0
        %v701 = vpop.trf.xlu0
        %v702 = vpop.trf.xlu0
        %v703 = vpop.trf.xlu0
        %v704 = vpop.trf.xlu0
        %v705 = vpop.trf.xlu0
        %v706 = vpop.trf.xlu0
        %v707 = vpop.trf.xlu0
        %v708 = vpop.trf.xlu0
        %v709 = vpop.trf.xlu0
        %v710 = vpop.trf.xlu0
        %v711 = vpop.trf.xlu0
        %v712 = vpop.trf.xlu0
        %v713 = vpop.trf.xlu0
        %v714 = vpop.trf.xlu0
        %v715 = vpop.trf.xlu0
        %v716 = vpack.c.bf16 %v358, %v356
        %v717 = vpack.c.bf16 %v363, %v361
        %v718 = vpack.c.bf16 %v368, %v366
        %v719 = vpack.c.bf16 %v373, %v371
        %v720 = vpack.c.bf16 %v378, %v376
        %v721 = vpack.c.bf16 %v383, %v381
        %v722 = vpack.c.bf16 %v388, %v386
        %v723 = vpack.c.bf16 %v393, %v391
        %v724 = vpack.c.bf16 %v398, %v396
        %v725 = vpack.c.bf16 %v403, %v401
        %v726 = vpack.c.bf16 %v408, %v406
        %v727 = vpack.c.bf16 %v413, %v411
        %v728 = vpack.c.bf16 %v418, %v416
        %v729 = vpack.c.bf16 %v423, %v421
        %v730 = vpack.c.bf16 %v428, %v426
        %v731 = vpack.c.bf16 %v433, %v431
        %v732 = vpack.c.bf16 %v668, %v668
        %v733 = vpack.c.bf16 %v700, %v700
        %vm734 = vcmask 64512
        %v736 = vsel %vm734, %v716, 0
        %v739 = vsel %vm734, %v717, 0
        %v742 = vsel %vm734, %v718, 0
        %v745 = vsel %vm734, %v719, 0
        %v748 = vsel %vm734, %v720, 0
        %v751 = vsel %vm734, %v721, 0
        %v754 = vsel %vm734, %v722, 0
        %v757 = vsel %vm734, %v723, 0
        %v760 = vsel %vm734, %v724, 0
        %v763 = vsel %vm734, %v725, 0
        %v766 = vsel %vm734, %v726, 0
        %v769 = vsel %vm734, %v727, 0
        %v772 = vsel %vm734, %v728, 0
        %v775 = vsel %vm734, %v729, 0
        %v778 = vsel %vm734, %v730, 0
        %v781 = vsel %vm734, %v731, 0
        %vm783 = vcmask 1043456
        %v785 = vsel %vm783, %v732, 0
        %v788 = vsel %vm783, %v733, 0
        %790 = vmatpush.bf16.msra.mxu0 0
        %791 = vmatpush.bf16.msra.mxu0 0
        %792 = vmatpush.bf16.msra.mxu0 0
        %793 = vmatpush.bf16.msra.mxu0 0
        %794 = vmatpush.bf16.msra.mxu0 0
        %795 = vmatpush.bf16.msra.mxu0 0
        %796 = vmatpush.bf16.msra.mxu0 0
        %797 = vmatpush.bf16.msra.mxu0 %v785
        %798 = vmatmul.bf16.gmra.mxu0 %v736
        %v799 = vpop.f32.mrf.mxu0
        %v800 = vadd.f32 0.0, %v799
        %v801 = vpop.f32.mrf.mxu0
        %v802 = vadd.f32 0.0, %v801
        %803 = vmatmul.bf16.gmra.mxu0 %v739
        %v804 = vpop.f32.mrf.mxu0
        %v805 = vadd.f32 0.0, %v804
        %v806 = vpop.f32.mrf.mxu0
        %v807 = vadd.f32 0.0, %v806
        %808 = vmatmul.bf16.gmra.mxu0 %v742
        %v809 = vpop.f32.mrf.mxu0
        %v810 = vadd.f32 0.0, %v809
        %v811 = vpop.f32.mrf.mxu0
        %v812 = vadd.f32 0.0, %v811
        %813 = vmatmul.bf16.gmra.mxu0 %v745
        %v814 = vpop.f32.mrf.mxu0
        %v815 = vadd.f32 0.0, %v814
        %v816 = vpop.f32.mrf.mxu0
        %v817 = vadd.f32 0.0, %v816
        %818 = vmatmul.bf16.gmra.mxu0 %v748
        %v819 = vpop.f32.mrf.mxu0
        %v820 = vadd.f32 0.0, %v819
        %v821 = vpop.f32.mrf.mxu0
        %v822 = vadd.f32 0.0, %v821
        %823 = vmatmul.bf16.gmra.mxu0 %v751
        %v824 = vpop.f32.mrf.mxu0
        %v825 = vadd.f32 0.0, %v824
        %v826 = vpop.f32.mrf.mxu0
        %v827 = vadd.f32 0.0, %v826
        %828 = vmatmul.bf16.gmra.mxu0 %v754
        %v829 = vpop.f32.mrf.mxu0
        %v830 = vadd.f32 0.0, %v829
        %v831 = vpop.f32.mrf.mxu0
        %v832 = vadd.f32 0.0, %v831
        %833 = vmatmul.bf16.gmra.mxu0 %v757
        %v834 = vpop.f32.mrf.mxu0
        %v835 = vadd.f32 0.0, %v834
        %v836 = vpop.f32.mrf.mxu0
        %v837 = vadd.f32 0.0, %v836
        %838 = vmatmul.bf16.gmra.mxu0 %v760
        %v839 = vpop.f32.mrf.mxu0
        %v840 = vadd.f32 0.0, %v839
        %v841 = vpop.f32.mrf.mxu0
        %v842 = vadd.f32 0.0, %v841
        %843 = vmatmul.bf16.gmra.mxu0 %v763
        %v844 = vpop.f32.mrf.mxu0
        %v845 = vadd.f32 0.0, %v844
        %v846 = vpop.f32.mrf.mxu0
        %v847 = vadd.f32 0.0, %v846
        %848 = vmatmul.bf16.gmra.mxu0 %v766
        %v849 = vpop.f32.mrf.mxu0
        %v850 = vadd.f32 0.0, %v849
        %v851 = vpop.f32.mrf.mxu0
        %v852 = vadd.f32 0.0, %v851
        %853 = vmatmul.bf16.gmra.mxu0 %v769
        %v854 = vpop.f32.mrf.mxu0
        %v855 = vadd.f32 0.0, %v854
        %v856 = vpop.f32.mrf.mxu0
        %v857 = vadd.f32 0.0, %v856
        %858 = vmatmul.bf16.gmra.mxu0 %v772
        %v859 = vpop.f32.mrf.mxu0
        %v860 = vadd.f32 0.0, %v859
        %v861 = vpop.f32.mrf.mxu0
        %v862 = vadd.f32 0.0, %v861
        %863 = vmatmul.bf16.gmra.mxu0 %v775
        %v864 = vpop.f32.mrf.mxu0
        %v865 = vadd.f32 0.0, %v864
        %v866 = vpop.f32.mrf.mxu0
        %v867 = vadd.f32 0.0, %v866
        %868 = vmatmul.bf16.gmra.mxu0 %v778
        %v869 = vpop.f32.mrf.mxu0
        %v870 = vadd.f32 0.0, %v869
        %v871 = vpop.f32.mrf.mxu0
        %v872 = vadd.f32 0.0, %v871
        %873 = vmatmul.bf16.gmra.mxu0 %v781
        %v874 = vpop.f32.mrf.mxu0
        %v875 = vadd.f32 0.0, %v874
        %v876 = vpop.f32.mrf.mxu0
        %v877 = vadd.f32 0.0, %v876
        %878 = vdwg.mxu0
        %879 = vmatpush.bf16.msra.mxu0 0
        %880 = vmatpush.bf16.msra.mxu0 0
        %881 = vmatpush.bf16.msra.mxu0 0
        %882 = vmatpush.bf16.msra.mxu0 0
        %883 = vmatpush.bf16.msra.mxu0 0
        %884 = vmatpush.bf16.msra.mxu0 0
        %885 = vmatpush.bf16.msra.mxu0 0
        %886 = vmatpush.bf16.msra.mxu0 %v788
        %887 = vmatmul.bf16.gmra.mxu0 %v736
        %v888 = vpop.f32.mrf.mxu0
        %v889 = vadd.f32 0.0, %v888
        %v890 = vpop.f32.mrf.mxu0
        %v891 = vadd.f32 0.0, %v890
        %892 = vmatmul.bf16.gmra.mxu0 %v739
        %v893 = vpop.f32.mrf.mxu0
        %v894 = vadd.f32 0.0, %v893
        %v895 = vpop.f32.mrf.mxu0
        %v896 = vadd.f32 0.0, %v895
        %897 = vmatmul.bf16.gmra.mxu0 %v742
        %v898 = vpop.f32.mrf.mxu0
        %v899 = vadd.f32 0.0, %v898
        %v900 = vpop.f32.mrf.mxu0
        %v901 = vadd.f32 0.0, %v900
        %902 = vmatmul.bf16.gmra.mxu0 %v745
        %v903 = vpop.f32.mrf.mxu0
        %v904 = vadd.f32 0.0, %v903
        %v905 = vpop.f32.mrf.mxu0
        %v906 = vadd.f32 0.0, %v905
        %907 = vmatmul.bf16.gmra.mxu0 %v748
        %v908 = vpop.f32.mrf.mxu0
        %v909 = vadd.f32 0.0, %v908
        %v910 = vpop.f32.mrf.mxu0
        %v911 = vadd.f32 0.0, %v910
        %912 = vmatmul.bf16.gmra.mxu0 %v751
        %v913 = vpop.f32.mrf.mxu0
        %v914 = vadd.f32 0.0, %v913
        %v915 = vpop.f32.mrf.mxu0
        %v916 = vadd.f32 0.0, %v915
        %917 = vmatmul.bf16.gmra.mxu0 %v754
        %v918 = vpop.f32.mrf.mxu0
        %v919 = vadd.f32 0.0, %v918
        %v920 = vpop.f32.mrf.mxu0
        %v921 = vadd.f32 0.0, %v920
        %922 = vmatmul.bf16.gmra.mxu0 %v757
        %v923 = vpop.f32.mrf.mxu0
        %v924 = vadd.f32 0.0, %v923
        %v925 = vpop.f32.mrf.mxu0
        %v926 = vadd.f32 0.0, %v925
        %927 = vmatmul.bf16.gmra.mxu0 %v760
        %v928 = vpop.f32.mrf.mxu0
        %v929 = vadd.f32 0.0, %v928
        %v930 = vpop.f32.mrf.mxu0
        %v931 = vadd.f32 0.0, %v930
        %932 = vmatmul.bf16.gmra.mxu0 %v763
        %v933 = vpop.f32.mrf.mxu0
        %v934 = vadd.f32 0.0, %v933
        %v935 = vpop.f32.mrf.mxu0
        %v936 = vadd.f32 0.0, %v935
        %937 = vmatmul.bf16.gmra.mxu0 %v766
        %v938 = vpop.f32.mrf.mxu0
        %v939 = vadd.f32 0.0, %v938
        %v940 = vpop.f32.mrf.mxu0
        %v941 = vadd.f32 0.0, %v940
        %942 = vmatmul.bf16.gmra.mxu0 %v769
        %v943 = vpop.f32.mrf.mxu0
        %v944 = vadd.f32 0.0, %v943
        %v945 = vpop.f32.mrf.mxu0
        %v946 = vadd.f32 0.0, %v945
        %947 = vmatmul.bf16.gmra.mxu0 %v772
        %v948 = vpop.f32.mrf.mxu0
        %v949 = vadd.f32 0.0, %v948
        %v950 = vpop.f32.mrf.mxu0
        %v951 = vadd.f32 0.0, %v950
        %952 = vmatmul.bf16.gmra.mxu0 %v775
        %v953 = vpop.f32.mrf.mxu0
        %v954 = vadd.f32 0.0, %v953
        %v955 = vpop.f32.mrf.mxu0
        %v956 = vadd.f32 0.0, %v955
        %957 = vmatmul.bf16.gmra.mxu0 %v778
        %v958 = vpop.f32.mrf.mxu0
        %v959 = vadd.f32 0.0, %v958
        %v960 = vpop.f32.mrf.mxu0
        %v961 = vadd.f32 0.0, %v960
        %962 = vmatmul.bf16.gmra.mxu0 %v781
        %v963 = vpop.f32.mrf.mxu0
        %v964 = vadd.f32 0.0, %v963
        %v965 = vpop.f32.mrf.mxu0
        %v966 = vadd.f32 0.0, %v965
        %967 = vdwg.mxu0
        %v968 = vmax.f32 %v800, %v889
        %969 = vmax.xlane.f32.xlu0 %v968
        %v970 = vpop.xlane.xlu0 %969
        %v971 = vmax.f32 %v802, %v891
        %972 = vmax.xlane.f32.xlu0 %v971
        %v973 = vpop.xlane.xlu0 %972
        %v974 = vmax.f32 %v805, %v894
        %975 = vmax.xlane.f32.xlu0 %v974
        %v976 = vpop.xlane.xlu0 %975
        %v977 = vmax.f32 %v807, %v896
        %978 = vmax.xlane.f32.xlu0 %v977
        %v979 = vpop.xlane.xlu0 %978
        %v980 = vmax.f32 %v810, %v899
        %981 = vmax.xlane.f32.xlu0 %v980
        %v982 = vpop.xlane.xlu0 %981
        %v983 = vmax.f32 %v812, %v901
        %984 = vmax.xlane.f32.xlu0 %v983
        %v985 = vpop.xlane.xlu0 %984
        %v986 = vmax.f32 %v815, %v904
        %987 = vmax.xlane.f32.xlu0 %v986
        %v988 = vpop.xlane.xlu0 %987
        %v989 = vmax.f32 %v817, %v906
        %990 = vmax.xlane.f32.xlu0 %v989
        %v991 = vpop.xlane.xlu0 %990
        %v992 = vmax.f32 %v820, %v909
        %993 = vmax.xlane.f32.xlu0 %v992
        %v994 = vpop.xlane.xlu0 %993
        %v995 = vmax.f32 %v822, %v911
        %996 = vmax.xlane.f32.xlu0 %v995
        %v997 = vpop.xlane.xlu0 %996
        %v998 = vmax.f32 %v825, %v914
        %999 = vmax.xlane.f32.xlu0 %v998
        %v1000 = vpop.xlane.xlu0 %999
        %v1001 = vmax.f32 %v827, %v916
        %1002 = vmax.xlane.f32.xlu0 %v1001
        %v1003 = vpop.xlane.xlu0 %1002
        %v1004 = vmax.f32 %v830, %v919
        %1005 = vmax.xlane.f32.xlu0 %v1004
        %v1006 = vpop.xlane.xlu0 %1005
        %v1007 = vmax.f32 %v832, %v921
        %1008 = vmax.xlane.f32.xlu0 %v1007
        %v1009 = vpop.xlane.xlu0 %1008
        %v1010 = vmax.f32 %v835, %v924
        %1011 = vmax.xlane.f32.xlu0 %v1010
        %v1012 = vpop.xlane.xlu0 %1011
        %v1013 = vmax.f32 %v837, %v926
        %1014 = vmax.xlane.f32.xlu0 %v1013
        %v1015 = vpop.xlane.xlu0 %1014
        %v1016 = vmax.f32 %v840, %v929
        %1017 = vmax.xlane.f32.xlu0 %v1016
        %v1018 = vpop.xlane.xlu0 %1017
        %v1019 = vmax.f32 %v842, %v931
        %1020 = vmax.xlane.f32.xlu0 %v1019
        %v1021 = vpop.xlane.xlu0 %1020
        %v1022 = vmax.f32 %v845, %v934
        %1023 = vmax.xlane.f32.xlu0 %v1022
        %v1024 = vpop.xlane.xlu0 %1023
        %v1025 = vmax.f32 %v847, %v936
        %1026 = vmax.xlane.f32.xlu0 %v1025
        %v1027 = vpop.xlane.xlu0 %1026
        %v1028 = vmax.f32 %v850, %v939
        %1029 = vmax.xlane.f32.xlu0 %v1028
        %v1030 = vpop.xlane.xlu0 %1029
        %v1031 = vmax.f32 %v852, %v941
        %1032 = vmax.xlane.f32.xlu0 %v1031
        %v1033 = vpop.xlane.xlu0 %1032
        %v1034 = vmax.f32 %v855, %v944
        %1035 = vmax.xlane.f32.xlu0 %v1034
        %v1036 = vpop.xlane.xlu0 %1035
        %v1037 = vmax.f32 %v857, %v946
        %1038 = vmax.xlane.f32.xlu0 %v1037
        %v1039 = vpop.xlane.xlu0 %1038
        %v1040 = vmax.f32 %v860, %v949
        %1041 = vmax.xlane.f32.xlu0 %v1040
        %v1042 = vpop.xlane.xlu0 %1041
        %v1043 = vmax.f32 %v862, %v951
        %1044 = vmax.xlane.f32.xlu0 %v1043
        %v1045 = vpop.xlane.xlu0 %1044
        %v1046 = vmax.f32 %v865, %v954
        %1047 = vmax.xlane.f32.xlu0 %v1046
        %v1048 = vpop.xlane.xlu0 %1047
        %v1049 = vmax.f32 %v867, %v956
        %1050 = vmax.xlane.f32.xlu0 %v1049
        %v1051 = vpop.xlane.xlu0 %1050
        %v1052 = vmax.f32 %v870, %v959
        %1053 = vmax.xlane.f32.xlu0 %v1052
        %v1054 = vpop.xlane.xlu0 %1053
        %v1055 = vmax.f32 %v872, %v961
        %1056 = vmax.xlane.f32.xlu0 %v1055
        %v1057 = vpop.xlane.xlu0 %1056
        %v1058 = vmax.f32 %v875, %v964
        %1059 = vmax.xlane.f32.xlu0 %v1058
        %v1060 = vpop.xlane.xlu0 %1059
        %v1061 = vmax.f32 %v877, %v966
        %1062 = vmax.xlane.f32.xlu0 %v1061
        %v1063 = vpop.xlane.xlu0 %1062
        %v1064 = vsub.f32 %v800, %v970
        %v1065 = vsub.f32 %v889, %v970
        %v1066 = vsub.f32 %v802, %v973
        %v1067 = vsub.f32 %v891, %v973
        %v1068 = vsub.f32 %v805, %v976
        %v1069 = vsub.f32 %v894, %v976
        %v1070 = vsub.f32 %v807, %v979
        %v1071 = vsub.f32 %v896, %v979
        %v1072 = vsub.f32 %v810, %v982
        %v1073 = vsub.f32 %v899, %v982
        %v1074 = vsub.f32 %v812, %v985
        %v1075 = vsub.f32 %v901, %v985
        %v1076 = vsub.f32 %v815, %v988
        %v1077 = vsub.f32 %v904, %v988
        %v1078 = vsub.f32 %v817, %v991
        %v1079 = vsub.f32 %v906, %v991
        %v1080 = vsub.f32 %v820, %v994
        %v1081 = vsub.f32 %v909, %v994
        %v1082 = vsub.f32 %v822, %v997
        %v1083 = vsub.f32 %v911, %v997
        %v1084 = vsub.f32 %v825, %v1000
        %v1085 = vsub.f32 %v914, %v1000
        %v1086 = vsub.f32 %v827, %v1003
        %v1087 = vsub.f32 %v916, %v1003
        %v1088 = vsub.f32 %v830, %v1006
        %v1089 = vsub.f32 %v919, %v1006
        %v1090 = vsub.f32 %v832, %v1009
        %v1091 = vsub.f32 %v921, %v1009
        %v1092 = vsub.f32 %v835, %v1012
        %v1093 = vsub.f32 %v924, %v1012
        %v1094 = vsub.f32 %v837, %v1015
        %v1095 = vsub.f32 %v926, %v1015
        %v1096 = vsub.f32 %v840, %v1018
        %v1097 = vsub.f32 %v929, %v1018
        %v1098 = vsub.f32 %v842, %v1021
        %v1099 = vsub.f32 %v931, %v1021
        %v1100 = vsub.f32 %v845, %v1024
        %v1101 = vsub.f32 %v934, %v1024
        %v1102 = vsub.f32 %v847, %v1027
        %v1103 = vsub.f32 %v936, %v1027
        %v1104 = vsub.f32 %v850, %v1030
        %v1105 = vsub.f32 %v939, %v1030
        %v1106 = vsub.f32 %v852, %v1033
        %v1107 = vsub.f32 %v941, %v1033
        %v1108 = vsub.f32 %v855, %v1036
        %v1109 = vsub.f32 %v944, %v1036
        %v1110 = vsub.f32 %v857, %v1039
        %v1111 = vsub.f32 %v946, %v1039
        %v1112 = vsub.f32 %v860, %v1042
        %v1113 = vsub.f32 %v949, %v1042
        %v1114 = vsub.f32 %v862, %v1045
        %v1115 = vsub.f32 %v951, %v1045
        %v1116 = vsub.f32 %v865, %v1048
        %v1117 = vsub.f32 %v954, %v1048
        %v1118 = vsub.f32 %v867, %v1051
        %v1119 = vsub.f32 %v956, %v1051
        %v1120 = vsub.f32 %v870, %v1054
        %v1121 = vsub.f32 %v959, %v1054
        %v1122 = vsub.f32 %v872, %v1057
        %v1123 = vsub.f32 %v961, %v1057
        %v1124 = vsub.f32 %v875, %v1060
        %v1125 = vsub.f32 %v964, %v1060
        %v1126 = vsub.f32 %v877, %v1063
        %v1127 = vsub.f32 %v966, %v1063
        %v1128 = vmul.f32 %v1064, 1.442695
        %v1129 = vpow.pop %v1128
        %v1130 = vmul.f32 %v1065, 1.442695
        %v1131 = vpow.pop %v1130
        %v1132 = vmul.f32 %v1066, 1.442695
        %v1133 = vpow.pop %v1132
        %v1134 = vmul.f32 %v1067, 1.442695
        %v1135 = vpow.pop %v1134
        %v1136 = vmul.f32 %v1068, 1.442695
        %v1137 = vpow.pop %v1136
        %v1138 = vmul.f32 %v1069, 1.442695
        %v1139 = vpow.pop %v1138
        %v1140 = vmul.f32 %v1070, 1.442695
        %v1141 = vpow.pop %v1140
        %v1142 = vmul.f32 %v1071, 1.442695
        %v1143 = vpow.pop %v1142
        %v1144 = vmul.f32 %v1072, 1.442695
        %v1145 = vpow.pop %v1144
        %v1146 = vmul.f32 %v1073, 1.442695
        %v1147 = vpow.pop %v1146
        %v1148 = vmul.f32 %v1074, 1.442695
        %v1149 = vpow.pop %v1148
        %v1150 = vmul.f32 %v1075, 1.442695
        %v1151 = vpow.pop %v1150
        %v1152 = vmul.f32 %v1076, 1.442695
        %v1153 = vpow.pop %v1152
        %v1154 = vmul.f32 %v1077, 1.442695
        %v1155 = vpow.pop %v1154
        %v1156 = vmul.f32 %v1078, 1.442695
        %v1157 = vpow.pop %v1156
        %v1158 = vmul.f32 %v1079, 1.442695
        %v1159 = vpow.pop %v1158
        %v1160 = vmul.f32 %v1080, 1.442695
        %v1161 = vpow.pop %v1160
        %v1162 = vmul.f32 %v1081, 1.442695
        %v1163 = vpow.pop %v1162
        %v1164 = vmul.f32 %v1082, 1.442695
        %v1165 = vpow.pop %v1164
        %v1166 = vmul.f32 %v1083, 1.442695
        %v1167 = vpow.pop %v1166
        %v1168 = vmul.f32 %v1084, 1.442695
        %v1169 = vpow.pop %v1168
        %v1170 = vmul.f32 %v1085, 1.442695
        %v1171 = vpow.pop %v1170
        %v1172 = vmul.f32 %v1086, 1.442695
        %v1173 = vpow.pop %v1172
        %v1174 = vmul.f32 %v1087, 1.442695
        %v1175 = vpow.pop %v1174
        %v1176 = vmul.f32 %v1088, 1.442695
        %v1177 = vpow.pop %v1176
        %v1178 = vmul.f32 %v1089, 1.442695
        %v1179 = vpow.pop %v1178
        %v1180 = vmul.f32 %v1090, 1.442695
        %v1181 = vpow.pop %v1180
        %v1182 = vmul.f32 %v1091, 1.442695
        %v1183 = vpow.pop %v1182
        %v1184 = vmul.f32 %v1092, 1.442695
        %v1185 = vpow.pop %v1184
        %v1186 = vmul.f32 %v1093, 1.442695
        %v1187 = vpow.pop %v1186
        %v1188 = vmul.f32 %v1094, 1.442695
        %v1189 = vpow.pop %v1188
        %v1190 = vmul.f32 %v1095, 1.442695
        %v1191 = vpow.pop %v1190
        %v1192 = vmul.f32 %v1096, 1.442695
        %v1193 = vpow.pop %v1192
        %v1194 = vmul.f32 %v1097, 1.442695
        %v1195 = vpow.pop %v1194
        %v1196 = vmul.f32 %v1098, 1.442695
        %v1197 = vpow.pop %v1196
        %v1198 = vmul.f32 %v1099, 1.442695
        %v1199 = vpow.pop %v1198
        %v1200 = vmul.f32 %v1100, 1.442695
        %v1201 = vpow.pop %v1200
        %v1202 = vmul.f32 %v1101, 1.442695
        %v1203 = vpow.pop %v1202
        %v1204 = vmul.f32 %v1102, 1.442695
        %v1205 = vpow.pop %v1204
        %v1206 = vmul.f32 %v1103, 1.442695
        %v1207 = vpow.pop %v1206
        %v1208 = vmul.f32 %v1104, 1.442695
        %v1209 = vpow.pop %v1208
        %v1210 = vmul.f32 %v1105, 1.442695
        %v1211 = vpow.pop %v1210
        %v1212 = vmul.f32 %v1106, 1.442695
        %v1213 = vpow.pop %v1212
        %v1214 = vmul.f32 %v1107, 1.442695
        %v1215 = vpow.pop %v1214
        %v1216 = vmul.f32 %v1108, 1.442695
        %v1217 = vpow.pop %v1216
        %v1218 = vmul.f32 %v1109, 1.442695
        %v1219 = vpow.pop %v1218
        %v1220 = vmul.f32 %v1110, 1.442695
        %v1221 = vpow.pop %v1220
        %v1222 = vmul.f32 %v1111, 1.442695
        %v1223 = vpow.pop %v1222
        %v1224 = vmul.f32 %v1112, 1.442695
        %v1225 = vpow.pop %v1224
        %v1226 = vmul.f32 %v1113, 1.442695
        %v1227 = vpow.pop %v1226
        %v1228 = vmul.f32 %v1114, 1.442695
        %v1229 = vpow.pop %v1228
        %v1230 = vmul.f32 %v1115, 1.442695
        %v1231 = vpow.pop %v1230
        %v1232 = vmul.f32 %v1116, 1.442695
        %v1233 = vpow.pop %v1232
        %v1234 = vmul.f32 %v1117, 1.442695
        %v1235 = vpow.pop %v1234
        %v1236 = vmul.f32 %v1118, 1.442695
        %v1237 = vpow.pop %v1236
        %v1238 = vmul.f32 %v1119, 1.442695
        %v1239 = vpow.pop %v1238
        %v1240 = vmul.f32 %v1120, 1.442695
        %v1241 = vpow.pop %v1240
        %v1242 = vmul.f32 %v1121, 1.442695
        %v1243 = vpow.pop %v1242
        %v1244 = vmul.f32 %v1122, 1.442695
        %v1245 = vpow.pop %v1244
        %v1246 = vmul.f32 %v1123, 1.442695
        %v1247 = vpow.pop %v1246
        %v1248 = vmul.f32 %v1124, 1.442695
        %v1249 = vpow.pop %v1248
        %v1250 = vmul.f32 %v1125, 1.442695
        %v1251 = vpow.pop %v1250
        %v1252 = vmul.f32 %v1126, 1.442695
        %v1253 = vpow.pop %v1252
        %v1254 = vmul.f32 %v1127, 1.442695
        %v1255 = vpow.pop %v1254
        %v1256 = vadd.f32 %v1129, %v1131
        %1257 = vadd.xlane.f32.xlu0 %v1256
        %v1258 = vpop.xlane.xlu0 %1257
        %v1259 = vadd.f32 %v1133, %v1135
        %1260 = vadd.xlane.f32.xlu0 %v1259
        %v1261 = vpop.xlane.xlu0 %1260
        %v1262 = vadd.f32 %v1137, %v1139
        %1263 = vadd.xlane.f32.xlu0 %v1262
        %v1264 = vpop.xlane.xlu0 %1263
        %v1265 = vadd.f32 %v1141, %v1143
        %1266 = vadd.xlane.f32.xlu0 %v1265
        %v1267 = vpop.xlane.xlu0 %1266
        %v1268 = vadd.f32 %v1145, %v1147
        %1269 = vadd.xlane.f32.xlu0 %v1268
        %v1270 = vpop.xlane.xlu0 %1269
        %v1271 = vadd.f32 %v1149, %v1151
        %1272 = vadd.xlane.f32.xlu0 %v1271
        %v1273 = vpop.xlane.xlu0 %1272
        %v1274 = vadd.f32 %v1153, %v1155
        %1275 = vadd.xlane.f32.xlu0 %v1274
        %v1276 = vpop.xlane.xlu0 %1275
        %v1277 = vadd.f32 %v1157, %v1159
        %1278 = vadd.xlane.f32.xlu0 %v1277
        %v1279 = vpop.xlane.xlu0 %1278
        %v1280 = vadd.f32 %v1161, %v1163
        %1281 = vadd.xlane.f32.xlu0 %v1280
        %v1282 = vpop.xlane.xlu0 %1281
        %v1283 = vadd.f32 %v1165, %v1167
        %1284 = vadd.xlane.f32.xlu0 %v1283
        %v1285 = vpop.xlane.xlu0 %1284
        %v1286 = vadd.f32 %v1169, %v1171
        %1287 = vadd.xlane.f32.xlu0 %v1286
        %v1288 = vpop.xlane.xlu0 %1287
        %v1289 = vadd.f32 %v1173, %v1175
        %1290 = vadd.xlane.f32.xlu0 %v1289
        %v1291 = vpop.xlane.xlu0 %1290
        %v1292 = vadd.f32 %v1177, %v1179
        %1293 = vadd.xlane.f32.xlu0 %v1292
        %v1294 = vpop.xlane.xlu0 %1293
        %v1295 = vadd.f32 %v1181, %v1183
        %1296 = vadd.xlane.f32.xlu0 %v1295
        %v1297 = vpop.xlane.xlu0 %1296
        %v1298 = vadd.f32 %v1185, %v1187
        %1299 = vadd.xlane.f32.xlu0 %v1298
        %v1300 = vpop.xlane.xlu0 %1299
        %v1301 = vadd.f32 %v1189, %v1191
        %1302 = vadd.xlane.f32.xlu0 %v1301
        %v1303 = vpop.xlane.xlu0 %1302
        %v1304 = vadd.f32 %v1193, %v1195
        %1305 = vadd.xlane.f32.xlu0 %v1304
        %v1306 = vpop.xlane.xlu0 %1305
        %v1307 = vadd.f32 %v1197, %v1199
        %1308 = vadd.xlane.f32.xlu0 %v1307
        %v1309 = vpop.xlane.xlu0 %1308
        %v1310 = vadd.f32 %v1201, %v1203
        %1311 = vadd.xlane.f32.xlu0 %v1310
        %v1312 = vpop.xlane.xlu0 %1311
        %v1313 = vadd.f32 %v1205, %v1207
        %1314 = vadd.xlane.f32.xlu0 %v1313
        %v1315 = vpop.xlane.xlu0 %1314
        %v1316 = vadd.f32 %v1209, %v1211
        %1317 = vadd.xlane.f32.xlu0 %v1316
        %v1318 = vpop.xlane.xlu0 %1317
        %v1319 = vadd.f32 %v1213, %v1215
        %1320 = vadd.xlane.f32.xlu0 %v1319
        %v1321 = vpop.xlane.xlu0 %1320
        %v1322 = vadd.f32 %v1217, %v1219
        %1323 = vadd.xlane.f32.xlu0 %v1322
        %v1324 = vpop.xlane.xlu0 %1323
        %v1325 = vadd.f32 %v1221, %v1223
        %1326 = vadd.xlane.f32.xlu0 %v1325
        %v1327 = vpop.xlane.xlu0 %1326
        %v1328 = vadd.f32 %v1225, %v1227
        %1329 = vadd.xlane.f32.xlu0 %v1328
        %v1330 = vpop.xlane.xlu0 %1329
        %v1331 = vadd.f32 %v1229, %v1231
        %1332 = vadd.xlane.f32.xlu0 %v1331
        %v1333 = vpop.xlane.xlu0 %1332
        %v1334 = vadd.f32 %v1233, %v1235
        %1335 = vadd.xlane.f32.xlu0 %v1334
        %v1336 = vpop.xlane.xlu0 %1335
        %v1337 = vadd.f32 %v1237, %v1239
        %1338 = vadd.xlane.f32.xlu0 %v1337
        %v1339 = vpop.xlane.xlu0 %1338
        %v1340 = vadd.f32 %v1241, %v1243
        %1341 = vadd.xlane.f32.xlu0 %v1340
        %v1342 = vpop.xlane.xlu0 %1341
        %v1343 = vadd.f32 %v1245, %v1247
        %1344 = vadd.xlane.f32.xlu0 %v1343
        %v1345 = vpop.xlane.xlu0 %1344
        %v1346 = vadd.f32 %v1249, %v1251
        %1347 = vadd.xlane.f32.xlu0 %v1346
        %v1348 = vpop.xlane.xlu0 %1347
        %v1349 = vadd.f32 %v1253, %v1255
        %1350 = vadd.xlane.f32.xlu0 %v1349
        %v1351 = vpop.xlane.xlu0 %1350
        %v1352 = vpack.c.bf16 %v1133, %v1129
        %v1353 = vpack.c.bf16 %v1135, %v1131
        %v1354 = vpack.c.bf16 %v1141, %v1137
        %v1355 = vpack.c.bf16 %v1143, %v1139
        %v1356 = vpack.c.bf16 %v1149, %v1145
        %v1357 = vpack.c.bf16 %v1151, %v1147
        %v1358 = vpack.c.bf16 %v1157, %v1153
        %v1359 = vpack.c.bf16 %v1159, %v1155
        %v1360 = vpack.c.bf16 %v1165, %v1161
        %v1361 = vpack.c.bf16 %v1167, %v1163
        %v1362 = vpack.c.bf16 %v1173, %v1169
        %v1363 = vpack.c.bf16 %v1175, %v1171
        %v1364 = vpack.c.bf16 %v1181, %v1177
        %v1365 = vpack.c.bf16 %v1183, %v1179
        %v1366 = vpack.c.bf16 %v1189, %v1185
        %v1367 = vpack.c.bf16 %v1191, %v1187
        %v1368 = vpack.c.bf16 %v1197, %v1193
        %v1369 = vpack.c.bf16 %v1199, %v1195
        %v1370 = vpack.c.bf16 %v1205, %v1201
        %v1371 = vpack.c.bf16 %v1207, %v1203
        %v1372 = vpack.c.bf16 %v1213, %v1209
        %v1373 = vpack.c.bf16 %v1215, %v1211
        %v1374 = vpack.c.bf16 %v1221, %v1217
        %v1375 = vpack.c.bf16 %v1223, %v1219
        %v1376 = vpack.c.bf16 %v1229, %v1225
        %v1377 = vpack.c.bf16 %v1231, %v1227
        %v1378 = vpack.c.bf16 %v1237, %v1233
        %v1379 = vpack.c.bf16 %v1239, %v1235
        %v1380 = vpack.c.bf16 %v1245, %v1241
        %v1381 = vpack.c.bf16 %v1247, %v1243
        %v1382 = vpack.c.bf16 %v1253, %v1249
        %v1383 = vpack.c.bf16 %v1255, %v1251
        %1400 = vrot.lane.b32.xlu0 %v716, 64
        %v1401 = vpop.permute.xlu0 %1400
        %1402 = vrot.lane.b32.xlu0 %v717, 64
        %v1403 = vpop.permute.xlu0 %1402
        %1404 = vrot.lane.b32.xlu0 %v718, 64
        %v1405 = vpop.permute.xlu0 %1404
        %1406 = vrot.lane.b32.xlu0 %v719, 64
        %v1407 = vpop.permute.xlu0 %1406
        %1408 = vrot.lane.b32.xlu0 %v720, 64
        %v1409 = vpop.permute.xlu0 %1408
        %1410 = vrot.lane.b32.xlu0 %v721, 64
        %v1411 = vpop.permute.xlu0 %1410
        %1412 = vrot.lane.b32.xlu0 %v722, 64
        %v1413 = vpop.permute.xlu0 %1412
        %1414 = vrot.lane.b32.xlu0 %v723, 64
        %v1415 = vpop.permute.xlu0 %1414
        %1416 = vrot.lane.b32.xlu0 %v724, 64
        %v1417 = vpop.permute.xlu0 %1416
        %1418 = vrot.lane.b32.xlu0 %v725, 64
        %v1419 = vpop.permute.xlu0 %1418
        %1420 = vrot.lane.b32.xlu0 %v726, 64
        %v1421 = vpop.permute.xlu0 %1420
        %1422 = vrot.lane.b32.xlu0 %v727, 64
        %v1423 = vpop.permute.xlu0 %1422
        %1424 = vrot.lane.b32.xlu0 %v728, 64
        %v1425 = vpop.permute.xlu0 %1424
        %1426 = vrot.lane.b32.xlu0 %v729, 64
        %v1427 = vpop.permute.xlu0 %1426
        %1428 = vrot.lane.b32.xlu0 %v730, 64
        %v1429 = vpop.permute.xlu0 %1428
        %1430 = vrot.lane.b32.xlu0 %v731, 64
        %v1431 = vpop.permute.xlu0 %1430
        %1448 = vmatpush.bf16.msra.mxu0 %v1415
        %1449 = vmatpush.bf16.msra.mxu0 %v1413
        %1450 = vmatpush.bf16.msra.mxu0 %v1411
        %1451 = vmatpush.bf16.msra.mxu0 %v1409
        %1452 = vmatpush.bf16.msra.mxu0 %v1407
        %1453 = vmatpush.bf16.msra.mxu0 %v1405
        %1454 = vmatpush.bf16.msra.mxu0 %v1403
        %1455 = vmatpush.bf16.msra.mxu0 %v1401
        %1456 = vmatmul.bf16.gmra.mxu0 %v1352
        %v1457 = vpop.f32.mrf.mxu0
        %v1458 = vadd.f32 0.0, %v1457
        %v1459 = vpop.f32.mrf.mxu0
        %v1460 = vadd.f32 0.0, %v1459
        %1461 = vmatmul.bf16.gmra.mxu0 %v1354
        %v1462 = vpop.f32.mrf.mxu0
        %v1463 = vadd.f32 0.0, %v1462
        %v1464 = vpop.f32.mrf.mxu0
        %v1465 = vadd.f32 0.0, %v1464
        %1466 = vmatmul.bf16.gmra.mxu0 %v1356
        %v1467 = vpop.f32.mrf.mxu0
        %v1468 = vadd.f32 0.0, %v1467
        %v1469 = vpop.f32.mrf.mxu0
        %v1470 = vadd.f32 0.0, %v1469
        %1471 = vmatmul.bf16.gmra.mxu0 %v1358
        %v1472 = vpop.f32.mrf.mxu0
        %v1473 = vadd.f32 0.0, %v1472
        %v1474 = vpop.f32.mrf.mxu0
        %v1475 = vadd.f32 0.0, %v1474
        %1476 = vmatmul.bf16.gmra.mxu0 %v1360
        %v1477 = vpop.f32.mrf.mxu0
        %v1478 = vadd.f32 0.0, %v1477
        %v1479 = vpop.f32.mrf.mxu0
        %v1480 = vadd.f32 0.0, %v1479
        %1481 = vmatmul.bf16.gmra.mxu0 %v1362
        %v1482 = vpop.f32.mrf.mxu0
        %v1483 = vadd.f32 0.0, %v1482
        %v1484 = vpop.f32.mrf.mxu0
        %v1485 = vadd.f32 0.0, %v1484
        %1486 = vmatmul.bf16.gmra.mxu0 %v1364
        %v1487 = vpop.f32.mrf.mxu0
        %v1488 = vadd.f32 0.0, %v1487
        %v1489 = vpop.f32.mrf.mxu0
        %v1490 = vadd.f32 0.0, %v1489
        %1491 = vmatmul.bf16.gmra.mxu0 %v1366
        %v1492 = vpop.f32.mrf.mxu0
        %v1493 = vadd.f32 0.0, %v1492
        %v1494 = vpop.f32.mrf.mxu0
        %v1495 = vadd.f32 0.0, %v1494
        %1496 = vmatmul.bf16.gmra.mxu0 %v1368
        %v1497 = vpop.f32.mrf.mxu0
        %v1498 = vadd.f32 0.0, %v1497
        %v1499 = vpop.f32.mrf.mxu0
        %v1500 = vadd.f32 0.0, %v1499
        %1501 = vmatmul.bf16.gmra.mxu0 %v1370
        %v1502 = vpop.f32.mrf.mxu0
        %v1503 = vadd.f32 0.0, %v1502
        %v1504 = vpop.f32.mrf.mxu0
        %v1505 = vadd.f32 0.0, %v1504
        %1506 = vmatmul.bf16.gmra.mxu0 %v1372
        %v1507 = vpop.f32.mrf.mxu0
        %v1508 = vadd.f32 0.0, %v1507
        %v1509 = vpop.f32.mrf.mxu0
        %v1510 = vadd.f32 0.0, %v1509
        %1511 = vmatmul.bf16.gmra.mxu0 %v1374
        %v1512 = vpop.f32.mrf.mxu0
        %v1513 = vadd.f32 0.0, %v1512
        %v1514 = vpop.f32.mrf.mxu0
        %v1515 = vadd.f32 0.0, %v1514
        %1516 = vmatmul.bf16.gmra.mxu0 %v1376
        %v1517 = vpop.f32.mrf.mxu0
        %v1518 = vadd.f32 0.0, %v1517
        %v1519 = vpop.f32.mrf.mxu0
        %v1520 = vadd.f32 0.0, %v1519
        %1521 = vmatmul.bf16.gmra.mxu0 %v1378
        %v1522 = vpop.f32.mrf.mxu0
        %v1523 = vadd.f32 0.0, %v1522
        %v1524 = vpop.f32.mrf.mxu0
        %v1525 = vadd.f32 0.0, %v1524
        %1526 = vmatmul.bf16.gmra.mxu0 %v1380
        %v1527 = vpop.f32.mrf.mxu0
        %v1528 = vadd.f32 0.0, %v1527
        %v1529 = vpop.f32.mrf.mxu0
        %v1530 = vadd.f32 0.0, %v1529
        %1531 = vmatmul.bf16.gmra.mxu0 %v1382
        %v1532 = vpop.f32.mrf.mxu0
        %v1533 = vadd.f32 0.0, %v1532
        %v1534 = vpop.f32.mrf.mxu0
        %v1535 = vadd.f32 0.0, %v1534
        %1536 = vdwg.mxu0
        %1537 = vmatpush.bf16.msra.mxu0 %v1431
        %1538 = vmatpush.bf16.msra.mxu0 %v1429
        %1539 = vmatpush.bf16.msra.mxu0 %v1427
        %1540 = vmatpush.bf16.msra.mxu0 %v1425
        %1541 = vmatpush.bf16.msra.mxu0 %v1423
        %1542 = vmatpush.bf16.msra.mxu0 %v1421
        %1543 = vmatpush.bf16.msra.mxu0 %v1419
        %1544 = vmatpush.bf16.msra.mxu0 %v1417
        %1545 = vmatmul.bf16.gmra.mxu0 %v1353
        %v1546 = vpop.f32.mrf.mxu0
        %v1547 = vadd.f32 %v1458, %v1546
        %v1548 = vpop.f32.mrf.mxu0
        %v1549 = vadd.f32 %v1460, %v1548
        %1550 = vmatmul.bf16.gmra.mxu0 %v1355
        %v1551 = vpop.f32.mrf.mxu0
        %v1552 = vadd.f32 %v1463, %v1551
        %v1553 = vpop.f32.mrf.mxu0
        %v1554 = vadd.f32 %v1465, %v1553
        %1555 = vmatmul.bf16.gmra.mxu0 %v1357
        %v1556 = vpop.f32.mrf.mxu0
        %v1557 = vadd.f32 %v1468, %v1556
        %v1558 = vpop.f32.mrf.mxu0
        %v1559 = vadd.f32 %v1470, %v1558
        %1560 = vmatmul.bf16.gmra.mxu0 %v1359
        %v1561 = vpop.f32.mrf.mxu0
        %v1562 = vadd.f32 %v1473, %v1561
        %v1563 = vpop.f32.mrf.mxu0
        %v1564 = vadd.f32 %v1475, %v1563
        %1565 = vmatmul.bf16.gmra.mxu0 %v1361
        %v1566 = vpop.f32.mrf.mxu0
        %v1567 = vadd.f32 %v1478, %v1566
        %v1568 = vpop.f32.mrf.mxu0
        %v1569 = vadd.f32 %v1480, %v1568
        %1570 = vmatmul.bf16.gmra.mxu0 %v1363
        %v1571 = vpop.f32.mrf.mxu0
        %v1572 = vadd.f32 %v1483, %v1571
        %v1573 = vpop.f32.mrf.mxu0
        %v1574 = vadd.f32 %v1485, %v1573
        %1575 = vmatmul.bf16.gmra.mxu0 %v1365
        %v1576 = vpop.f32.mrf.mxu0
        %v1577 = vadd.f32 %v1488, %v1576
        %v1578 = vpop.f32.mrf.mxu0
        %v1579 = vadd.f32 %v1490, %v1578
        %1580 = vmatmul.bf16.gmra.mxu0 %v1367
        %v1581 = vpop.f32.mrf.mxu0
        %v1582 = vadd.f32 %v1493, %v1581
        %v1583 = vpop.f32.mrf.mxu0
        %v1584 = vadd.f32 %v1495, %v1583
        %1585 = vmatmul.bf16.gmra.mxu0 %v1369
        %v1586 = vpop.f32.mrf.mxu0
        %v1587 = vadd.f32 %v1498, %v1586
        %v1588 = vpop.f32.mrf.mxu0
        %v1589 = vadd.f32 %v1500, %v1588
        %1590 = vmatmul.bf16.gmra.mxu0 %v1371
        %v1591 = vpop.f32.mrf.mxu0
        %v1592 = vadd.f32 %v1503, %v1591
        %v1593 = vpop.f32.mrf.mxu0
        %v1594 = vadd.f32 %v1505, %v1593
        %1595 = vmatmul.bf16.gmra.mxu0 %v1373
        %v1596 = vpop.f32.mrf.mxu0
        %v1597 = vadd.f32 %v1508, %v1596
        %v1598 = vpop.f32.mrf.mxu0
        %v1599 = vadd.f32 %v1510, %v1598
        %1600 = vmatmul.bf16.gmra.mxu0 %v1375
        %v1601 = vpop.f32.mrf.mxu0
        %v1602 = vadd.f32 %v1513, %v1601
        %v1603 = vpop.f32.mrf.mxu0
        %v1604 = vadd.f32 %v1515, %v1603
        %1605 = vmatmul.bf16.gmra.mxu0 %v1377
        %v1606 = vpop.f32.mrf.mxu0
        %v1607 = vadd.f32 %v1518, %v1606
        %v1608 = vpop.f32.mrf.mxu0
        %v1609 = vadd.f32 %v1520, %v1608
        %1610 = vmatmul.bf16.gmra.mxu0 %v1379
        %v1611 = vpop.f32.mrf.mxu0
        %v1612 = vadd.f32 %v1523, %v1611
        %v1613 = vpop.f32.mrf.mxu0
        %v1614 = vadd.f32 %v1525, %v1613
        %1615 = vmatmul.bf16.gmra.mxu0 %v1381
        %v1616 = vpop.f32.mrf.mxu0
        %v1617 = vadd.f32 %v1528, %v1616
        %v1618 = vpop.f32.mrf.mxu0
        %v1619 = vadd.f32 %v1530, %v1618
        %1620 = vmatmul.bf16.gmra.mxu0 %v1383
        %v1621 = vpop.f32.mrf.mxu0
        %v1622 = vadd.f32 %v1533, %v1621
        %v1623 = vpop.f32.mrf.mxu0
        %v1624 = vadd.f32 %v1535, %v1623
        %1625 = vdwg.mxu0
        %v1626 = vrcp.pop %v1258
        %v1627 = vrcp.pop %v1261
        %v1628 = vrcp.pop %v1264
        %v1629 = vrcp.pop %v1267
        %v1630 = vrcp.pop %v1270
        %v1631 = vrcp.pop %v1273
        %v1632 = vrcp.pop %v1276
        %v1633 = vrcp.pop %v1279
        %v1634 = vrcp.pop %v1282
        %v1635 = vrcp.pop %v1285
        %v1636 = vrcp.pop %v1288
        %v1637 = vrcp.pop %v1291
        %v1638 = vrcp.pop %v1294
        %v1639 = vrcp.pop %v1297
        %v1640 = vrcp.pop %v1300
        %v1641 = vrcp.pop %v1303
        %v1642 = vrcp.pop %v1306
        %v1643 = vrcp.pop %v1309
        %v1644 = vrcp.pop %v1312
        %v1645 = vrcp.pop %v1315
        %v1646 = vrcp.pop %v1318
        %v1647 = vrcp.pop %v1321
        %v1648 = vrcp.pop %v1324
        %v1649 = vrcp.pop %v1327
        %v1650 = vrcp.pop %v1330
        %v1651 = vrcp.pop %v1333
        %v1652 = vrcp.pop %v1336
        %v1653 = vrcp.pop %v1339
        %v1654 = vrcp.pop %v1342
        %v1655 = vrcp.pop %v1345
        %v1656 = vrcp.pop %v1348
        %v1657 = vrcp.pop %v1351
        %v1658 = vmul.f32 %v1547, %v1626
        %v1659 = vmul.f32 %v1549, %v1627
        %v1660 = vmul.f32 %v1552, %v1628
        %v1661 = vmul.f32 %v1554, %v1629
        %v1662 = vmul.f32 %v1557, %v1630
        %v1663 = vmul.f32 %v1559, %v1631
        %v1664 = vmul.f32 %v1562, %v1632
        %v1665 = vmul.f32 %v1564, %v1633
        %v1666 = vmul.f32 %v1567, %v1634
        %v1667 = vmul.f32 %v1569, %v1635
        %v1668 = vmul.f32 %v1572, %v1636
        %v1669 = vmul.f32 %v1574, %v1637
        %v1670 = vmul.f32 %v1577, %v1638
        %v1671 = vmul.f32 %v1579, %v1639
        %v1672 = vmul.f32 %v1582, %v1640
        %v1673 = vmul.f32 %v1584, %v1641
        %v1674 = vmul.f32 %v1587, %v1642
        %v1675 = vmul.f32 %v1589, %v1643
        %v1676 = vmul.f32 %v1592, %v1644
        %v1677 = vmul.f32 %v1594, %v1645
        %v1678 = vmul.f32 %v1597, %v1646
        %v1679 = vmul.f32 %v1599, %v1647
        %v1680 = vmul.f32 %v1602, %v1648
        %v1681 = vmul.f32 %v1604, %v1649
        %v1682 = vmul.f32 %v1607, %v1650
        %v1683 = vmul.f32 %v1609, %v1651
        %v1684 = vmul.f32 %v1612, %v1652
        %v1685 = vmul.f32 %v1614, %v1653
        %v1686 = vmul.f32 %v1617, %v1654
        %v1687 = vmul.f32 %v1619, %v1655
        %v1688 = vmul.f32 %v1622, %v1656
        %v1689 = vmul.f32 %v1624, %v1657
        %v1690 = vadd.f32 %v1658, 0.0
        %v1691 = vadd.f32 %v1659, 0.0
        %v1692 = vadd.f32 %v1660, 0.0
        %v1693 = vadd.f32 %v1661, 0.0
        %v1694 = vadd.f32 %v1662, 0.0
        %v1695 = vadd.f32 %v1663, 0.0
        %v1696 = vadd.f32 %v1664, 0.0
        %v1697 = vadd.f32 %v1665, 0.0
        %v1698 = vadd.f32 %v1666, 0.0
        %v1699 = vadd.f32 %v1667, 0.0
        %v1700 = vadd.f32 %v1668, 0.0
        %v1701 = vadd.f32 %v1669, 0.0
        %v1702 = vadd.f32 %v1670, 0.0
        %v1703 = vadd.f32 %v1671, 0.0
        %v1704 = vadd.f32 %v1672, 0.0
        %v1705 = vadd.f32 %v1673, 0.0
        %v1706 = vadd.f32 %v1674, 0.0
        %v1707 = vadd.f32 %v1675, 0.0
        %v1708 = vadd.f32 %v1676, 0.0
        %v1709 = vadd.f32 %v1677, 0.0
        %v1710 = vadd.f32 %v1678, 0.0
        %v1711 = vadd.f32 %v1679, 0.0
        %v1712 = vadd.f32 %v1680, 0.0
        %v1713 = vadd.f32 %v1681, 0.0
        %v1714 = vadd.f32 %v1682, 0.0
        %v1715 = vadd.f32 %v1683, 0.0
        %v1716 = vadd.f32 %v1684, 0.0
        %v1717 = vadd.f32 %v1685, 0.0
        %v1718 = vadd.f32 %v1686, 0.0
        %v1719 = vadd.f32 %v1687, 0.0
        %v1720 = vadd.f32 %v1688, 0.0
        %v1721 = vadd.f32 %v1689, 0.0
        %v1722 = vpack.c.bf16 %v669, %v669
        %v1723 = vpack.c.bf16 %v701, %v701
        %1724 = vrot.lane.b32.xlu0 %v716, 120
        %v1725 = vpop.permute.xlu0 %1724
        %1726 = vrot.lane.b32.xlu0 %v717, 120
        %v1727 = vpop.permute.xlu0 %1726
        %1728 = vrot.lane.b32.xlu0 %v718, 120
        %v1729 = vpop.permute.xlu0 %1728
        %1730 = vrot.lane.b32.xlu0 %v719, 120
        %v1731 = vpop.permute.xlu0 %1730
        %1732 = vrot.lane.b32.xlu0 %v720, 120
        %v1733 = vpop.permute.xlu0 %1732
        %1734 = vrot.lane.b32.xlu0 %v721, 120
        %v1735 = vpop.permute.xlu0 %1734
        %1736 = vrot.lane.b32.xlu0 %v722, 120
        %v1737 = vpop.permute.xlu0 %1736
        %1738 = vrot.lane.b32.xlu0 %v723, 120
        %v1739 = vpop.permute.xlu0 %1738
        %1740 = vrot.lane.b32.xlu0 %v724, 120
        %v1741 = vpop.permute.xlu0 %1740
        %1742 = vrot.lane.b32.xlu0 %v725, 120
        %v1743 = vpop.permute.xlu0 %1742
        %1744 = vrot.lane.b32.xlu0 %v726, 120
        %v1745 = vpop.permute.xlu0 %1744
        %1746 = vrot.lane.b32.xlu0 %v727, 120
        %v1747 = vpop.permute.xlu0 %1746
        %1748 = vrot.lane.b32.xlu0 %v728, 120
        %v1749 = vpop.permute.xlu0 %1748
        %1750 = vrot.lane.b32.xlu0 %v729, 120
        %v1751 = vpop.permute.xlu0 %1750
        %1752 = vrot.lane.b32.xlu0 %v730, 120
        %v1753 = vpop.permute.xlu0 %1752
        %1754 = vrot.lane.b32.xlu0 %v731, 120
        %v1755 = vpop.permute.xlu0 %1754
        %v1757 = vsel %vm734, %v1725, 0
        %v1760 = vsel %vm734, %v1727, 0
        %v1763 = vsel %vm734, %v1729, 0
        %v1766 = vsel %vm734, %v1731, 0
        %v1769 = vsel %vm734, %v1733, 0
        %v1772 = vsel %vm734, %v1735, 0
        %v1775 = vsel %vm734, %v1737, 0
        %v1778 = vsel %vm734, %v1739, 0
        %v1781 = vsel %vm734, %v1741, 0
        %v1784 = vsel %vm734, %v1743, 0
        %v1787 = vsel %vm734, %v1745, 0
        %v1790 = vsel %vm734, %v1747, 0
        %v1793 = vsel %vm734, %v1749, 0
        %v1796 = vsel %vm734, %v1751, 0
        %v1799 = vsel %vm734, %v1753, 0
        %v1802 = vsel %vm734, %v1755, 0
        %v1805 = vsel %vm783, %v1722, 0
        %v1808 = vsel %vm783, %v1723, 0
        %1810 = vmatpush.bf16.msra.mxu0 0
        %1811 = vmatpush.bf16.msra.mxu0 0
        %1812 = vmatpush.bf16.msra.mxu0 0
        %1813 = vmatpush.bf16.msra.mxu0 0
        %1814 = vmatpush.bf16.msra.mxu0 0
        %1815 = vmatpush.bf16.msra.mxu0 0
        %1816 = vmatpush.bf16.msra.mxu0 0
        %1817 = vmatpush.bf16.msra.mxu0 %v1805
        %1818 = vmatmul.bf16.gmra.mxu0 %v1757
        %v1819 = vpop.f32.mrf.mxu0
        %v1820 = vadd.f32 0.0, %v1819
        %v1821 = vpop.f32.mrf.mxu0
        %v1822 = vadd.f32 0.0, %v1821
        %1823 = vmatmul.bf16.gmra.mxu0 %v1760
        %v1824 = vpop.f32.mrf.mxu0
        %v1825 = vadd.f32 0.0, %v1824
        %v1826 = vpop.f32.mrf.mxu0
        %v1827 = vadd.f32 0.0, %v1826
        %1828 = vmatmul.bf16.gmra.mxu0 %v1763
        %v1829 = vpop.f32.mrf.mxu0
        %v1830 = vadd.f32 0.0, %v1829
        %v1831 = vpop.f32.mrf.mxu0
        %v1832 = vadd.f32 0.0, %v1831
        %1833 = vmatmul.bf16.gmra.mxu0 %v1766
        %v1834 = vpop.f32.mrf.mxu0
        %v1835 = vadd.f32 0.0, %v1834
        %v1836 = vpop.f32.mrf.mxu0
        %v1837 = vadd.f32 0.0, %v1836
        %1838 = vmatmul.bf16.gmra.mxu0 %v1769
        %v1839 = vpop.f32.mrf.mxu0
        %v1840 = vadd.f32 0.0, %v1839
        %v1841 = vpop.f32.mrf.mxu0
        %v1842 = vadd.f32 0.0, %v1841
        %1843 = vmatmul.bf16.gmra.mxu0 %v1772
        %v1844 = vpop.f32.mrf.mxu0
        %v1845 = vadd.f32 0.0, %v1844
        %v1846 = vpop.f32.mrf.mxu0
        %v1847 = vadd.f32 0.0, %v1846
        %1848 = vmatmul.bf16.gmra.mxu0 %v1775
        %v1849 = vpop.f32.mrf.mxu0
        %v1850 = vadd.f32 0.0, %v1849
        %v1851 = vpop.f32.mrf.mxu0
        %v1852 = vadd.f32 0.0, %v1851
        %1853 = vmatmul.bf16.gmra.mxu0 %v1778
        %v1854 = vpop.f32.mrf.mxu0
        %v1855 = vadd.f32 0.0, %v1854
        %v1856 = vpop.f32.mrf.mxu0
        %v1857 = vadd.f32 0.0, %v1856
        %1858 = vmatmul.bf16.gmra.mxu0 %v1781
        %v1859 = vpop.f32.mrf.mxu0
        %v1860 = vadd.f32 0.0, %v1859
        %v1861 = vpop.f32.mrf.mxu0
        %v1862 = vadd.f32 0.0, %v1861
        %1863 = vmatmul.bf16.gmra.mxu0 %v1784
        %v1864 = vpop.f32.mrf.mxu0
        %v1865 = vadd.f32 0.0, %v1864
        %v1866 = vpop.f32.mrf.mxu0
        %v1867 = vadd.f32 0.0, %v1866
        %1868 = vmatmul.bf16.gmra.mxu0 %v1787
        %v1869 = vpop.f32.mrf.mxu0
        %v1870 = vadd.f32 0.0, %v1869
        %v1871 = vpop.f32.mrf.mxu0
        %v1872 = vadd.f32 0.0, %v1871
        %1873 = vmatmul.bf16.gmra.mxu0 %v1790
        %v1874 = vpop.f32.mrf.mxu0
        %v1875 = vadd.f32 0.0, %v1874
        %v1876 = vpop.f32.mrf.mxu0
        %v1877 = vadd.f32 0.0, %v1876
        %1878 = vmatmul.bf16.gmra.mxu0 %v1793
        %v1879 = vpop.f32.mrf.mxu0
        %v1880 = vadd.f32 0.0, %v1879
        %v1881 = vpop.f32.mrf.mxu0
        %v1882 = vadd.f32 0.0, %v1881
        %1883 = vmatmul.bf16.gmra.mxu0 %v1796
        %v1884 = vpop.f32.mrf.mxu0
        %v1885 = vadd.f32 0.0, %v1884
        %v1886 = vpop.f32.mrf.mxu0
        %v1887 = vadd.f32 0.0, %v1886
        %1888 = vmatmul.bf16.gmra.mxu0 %v1799
        %v1889 = vpop.f32.mrf.mxu0
        %v1890 = vadd.f32 0.0, %v1889
        %v1891 = vpop.f32.mrf.mxu0
        %v1892 = vadd.f32 0.0, %v1891
        %1893 = vmatmul.bf16.gmra.mxu0 %v1802
        %v1894 = vpop.f32.mrf.mxu0
        %v1895 = vadd.f32 0.0, %v1894
        %v1896 = vpop.f32.mrf.mxu0
        %v1897 = vadd.f32 0.0, %v1896
        %1898 = vdwg.mxu0
        %1899 = vmatpush.bf16.msra.mxu0 0
        %1900 = vmatpush.bf16.msra.mxu0 0
        %1901 = vmatpush.bf16.msra.mxu0 0
        %1902 = vmatpush.bf16.msra.mxu0 0
        %1903 = vmatpush.bf16.msra.mxu0 0
        %1904 = vmatpush.bf16.msra.mxu0 0
        %1905 = vmatpush.bf16.msra.mxu0 0
        %1906 = vmatpush.bf16.msra.mxu0 %v1808
        %1907 = vmatmul.bf16.gmra.mxu0 %v1757
        %v1908 = vpop.f32.mrf.mxu0
        %v1909 = vadd.f32 0.0, %v1908
        %v1910 = vpop.f32.mrf.mxu0
        %v1911 = vadd.f32 0.0, %v1910
        %1912 = vmatmul.bf16.gmra.mxu0 %v1760
        %v1913 = vpop.f32.mrf.mxu0
        %v1914 = vadd.f32 0.0, %v1913
        %v1915 = vpop.f32.mrf.mxu0
        %v1916 = vadd.f32 0.0, %v1915
        %1917 = vmatmul.bf16.gmra.mxu0 %v1763
        %v1918 = vpop.f32.mrf.mxu0
        %v1919 = vadd.f32 0.0, %v1918
        %v1920 = vpop.f32.mrf.mxu0
        %v1921 = vadd.f32 0.0, %v1920
        %1922 = vmatmul.bf16.gmra.mxu0 %v1766
        %v1923 = vpop.f32.mrf.mxu0
        %v1924 = vadd.f32 0.0, %v1923
        %v1925 = vpop.f32.mrf.mxu0
        %v1926 = vadd.f32 0.0, %v1925
        %1927 = vmatmul.bf16.gmra.mxu0 %v1769
        %v1928 = vpop.f32.mrf.mxu0
        %v1929 = vadd.f32 0.0, %v1928
        %v1930 = vpop.f32.mrf.mxu0
        %v1931 = vadd.f32 0.0, %v1930
        %1932 = vmatmul.bf16.gmra.mxu0 %v1772
        %v1933 = vpop.f32.mrf.mxu0
        %v1934 = vadd.f32 0.0, %v1933
        %v1935 = vpop.f32.mrf.mxu0
        %v1936 = vadd.f32 0.0, %v1935
        %1937 = vmatmul.bf16.gmra.mxu0 %v1775
        %v1938 = vpop.f32.mrf.mxu0
        %v1939 = vadd.f32 0.0, %v1938
        %v1940 = vpop.f32.mrf.mxu0
        %v1941 = vadd.f32 0.0, %v1940
        %1942 = vmatmul.bf16.gmra.mxu0 %v1778
        %v1943 = vpop.f32.mrf.mxu0
        %v1944 = vadd.f32 0.0, %v1943
        %v1945 = vpop.f32.mrf.mxu0
        %v1946 = vadd.f32 0.0, %v1945
        %1947 = vmatmul.bf16.gmra.mxu0 %v1781
        %v1948 = vpop.f32.mrf.mxu0
        %v1949 = vadd.f32 0.0, %v1948
        %v1950 = vpop.f32.mrf.mxu0
        %v1951 = vadd.f32 0.0, %v1950
        %1952 = vmatmul.bf16.gmra.mxu0 %v1784
        %v1953 = vpop.f32.mrf.mxu0
        %v1954 = vadd.f32 0.0, %v1953
        %v1955 = vpop.f32.mrf.mxu0
        %v1956 = vadd.f32 0.0, %v1955
        %1957 = vmatmul.bf16.gmra.mxu0 %v1787
        %v1958 = vpop.f32.mrf.mxu0
        %v1959 = vadd.f32 0.0, %v1958
        %v1960 = vpop.f32.mrf.mxu0
        %v1961 = vadd.f32 0.0, %v1960
        %1962 = vmatmul.bf16.gmra.mxu0 %v1790
        %v1963 = vpop.f32.mrf.mxu0
        %v1964 = vadd.f32 0.0, %v1963
        %v1965 = vpop.f32.mrf.mxu0
        %v1966 = vadd.f32 0.0, %v1965
        %1967 = vmatmul.bf16.gmra.mxu0 %v1793
        %v1968 = vpop.f32.mrf.mxu0
        %v1969 = vadd.f32 0.0, %v1968
        %v1970 = vpop.f32.mrf.mxu0
        %v1971 = vadd.f32 0.0, %v1970
        %1972 = vmatmul.bf16.gmra.mxu0 %v1796
        %v1973 = vpop.f32.mrf.mxu0
        %v1974 = vadd.f32 0.0, %v1973
        %v1975 = vpop.f32.mrf.mxu0
        %v1976 = vadd.f32 0.0, %v1975
        %1977 = vmatmul.bf16.gmra.mxu0 %v1799
        %v1978 = vpop.f32.mrf.mxu0
        %v1979 = vadd.f32 0.0, %v1978
        %v1980 = vpop.f32.mrf.mxu0
        %v1981 = vadd.f32 0.0, %v1980
        %1982 = vmatmul.bf16.gmra.mxu0 %v1802
        %v1983 = vpop.f32.mrf.mxu0
        %v1984 = vadd.f32 0.0, %v1983
        %v1985 = vpop.f32.mrf.mxu0
        %v1986 = vadd.f32 0.0, %v1985
        %1987 = vdwg.mxu0
        %v1988 = vmax.f32 %v1820, %v1909
        %1989 = vmax.xlane.f32.xlu0 %v1988
        %v1990 = vpop.xlane.xlu0 %1989
        %v1991 = vmax.f32 %v1822, %v1911
        %1992 = vmax.xlane.f32.xlu0 %v1991
        %v1993 = vpop.xlane.xlu0 %1992
        %v1994 = vmax.f32 %v1825, %v1914
        %1995 = vmax.xlane.f32.xlu0 %v1994
        %v1996 = vpop.xlane.xlu0 %1995
        %v1997 = vmax.f32 %v1827, %v1916
        %1998 = vmax.xlane.f32.xlu0 %v1997
        %v1999 = vpop.xlane.xlu0 %1998
        %v2000 = vmax.f32 %v1830, %v1919
        %2001 = vmax.xlane.f32.xlu0 %v2000
        %v2002 = vpop.xlane.xlu0 %2001
        %v2003 = vmax.f32 %v1832, %v1921
        %2004 = vmax.xlane.f32.xlu0 %v2003
        %v2005 = vpop.xlane.xlu0 %2004
        %v2006 = vmax.f32 %v1835, %v1924
        %2007 = vmax.xlane.f32.xlu0 %v2006
        %v2008 = vpop.xlane.xlu0 %2007
        %v2009 = vmax.f32 %v1837, %v1926
        %2010 = vmax.xlane.f32.xlu0 %v2009
        %v2011 = vpop.xlane.xlu0 %2010
        %v2012 = vmax.f32 %v1840, %v1929
        %2013 = vmax.xlane.f32.xlu0 %v2012
        %v2014 = vpop.xlane.xlu0 %2013
        %v2015 = vmax.f32 %v1842, %v1931
        %2016 = vmax.xlane.f32.xlu0 %v2015
        %v2017 = vpop.xlane.xlu0 %2016
        %v2018 = vmax.f32 %v1845, %v1934
        %2019 = vmax.xlane.f32.xlu0 %v2018
        %v2020 = vpop.xlane.xlu0 %2019
        %v2021 = vmax.f32 %v1847, %v1936
        %2022 = vmax.xlane.f32.xlu0 %v2021
        %v2023 = vpop.xlane.xlu0 %2022
        %v2024 = vmax.f32 %v1850, %v1939
        %2025 = vmax.xlane.f32.xlu0 %v2024
        %v2026 = vpop.xlane.xlu0 %2025
        %v2027 = vmax.f32 %v1852, %v1941
        %2028 = vmax.xlane.f32.xlu0 %v2027
        %v2029 = vpop.xlane.xlu0 %2028
        %v2030 = vmax.f32 %v1855, %v1944
        %2031 = vmax.xlane.f32.xlu0 %v2030
        %v2032 = vpop.xlane.xlu0 %2031
        %v2033 = vmax.f32 %v1857, %v1946
        %2034 = vmax.xlane.f32.xlu0 %v2033
        %v2035 = vpop.xlane.xlu0 %2034
        %v2036 = vmax.f32 %v1860, %v1949
        %2037 = vmax.xlane.f32.xlu0 %v2036
        %v2038 = vpop.xlane.xlu0 %2037
        %v2039 = vmax.f32 %v1862, %v1951
        %2040 = vmax.xlane.f32.xlu0 %v2039
        %v2041 = vpop.xlane.xlu0 %2040
        %v2042 = vmax.f32 %v1865, %v1954
        %2043 = vmax.xlane.f32.xlu0 %v2042
        %v2044 = vpop.xlane.xlu0 %2043
        %v2045 = vmax.f32 %v1867, %v1956
        %2046 = vmax.xlane.f32.xlu0 %v2045
        %v2047 = vpop.xlane.xlu0 %2046
        %v2048 = vmax.f32 %v1870, %v1959
        %2049 = vmax.xlane.f32.xlu0 %v2048
        %v2050 = vpop.xlane.xlu0 %2049
        %v2051 = vmax.f32 %v1872, %v1961
        %2052 = vmax.xlane.f32.xlu0 %v2051
        %v2053 = vpop.xlane.xlu0 %2052
        %v2054 = vmax.f32 %v1875, %v1964
        %2055 = vmax.xlane.f32.xlu0 %v2054
        %v2056 = vpop.xlane.xlu0 %2055
        %v2057 = vmax.f32 %v1877, %v1966
        %2058 = vmax.xlane.f32.xlu0 %v2057
        %v2059 = vpop.xlane.xlu0 %2058
        %v2060 = vmax.f32 %v1880, %v1969
        %2061 = vmax.xlane.f32.xlu0 %v2060
        %v2062 = vpop.xlane.xlu0 %2061
        %v2063 = vmax.f32 %v1882, %v1971
        %2064 = vmax.xlane.f32.xlu0 %v2063
        %v2065 = vpop.xlane.xlu0 %2064
        %v2066 = vmax.f32 %v1885, %v1974
        %2067 = vmax.xlane.f32.xlu0 %v2066
        %v2068 = vpop.xlane.xlu0 %2067
        %v2069 = vmax.f32 %v1887, %v1976
        %2070 = vmax.xlane.f32.xlu0 %v2069
        %v2071 = vpop.xlane.xlu0 %2070
        %v2072 = vmax.f32 %v1890, %v1979
        %2073 = vmax.xlane.f32.xlu0 %v2072
        %v2074 = vpop.xlane.xlu0 %2073
        %v2075 = vmax.f32 %v1892, %v1981
        %2076 = vmax.xlane.f32.xlu0 %v2075
        %v2077 = vpop.xlane.xlu0 %2076
        %v2078 = vmax.f32 %v1895, %v1984
        %2079 = vmax.xlane.f32.xlu0 %v2078
        %v2080 = vpop.xlane.xlu0 %2079
        %v2081 = vmax.f32 %v1897, %v1986
        %2082 = vmax.xlane.f32.xlu0 %v2081
        %v2083 = vpop.xlane.xlu0 %2082
        %v2084 = vsub.f32 %v1820, %v1990
        %v2085 = vsub.f32 %v1909, %v1990
        %v2086 = vsub.f32 %v1822, %v1993
        %v2087 = vsub.f32 %v1911, %v1993
        %v2088 = vsub.f32 %v1825, %v1996
        %v2089 = vsub.f32 %v1914, %v1996
        %v2090 = vsub.f32 %v1827, %v1999
        %v2091 = vsub.f32 %v1916, %v1999
        %v2092 = vsub.f32 %v1830, %v2002
        %v2093 = vsub.f32 %v1919, %v2002
        %v2094 = vsub.f32 %v1832, %v2005
        %v2095 = vsub.f32 %v1921, %v2005
        %v2096 = vsub.f32 %v1835, %v2008
        %v2097 = vsub.f32 %v1924, %v2008
        %v2098 = vsub.f32 %v1837, %v2011
        %v2099 = vsub.f32 %v1926, %v2011
        %v2100 = vsub.f32 %v1840, %v2014
        %v2101 = vsub.f32 %v1929, %v2014
        %v2102 = vsub.f32 %v1842, %v2017
        %v2103 = vsub.f32 %v1931, %v2017
        %v2104 = vsub.f32 %v1845, %v2020
        %v2105 = vsub.f32 %v1934, %v2020
        %v2106 = vsub.f32 %v1847, %v2023
        %v2107 = vsub.f32 %v1936, %v2023
        %v2108 = vsub.f32 %v1850, %v2026
        %v2109 = vsub.f32 %v1939, %v2026
        %v2110 = vsub.f32 %v1852, %v2029
        %v2111 = vsub.f32 %v1941, %v2029
        %v2112 = vsub.f32 %v1855, %v2032
        %v2113 = vsub.f32 %v1944, %v2032
        %v2114 = vsub.f32 %v1857, %v2035
        %v2115 = vsub.f32 %v1946, %v2035
        %v2116 = vsub.f32 %v1860, %v2038
        %v2117 = vsub.f32 %v1949, %v2038
        %v2118 = vsub.f32 %v1862, %v2041
        %v2119 = vsub.f32 %v1951, %v2041
        %v2120 = vsub.f32 %v1865, %v2044
        %v2121 = vsub.f32 %v1954, %v2044
        %v2122 = vsub.f32 %v1867, %v2047
        %v2123 = vsub.f32 %v1956, %v2047
        %v2124 = vsub.f32 %v1870, %v2050
        %v2125 = vsub.f32 %v1959, %v2050
        %v2126 = vsub.f32 %v1872, %v2053
        %v2127 = vsub.f32 %v1961, %v2053
        %v2128 = vsub.f32 %v1875, %v2056
        %v2129 = vsub.f32 %v1964, %v2056
        %v2130 = vsub.f32 %v1877, %v2059
        %v2131 = vsub.f32 %v1966, %v2059
        %v2132 = vsub.f32 %v1880, %v2062
        %v2133 = vsub.f32 %v1969, %v2062
        %v2134 = vsub.f32 %v1882, %v2065
        %v2135 = vsub.f32 %v1971, %v2065
        %v2136 = vsub.f32 %v1885, %v2068
        %v2137 = vsub.f32 %v1974, %v2068
        %v2138 = vsub.f32 %v1887, %v2071
        %v2139 = vsub.f32 %v1976, %v2071
        %v2140 = vsub.f32 %v1890, %v2074
        %v2141 = vsub.f32 %v1979, %v2074
        %v2142 = vsub.f32 %v1892, %v2077
        %v2143 = vsub.f32 %v1981, %v2077
        %v2144 = vsub.f32 %v1895, %v2080
        %v2145 = vsub.f32 %v1984, %v2080
        %v2146 = vsub.f32 %v1897, %v2083
        %v2147 = vsub.f32 %v1986, %v2083
        %v2148 = vmul.f32 %v2084, 1.442695
        %v2149 = vpow.pop %v2148
        %v2150 = vmul.f32 %v2085, 1.442695
        %v2151 = vpow.pop %v2150
        %v2152 = vmul.f32 %v2086, 1.442695
        %v2153 = vpow.pop %v2152
        %v2154 = vmul.f32 %v2087, 1.442695
        %v2155 = vpow.pop %v2154
        %v2156 = vmul.f32 %v2088, 1.442695
        %v2157 = vpow.pop %v2156
        %v2158 = vmul.f32 %v2089, 1.442695
        %v2159 = vpow.pop %v2158
        %v2160 = vmul.f32 %v2090, 1.442695
        %v2161 = vpow.pop %v2160
        %v2162 = vmul.f32 %v2091, 1.442695
        %v2163 = vpow.pop %v2162
        %v2164 = vmul.f32 %v2092, 1.442695
        %v2165 = vpow.pop %v2164
        %v2166 = vmul.f32 %v2093, 1.442695
        %v2167 = vpow.pop %v2166
        %v2168 = vmul.f32 %v2094, 1.442695
        %v2169 = vpow.pop %v2168
        %v2170 = vmul.f32 %v2095, 1.442695
        %v2171 = vpow.pop %v2170
        %v2172 = vmul.f32 %v2096, 1.442695
        %v2173 = vpow.pop %v2172
        %v2174 = vmul.f32 %v2097, 1.442695
        %v2175 = vpow.pop %v2174
        %v2176 = vmul.f32 %v2098, 1.442695
        %v2177 = vpow.pop %v2176
        %v2178 = vmul.f32 %v2099, 1.442695
        %v2179 = vpow.pop %v2178
        %v2180 = vmul.f32 %v2100, 1.442695
        %v2181 = vpow.pop %v2180
        %v2182 = vmul.f32 %v2101, 1.442695
        %v2183 = vpow.pop %v2182
        %v2184 = vmul.f32 %v2102, 1.442695
        %v2185 = vpow.pop %v2184
        %v2186 = vmul.f32 %v2103, 1.442695
        %v2187 = vpow.pop %v2186
        %v2188 = vmul.f32 %v2104, 1.442695
        %v2189 = vpow.pop %v2188
        %v2190 = vmul.f32 %v2105, 1.442695
        %v2191 = vpow.pop %v2190
        %v2192 = vmul.f32 %v2106, 1.442695
        %v2193 = vpow.pop %v2192
        %v2194 = vmul.f32 %v2107, 1.442695
        %v2195 = vpow.pop %v2194
        %v2196 = vmul.f32 %v2108, 1.442695
        %v2197 = vpow.pop %v2196
        %v2198 = vmul.f32 %v2109, 1.442695
        %v2199 = vpow.pop %v2198
        %v2200 = vmul.f32 %v2110, 1.442695
        %v2201 = vpow.pop %v2200
        %v2202 = vmul.f32 %v2111, 1.442695
        %v2203 = vpow.pop %v2202
        %v2204 = vmul.f32 %v2112, 1.442695
        %v2205 = vpow.pop %v2204
        %v2206 = vmul.f32 %v2113, 1.442695
        %v2207 = vpow.pop %v2206
        %v2208 = vmul.f32 %v2114, 1.442695
        %v2209 = vpow.pop %v2208
        %v2210 = vmul.f32 %v2115, 1.442695
        %v2211 = vpow.pop %v2210
        %v2212 = vmul.f32 %v2116, 1.442695
        %v2213 = vpow.pop %v2212
        %v2214 = vmul.f32 %v2117, 1.442695
        %v2215 = vpow.pop %v2214
        %v2216 = vmul.f32 %v2118, 1.442695
        %v2217 = vpow.pop %v2216
        %v2218 = vmul.f32 %v2119, 1.442695
        %v2219 = vpow.pop %v2218
        %v2220 = vmul.f32 %v2120, 1.442695
        %v2221 = vpow.pop %v2220
        %v2222 = vmul.f32 %v2121, 1.442695
        %v2223 = vpow.pop %v2222
        %v2224 = vmul.f32 %v2122, 1.442695
        %v2225 = vpow.pop %v2224
        %v2226 = vmul.f32 %v2123, 1.442695
        %v2227 = vpow.pop %v2226
        %v2228 = vmul.f32 %v2124, 1.442695
        %v2229 = vpow.pop %v2228
        %v2230 = vmul.f32 %v2125, 1.442695
        %v2231 = vpow.pop %v2230
        %v2232 = vmul.f32 %v2126, 1.442695
        %v2233 = vpow.pop %v2232
        %v2234 = vmul.f32 %v2127, 1.442695
        %v2235 = vpow.pop %v2234
        %v2236 = vmul.f32 %v2128, 1.442695
        %v2237 = vpow.pop %v2236
        %v2238 = vmul.f32 %v2129, 1.442695
        %v2239 = vpow.pop %v2238
        %v2240 = vmul.f32 %v2130, 1.442695
        %v2241 = vpow.pop %v2240
        %v2242 = vmul.f32 %v2131, 1.442695
        %v2243 = vpow.pop %v2242
        %v2244 = vmul.f32 %v2132, 1.442695
        %v2245 = vpow.pop %v2244
        %v2246 = vmul.f32 %v2133, 1.442695
        %v2247 = vpow.pop %v2246
        %v2248 = vmul.f32 %v2134, 1.442695
        %v2249 = vpow.pop %v2248
        %v2250 = vmul.f32 %v2135, 1.442695
        %v2251 = vpow.pop %v2250
        %v2252 = vmul.f32 %v2136, 1.442695
        %v2253 = vpow.pop %v2252
        %v2254 = vmul.f32 %v2137, 1.442695
        %v2255 = vpow.pop %v2254
        %v2256 = vmul.f32 %v2138, 1.442695
        %v2257 = vpow.pop %v2256
        %v2258 = vmul.f32 %v2139, 1.442695
        %v2259 = vpow.pop %v2258
        %v2260 = vmul.f32 %v2140, 1.442695
        %v2261 = vpow.pop %v2260
        %v2262 = vmul.f32 %v2141, 1.442695
        %v2263 = vpow.pop %v2262
        %v2264 = vmul.f32 %v2142, 1.442695
        %v2265 = vpow.pop %v2264
        %v2266 = vmul.f32 %v2143, 1.442695
        %v2267 = vpow.pop %v2266
        %v2268 = vmul.f32 %v2144, 1.442695
        %v2269 = vpow.pop %v2268
        %v2270 = vmul.f32 %v2145, 1.442695
        %v2271 = vpow.pop %v2270
        %v2272 = vmul.f32 %v2146, 1.442695
        %v2273 = vpow.pop %v2272
        %v2274 = vmul.f32 %v2147, 1.442695
        %v2275 = vpow.pop %v2274
        %v2276 = vadd.f32 %v2149, %v2151
        %2277 = vadd.xlane.f32.xlu0 %v2276
        %v2278 = vpop.xlane.xlu0 %2277
        %v2279 = vadd.f32 %v2153, %v2155
        %2280 = vadd.xlane.f32.xlu0 %v2279
        %v2281 = vpop.xlane.xlu0 %2280
        %v2282 = vadd.f32 %v2157, %v2159
        %2283 = vadd.xlane.f32.xlu0 %v2282
        %v2284 = vpop.xlane.xlu0 %2283
        %v2285 = vadd.f32 %v2161, %v2163
        %2286 = vadd.xlane.f32.xlu0 %v2285
        %v2287 = vpop.xlane.xlu0 %2286
        %v2288 = vadd.f32 %v2165, %v2167
        %2289 = vadd.xlane.f32.xlu0 %v2288
        %v2290 = vpop.xlane.xlu0 %2289
        %v2291 = vadd.f32 %v2169, %v2171
        %2292 = vadd.xlane.f32.xlu0 %v2291
        %v2293 = vpop.xlane.xlu0 %2292
        %v2294 = vadd.f32 %v2173, %v2175
        %2295 = vadd.xlane.f32.xlu0 %v2294
        %v2296 = vpop.xlane.xlu0 %2295
        %v2297 = vadd.f32 %v2177, %v2179
        %2298 = vadd.xlane.f32.xlu0 %v2297
        %v2299 = vpop.xlane.xlu0 %2298
        %v2300 = vadd.f32 %v2181, %v2183
        %2301 = vadd.xlane.f32.xlu0 %v2300
        %v2302 = vpop.xlane.xlu0 %2301
        %v2303 = vadd.f32 %v2185, %v2187
        %2304 = vadd.xlane.f32.xlu0 %v2303
        %v2305 = vpop.xlane.xlu0 %2304
        %v2306 = vadd.f32 %v2189, %v2191
        %2307 = vadd.xlane.f32.xlu0 %v2306
        %v2308 = vpop.xlane.xlu0 %2307
        %v2309 = vadd.f32 %v2193, %v2195
        %2310 = vadd.xlane.f32.xlu0 %v2309
        %v2311 = vpop.xlane.xlu0 %2310
        %v2312 = vadd.f32 %v2197, %v2199
        %2313 = vadd.xlane.f32.xlu0 %v2312
        %v2314 = vpop.xlane.xlu0 %2313
        %v2315 = vadd.f32 %v2201, %v2203
        %2316 = vadd.xlane.f32.xlu0 %v2315
        %v2317 = vpop.xlane.xlu0 %2316
        %v2318 = vadd.f32 %v2205, %v2207
        %2319 = vadd.xlane.f32.xlu0 %v2318
        %v2320 = vpop.xlane.xlu0 %2319
        %v2321 = vadd.f32 %v2209, %v2211
        %2322 = vadd.xlane.f32.xlu0 %v2321
        %v2323 = vpop.xlane.xlu0 %2322
        %v2324 = vadd.f32 %v2213, %v2215
        %2325 = vadd.xlane.f32.xlu0 %v2324
        %v2326 = vpop.xlane.xlu0 %2325
        %v2327 = vadd.f32 %v2217, %v2219
        %2328 = vadd.xlane.f32.xlu0 %v2327
        %v2329 = vpop.xlane.xlu0 %2328
        %v2330 = vadd.f32 %v2221, %v2223
        %2331 = vadd.xlane.f32.xlu0 %v2330
        %v2332 = vpop.xlane.xlu0 %2331
        %v2333 = vadd.f32 %v2225, %v2227
        %2334 = vadd.xlane.f32.xlu0 %v2333
        %v2335 = vpop.xlane.xlu0 %2334
        %v2336 = vadd.f32 %v2229, %v2231
        %2337 = vadd.xlane.f32.xlu0 %v2336
        %v2338 = vpop.xlane.xlu0 %2337
        %v2339 = vadd.f32 %v2233, %v2235
        %2340 = vadd.xlane.f32.xlu0 %v2339
        %v2341 = vpop.xlane.xlu0 %2340
        %v2342 = vadd.f32 %v2237, %v2239
        %2343 = vadd.xlane.f32.xlu0 %v2342
        %v2344 = vpop.xlane.xlu0 %2343
        %v2345 = vadd.f32 %v2241, %v2243
        %2346 = vadd.xlane.f32.xlu0 %v2345
        %v2347 = vpop.xlane.xlu0 %2346
        %v2348 = vadd.f32 %v2245, %v2247
        %2349 = vadd.xlane.f32.xlu0 %v2348
        %v2350 = vpop.xlane.xlu0 %2349
        %v2351 = vadd.f32 %v2249, %v2251
        %2352 = vadd.xlane.f32.xlu0 %v2351
        %v2353 = vpop.xlane.xlu0 %2352
        %v2354 = vadd.f32 %v2253, %v2255
        %2355 = vadd.xlane.f32.xlu0 %v2354
        %v2356 = vpop.xlane.xlu0 %2355
        %v2357 = vadd.f32 %v2257, %v2259
        %2358 = vadd.xlane.f32.xlu0 %v2357
        %v2359 = vpop.xlane.xlu0 %2358
        %v2360 = vadd.f32 %v2261, %v2263
        %2361 = vadd.xlane.f32.xlu0 %v2360
        %v2362 = vpop.xlane.xlu0 %2361
        %v2363 = vadd.f32 %v2265, %v2267
        %2364 = vadd.xlane.f32.xlu0 %v2363
        %v2365 = vpop.xlane.xlu0 %2364
        %v2366 = vadd.f32 %v2269, %v2271
        %2367 = vadd.xlane.f32.xlu0 %v2366
        %v2368 = vpop.xlane.xlu0 %2367
        %v2369 = vadd.f32 %v2273, %v2275
        %2370 = vadd.xlane.f32.xlu0 %v2369
        %v2371 = vpop.xlane.xlu0 %2370
        %v2372 = vpack.c.bf16 %v2153, %v2149
        %v2373 = vpack.c.bf16 %v2155, %v2151
        %v2374 = vpack.c.bf16 %v2161, %v2157
        %v2375 = vpack.c.bf16 %v2163, %v2159
        %v2376 = vpack.c.bf16 %v2169, %v2165
        %v2377 = vpack.c.bf16 %v2171, %v2167
        %v2378 = vpack.c.bf16 %v2177, %v2173
        %v2379 = vpack.c.bf16 %v2179, %v2175
        %v2380 = vpack.c.bf16 %v2185, %v2181
        %v2381 = vpack.c.bf16 %v2187, %v2183
        %v2382 = vpack.c.bf16 %v2193, %v2189
        %v2383 = vpack.c.bf16 %v2195, %v2191
        %v2384 = vpack.c.bf16 %v2201, %v2197
        %v2385 = vpack.c.bf16 %v2203, %v2199
        %v2386 = vpack.c.bf16 %v2209, %v2205
        %v2387 = vpack.c.bf16 %v2211, %v2207
        %v2388 = vpack.c.bf16 %v2217, %v2213
        %v2389 = vpack.c.bf16 %v2219, %v2215
        %v2390 = vpack.c.bf16 %v2225, %v2221
        %v2391 = vpack.c.bf16 %v2227, %v2223
        %v2392 = vpack.c.bf16 %v2233, %v2229
        %v2393 = vpack.c.bf16 %v2235, %v2231
        %v2394 = vpack.c.bf16 %v2241, %v2237
        %v2395 = vpack.c.bf16 %v2243, %v2239
        %v2396 = vpack.c.bf16 %v2249, %v2245
        %v2397 = vpack.c.bf16 %v2251, %v2247
        %v2398 = vpack.c.bf16 %v2257, %v2253
        %v2399 = vpack.c.bf16 %v2259, %v2255
        %v2400 = vpack.c.bf16 %v2265, %v2261
        %v2401 = vpack.c.bf16 %v2267, %v2263
        %v2402 = vpack.c.bf16 %v2273, %v2269
        %v2403 = vpack.c.bf16 %v2275, %v2271
        %2404 = vrot.lane.b32.xlu0 %v716, 32
        %v2405 = vpop.permute.xlu0 %2404
        %2406 = vrot.lane.b32.xlu0 %v717, 32
        %v2407 = vpop.permute.xlu0 %2406
        %2408 = vrot.lane.b32.xlu0 %v718, 32
        %v2409 = vpop.permute.xlu0 %2408
        %2410 = vrot.lane.b32.xlu0 %v719, 32
        %v2411 = vpop.permute.xlu0 %2410
        %2412 = vrot.lane.b32.xlu0 %v720, 32
        %v2413 = vpop.permute.xlu0 %2412
        %2414 = vrot.lane.b32.xlu0 %v721, 32
        %v2415 = vpop.permute.xlu0 %2414
        %2416 = vrot.lane.b32.xlu0 %v722, 32
        %v2417 = vpop.permute.xlu0 %2416
        %2418 = vrot.lane.b32.xlu0 %v723, 32
        %v2419 = vpop.permute.xlu0 %2418
        %2420 = vrot.lane.b32.xlu0 %v724, 32
        %v2421 = vpop.permute.xlu0 %2420
        %2422 = vrot.lane.b32.xlu0 %v725, 32
        %v2423 = vpop.permute.xlu0 %2422
        %2424 = vrot.lane.b32.xlu0 %v726, 32
        %v2425 = vpop.permute.xlu0 %2424
        %2426 = vrot.lane.b32.xlu0 %v727, 32
        %v2427 = vpop.permute.xlu0 %2426
        %2428 = vrot.lane.b32.xlu0 %v728, 32
        %v2429 = vpop.permute.xlu0 %2428
        %2430 = vrot.lane.b32.xlu0 %v729, 32
        %v2431 = vpop.permute.xlu0 %2430
        %2432 = vrot.lane.b32.xlu0 %v730, 32
        %v2433 = vpop.permute.xlu0 %2432
        %2434 = vrot.lane.b32.xlu0 %v731, 32
        %v2435 = vpop.permute.xlu0 %2434
        %2452 = vmatpush.bf16.msra.mxu0 %v2419
        %2453 = vmatpush.bf16.msra.mxu0 %v2417
        %2454 = vmatpush.bf16.msra.mxu0 %v2415
        %2455 = vmatpush.bf16.msra.mxu0 %v2413
        %2456 = vmatpush.bf16.msra.mxu0 %v2411
        %2457 = vmatpush.bf16.msra.mxu0 %v2409
        %2458 = vmatpush.bf16.msra.mxu0 %v2407
        %2459 = vmatpush.bf16.msra.mxu0 %v2405
        %2460 = vmatmul.bf16.gmra.mxu0 %v2372
        %v2461 = vpop.f32.mrf.mxu0
        %v2462 = vadd.f32 0.0, %v2461
        %v2463 = vpop.f32.mrf.mxu0
        %v2464 = vadd.f32 0.0, %v2463
        %2465 = vmatmul.bf16.gmra.mxu0 %v2374
        %v2466 = vpop.f32.mrf.mxu0
        %v2467 = vadd.f32 0.0, %v2466
        %v2468 = vpop.f32.mrf.mxu0
        %v2469 = vadd.f32 0.0, %v2468
        %2470 = vmatmul.bf16.gmra.mxu0 %v2376
        %v2471 = vpop.f32.mrf.mxu0
        %v2472 = vadd.f32 0.0, %v2471
        %v2473 = vpop.f32.mrf.mxu0
        %v2474 = vadd.f32 0.0, %v2473
        %2475 = vmatmul.bf16.gmra.mxu0 %v2378
        %v2476 = vpop.f32.mrf.mxu0
        %v2477 = vadd.f32 0.0, %v2476
        %v2478 = vpop.f32.mrf.mxu0
        %v2479 = vadd.f32 0.0, %v2478
        %2480 = vmatmul.bf16.gmra.mxu0 %v2380
        %v2481 = vpop.f32.mrf.mxu0
        %v2482 = vadd.f32 0.0, %v2481
        %v2483 = vpop.f32.mrf.mxu0
        %v2484 = vadd.f32 0.0, %v2483
        %2485 = vmatmul.bf16.gmra.mxu0 %v2382
        %v2486 = vpop.f32.mrf.mxu0
        %v2487 = vadd.f32 0.0, %v2486
        %v2488 = vpop.f32.mrf.mxu0
        %v2489 = vadd.f32 0.0, %v2488
        %2490 = vmatmul.bf16.gmra.mxu0 %v2384
        %v2491 = vpop.f32.mrf.mxu0
        %v2492 = vadd.f32 0.0, %v2491
        %v2493 = vpop.f32.mrf.mxu0
        %v2494 = vadd.f32 0.0, %v2493
        %2495 = vmatmul.bf16.gmra.mxu0 %v2386
        %v2496 = vpop.f32.mrf.mxu0
        %v2497 = vadd.f32 0.0, %v2496
        %v2498 = vpop.f32.mrf.mxu0
        %v2499 = vadd.f32 0.0, %v2498
        %2500 = vmatmul.bf16.gmra.mxu0 %v2388
        %v2501 = vpop.f32.mrf.mxu0
        %v2502 = vadd.f32 0.0, %v2501
        %v2503 = vpop.f32.mrf.mxu0
        %v2504 = vadd.f32 0.0, %v2503
        %2505 = vmatmul.bf16.gmra.mxu0 %v2390
        %v2506 = vpop.f32.mrf.mxu0
        %v2507 = vadd.f32 0.0, %v2506
        %v2508 = vpop.f32.mrf.mxu0
        %v2509 = vadd.f32 0.0, %v2508
        %2510 = vmatmul.bf16.gmra.mxu0 %v2392
        %v2511 = vpop.f32.mrf.mxu0
        %v2512 = vadd.f32 0.0, %v2511
        %v2513 = vpop.f32.mrf.mxu0
        %v2514 = vadd.f32 0.0, %v2513
        %2515 = vmatmul.bf16.gmra.mxu0 %v2394
        %v2516 = vpop.f32.mrf.mxu0
        %v2517 = vadd.f32 0.0, %v2516
        %v2518 = vpop.f32.mrf.mxu0
        %v2519 = vadd.f32 0.0, %v2518
        %2520 = vmatmul.bf16.gmra.mxu0 %v2396
        %v2521 = vpop.f32.mrf.mxu0
        %v2522 = vadd.f32 0.0, %v2521
        %v2523 = vpop.f32.mrf.mxu0
        %v2524 = vadd.f32 0.0, %v2523
        %2525 = vmatmul.bf16.gmra.mxu0 %v2398
        %v2526 = vpop.f32.mrf.mxu0
        %v2527 = vadd.f32 0.0, %v2526
        %v2528 = vpop.f32.mrf.mxu0
        %v2529 = vadd.f32 0.0, %v2528
        %2530 = vmatmul.bf16.gmra.mxu0 %v2400
        %v2531 = vpop.f32.mrf.mxu0
        %v2532 = vadd.f32 0.0, %v2531
        %v2533 = vpop.f32.mrf.mxu0
        %v2534 = vadd.f32 0.0, %v2533
        %2535 = vmatmul.bf16.gmra.mxu0 %v2402
        %v2536 = vpop.f32.mrf.mxu0
        %v2537 = vadd.f32 0.0, %v2536
        %v2538 = vpop.f32.mrf.mxu0
        %v2539 = vadd.f32 0.0, %v2538
        %2540 = vdwg.mxu0
        %2541 = vmatpush.bf16.msra.mxu0 %v2435
        %2542 = vmatpush.bf16.msra.mxu0 %v2433
        %2543 = vmatpush.bf16.msra.mxu0 %v2431
        %2544 = vmatpush.bf16.msra.mxu0 %v2429
        %2545 = vmatpush.bf16.msra.mxu0 %v2427
        %2546 = vmatpush.bf16.msra.mxu0 %v2425
        %2547 = vmatpush.bf16.msra.mxu0 %v2423
        %2548 = vmatpush.bf16.msra.mxu0 %v2421
        %2549 = vmatmul.bf16.gmra.mxu0 %v2373
        %v2550 = vpop.f32.mrf.mxu0
        %v2551 = vadd.f32 %v2462, %v2550
        %v2552 = vpop.f32.mrf.mxu0
        %v2553 = vadd.f32 %v2464, %v2552
        %2554 = vmatmul.bf16.gmra.mxu0 %v2375
        %v2555 = vpop.f32.mrf.mxu0
        %v2556 = vadd.f32 %v2467, %v2555
        %v2557 = vpop.f32.mrf.mxu0
        %v2558 = vadd.f32 %v2469, %v2557
        %2559 = vmatmul.bf16.gmra.mxu0 %v2377
        %v2560 = vpop.f32.mrf.mxu0
        %v2561 = vadd.f32 %v2472, %v2560
        %v2562 = vpop.f32.mrf.mxu0
        %v2563 = vadd.f32 %v2474, %v2562
        %2564 = vmatmul.bf16.gmra.mxu0 %v2379
        %v2565 = vpop.f32.mrf.mxu0
        %v2566 = vadd.f32 %v2477, %v2565
        %v2567 = vpop.f32.mrf.mxu0
        %v2568 = vadd.f32 %v2479, %v2567
        %2569 = vmatmul.bf16.gmra.mxu0 %v2381
        %v2570 = vpop.f32.mrf.mxu0
        %v2571 = vadd.f32 %v2482, %v2570
        %v2572 = vpop.f32.mrf.mxu0
        %v2573 = vadd.f32 %v2484, %v2572
        %2574 = vmatmul.bf16.gmra.mxu0 %v2383
        %v2575 = vpop.f32.mrf.mxu0
        %v2576 = vadd.f32 %v2487, %v2575
        %v2577 = vpop.f32.mrf.mxu0
        %v2578 = vadd.f32 %v2489, %v2577
        %2579 = vmatmul.bf16.gmra.mxu0 %v2385
        %v2580 = vpop.f32.mrf.mxu0
        %v2581 = vadd.f32 %v2492, %v2580
        %v2582 = vpop.f32.mrf.mxu0
        %v2583 = vadd.f32 %v2494, %v2582
        %2584 = vmatmul.bf16.gmra.mxu0 %v2387
        %v2585 = vpop.f32.mrf.mxu0
        %v2586 = vadd.f32 %v2497, %v2585
        %v2587 = vpop.f32.mrf.mxu0
        %v2588 = vadd.f32 %v2499, %v2587
        %2589 = vmatmul.bf16.gmra.mxu0 %v2389
        %v2590 = vpop.f32.mrf.mxu0
        %v2591 = vadd.f32 %v2502, %v2590
        %v2592 = vpop.f32.mrf.mxu0
        %v2593 = vadd.f32 %v2504, %v2592
        %2594 = vmatmul.bf16.gmra.mxu0 %v2391
        %v2595 = vpop.f32.mrf.mxu0
        %v2596 = vadd.f32 %v2507, %v2595
        %v2597 = vpop.f32.mrf.mxu0
        %v2598 = vadd.f32 %v2509, %v2597
        %2599 = vmatmul.bf16.gmra.mxu0 %v2393
        %v2600 = vpop.f32.mrf.mxu0
        %v2601 = vadd.f32 %v2512, %v2600
        %v2602 = vpop.f32.mrf.mxu0
        %v2603 = vadd.f32 %v2514, %v2602
        %2604 = vmatmul.bf16.gmra.mxu0 %v2395
        %v2605 = vpop.f32.mrf.mxu0
        %v2606 = vadd.f32 %v2517, %v2605
        %v2607 = vpop.f32.mrf.mxu0
        %v2608 = vadd.f32 %v2519, %v2607
        %2609 = vmatmul.bf16.gmra.mxu0 %v2397
        %v2610 = vpop.f32.mrf.mxu0
        %v2611 = vadd.f32 %v2522, %v2610
        %v2612 = vpop.f32.mrf.mxu0
        %v2613 = vadd.f32 %v2524, %v2612
        %2614 = vmatmul.bf16.gmra.mxu0 %v2399
        %v2615 = vpop.f32.mrf.mxu0
        %v2616 = vadd.f32 %v2527, %v2615
        %v2617 = vpop.f32.mrf.mxu0
        %v2618 = vadd.f32 %v2529, %v2617
        %2619 = vmatmul.bf16.gmra.mxu0 %v2401
        %v2620 = vpop.f32.mrf.mxu0
        %v2621 = vadd.f32 %v2532, %v2620
        %v2622 = vpop.f32.mrf.mxu0
        %v2623 = vadd.f32 %v2534, %v2622
        %2624 = vmatmul.bf16.gmra.mxu0 %v2403
        %v2625 = vpop.f32.mrf.mxu0
        %v2626 = vadd.f32 %v2537, %v2625
        %v2627 = vpop.f32.mrf.mxu0
        %v2628 = vadd.f32 %v2539, %v2627
        %2629 = vdwg.mxu0
        %v2630 = vrcp.pop %v2278
        %v2631 = vrcp.pop %v2281
        %v2632 = vrcp.pop %v2284
        %v2633 = vrcp.pop %v2287
        %v2634 = vrcp.pop %v2290
        %v2635 = vrcp.pop %v2293
        %v2636 = vrcp.pop %v2296
        %v2637 = vrcp.pop %v2299
        %v2638 = vrcp.pop %v2302
        %v2639 = vrcp.pop %v2305
        %v2640 = vrcp.pop %v2308
        %v2641 = vrcp.pop %v2311
        %v2642 = vrcp.pop %v2314
        %v2643 = vrcp.pop %v2317
        %v2644 = vrcp.pop %v2320
        %v2645 = vrcp.pop %v2323
        %v2646 = vrcp.pop %v2326
        %v2647 = vrcp.pop %v2329
        %v2648 = vrcp.pop %v2332
        %v2649 = vrcp.pop %v2335
        %v2650 = vrcp.pop %v2338
        %v2651 = vrcp.pop %v2341
        %v2652 = vrcp.pop %v2344
        %v2653 = vrcp.pop %v2347
        %v2654 = vrcp.pop %v2350
        %v2655 = vrcp.pop %v2353
        %v2656 = vrcp.pop %v2356
        %v2657 = vrcp.pop %v2359
        %v2658 = vrcp.pop %v2362
        %v2659 = vrcp.pop %v2365
        %v2660 = vrcp.pop %v2368
        %v2661 = vrcp.pop %v2371
        %v2662 = vmul.f32 %v2551, %v2630
        %v2663 = vmul.f32 %v2553, %v2631
        %v2664 = vmul.f32 %v2556, %v2632
        %v2665 = vmul.f32 %v2558, %v2633
        %v2666 = vmul.f32 %v2561, %v2634
        %v2667 = vmul.f32 %v2563, %v2635
        %v2668 = vmul.f32 %v2566, %v2636
        %v2669 = vmul.f32 %v2568, %v2637
        %v2670 = vmul.f32 %v2571, %v2638
        %v2671 = vmul.f32 %v2573, %v2639
        %v2672 = vmul.f32 %v2576, %v2640
        %v2673 = vmul.f32 %v2578, %v2641
        %v2674 = vmul.f32 %v2581, %v2642
        %v2675 = vmul.f32 %v2583, %v2643
        %v2676 = vmul.f32 %v2586, %v2644
        %v2677 = vmul.f32 %v2588, %v2645
        %v2678 = vmul.f32 %v2591, %v2646
        %v2679 = vmul.f32 %v2593, %v2647
        %v2680 = vmul.f32 %v2596, %v2648
        %v2681 = vmul.f32 %v2598, %v2649
        %v2682 = vmul.f32 %v2601, %v2650
        %v2683 = vmul.f32 %v2603, %v2651
        %v2684 = vmul.f32 %v2606, %v2652
        %v2685 = vmul.f32 %v2608, %v2653
        %v2686 = vmul.f32 %v2611, %v2654
        %v2687 = vmul.f32 %v2613, %v2655
        %v2688 = vmul.f32 %v2616, %v2656
        %v2689 = vmul.f32 %v2618, %v2657
        %v2690 = vmul.f32 %v2621, %v2658
        %v2691 = vmul.f32 %v2623, %v2659
        %v2692 = vmul.f32 %v2626, %v2660
        %v2693 = vmul.f32 %v2628, %v2661
        %v2694 = vadd.f32 %v1690, %v2662
        %v2695 = vadd.f32 %v1691, %v2663
        %v2696 = vadd.f32 %v1692, %v2664
        %v2697 = vadd.f32 %v1693, %v2665
        %v2698 = vadd.f32 %v1694, %v2666
        %v2699 = vadd.f32 %v1695, %v2667
        %v2700 = vadd.f32 %v1696, %v2668
        %v2701 = vadd.f32 %v1697, %v2669
        %v2702 = vadd.f32 %v1698, %v2670
        %v2703 = vadd.f32 %v1699, %v2671
        %v2704 = vadd.f32 %v1700, %v2672
        %v2705 = vadd.f32 %v1701, %v2673
        %v2706 = vadd.f32 %v1702, %v2674
        %v2707 = vadd.f32 %v1703, %v2675
        %v2708 = vadd.f32 %v1704, %v2676
        %v2709 = vadd.f32 %v1705, %v2677
        %v2710 = vadd.f32 %v1706, %v2678
        %v2711 = vadd.f32 %v1707, %v2679
        %v2712 = vadd.f32 %v1708, %v2680
        %v2713 = vadd.f32 %v1709, %v2681
        %v2714 = vadd.f32 %v1710, %v2682
        %v2715 = vadd.f32 %v1711, %v2683
        %v2716 = vadd.f32 %v1712, %v2684
        %v2717 = vadd.f32 %v1713, %v2685
        %v2718 = vadd.f32 %v1714, %v2686
        %v2719 = vadd.f32 %v1715, %v2687
        %v2720 = vadd.f32 %v1716, %v2688
        %v2721 = vadd.f32 %v1717, %v2689
        %v2722 = vadd.f32 %v1718, %v2690
        %v2723 = vadd.f32 %v1719, %v2691
        %v2724 = vadd.f32 %v1720, %v2692
        %v2725 = vadd.f32 %v1721, %v2693
        %v2726 = vpack.c.bf16 %v670, %v670
        %v2727 = vpack.c.bf16 %v702, %v702
        %2728 = vrot.lane.b32.xlu0 %v716, 112
        %v2729 = vpop.permute.xlu0 %2728
        %2730 = vrot.lane.b32.xlu0 %v717, 112
        %v2731 = vpop.permute.xlu0 %2730
        %2732 = vrot.lane.b32.xlu0 %v718, 112
        %v2733 = vpop.permute.xlu0 %2732
        %2734 = vrot.lane.b32.xlu0 %v719, 112
        %v2735 = vpop.permute.xlu0 %2734
        %2736 = vrot.lane.b32.xlu0 %v720, 112
        %v2737 = vpop.permute.xlu0 %2736
        %2738 = vrot.lane.b32.xlu0 %v721, 112
        %v2739 = vpop.permute.xlu0 %2738
        %2740 = vrot.lane.b32.xlu0 %v722, 112
        %v2741 = vpop.permute.xlu0 %2740
        %2742 = vrot.lane.b32.xlu0 %v723, 112
        %v2743 = vpop.permute.xlu0 %2742
        %2744 = vrot.lane.b32.xlu0 %v724, 112
        %v2745 = vpop.permute.xlu0 %2744
        %2746 = vrot.lane.b32.xlu0 %v725, 112
        %v2747 = vpop.permute.xlu0 %2746
        %2748 = vrot.lane.b32.xlu0 %v726, 112
        %v2749 = vpop.permute.xlu0 %2748
        %2750 = vrot.lane.b32.xlu0 %v727, 112
        %v2751 = vpop.permute.xlu0 %2750
        %2752 = vrot.lane.b32.xlu0 %v728, 112
        %v2753 = vpop.permute.xlu0 %2752
        %2754 = vrot.lane.b32.xlu0 %v729, 112
        %v2755 = vpop.permute.xlu0 %2754
        %2756 = vrot.lane.b32.xlu0 %v730, 112
        %v2757 = vpop.permute.xlu0 %2756
        %2758 = vrot.lane.b32.xlu0 %v731, 112
        %v2759 = vpop.permute.xlu0 %2758
        %v2761 = vsel %vm734, %v2729, 0
        %v2764 = vsel %vm734, %v2731, 0
        %v2767 = vsel %vm734, %v2733, 0
        %v2770 = vsel %vm734, %v2735, 0
        %v2773 = vsel %vm734, %v2737, 0
        %v2776 = vsel %vm734, %v2739, 0
        %v2779 = vsel %vm734, %v2741, 0
        %v2782 = vsel %vm734, %v2743, 0
        %v2785 = vsel %vm734, %v2745, 0
        %v2788 = vsel %vm734, %v2747, 0
        %v2791 = vsel %vm734, %v2749, 0
        %v2794 = vsel %vm734, %v2751, 0
        %v2797 = vsel %vm734, %v2753, 0
        %v2800 = vsel %vm734, %v2755, 0
        %v2803 = vsel %vm734, %v2757, 0
        %v2806 = vsel %vm734, %v2759, 0
        %v2809 = vsel %vm783, %v2726, 0
        %v2812 = vsel %vm783, %v2727, 0
        %2814 = vmatpush.bf16.msra.mxu0 0
        %2815 = vmatpush.bf16.msra.mxu0 0
        %2816 = vmatpush.bf16.msra.mxu0 0
        %2817 = vmatpush.bf16.msra.mxu0 0
        %2818 = vmatpush.bf16.msra.mxu0 0
        %2819 = vmatpush.bf16.msra.mxu0 0
        %2820 = vmatpush.bf16.msra.mxu0 0
        %2821 = vmatpush.bf16.msra.mxu0 %v2809
        %2822 = vmatmul.bf16.gmra.mxu0 %v2761
        %v2823 = vpop.f32.mrf.mxu0
        %v2824 = vadd.f32 0.0, %v2823
        %v2825 = vpop.f32.mrf.mxu0
        %v2826 = vadd.f32 0.0, %v2825
        %2827 = vmatmul.bf16.gmra.mxu0 %v2764
        %v2828 = vpop.f32.mrf.mxu0
        %v2829 = vadd.f32 0.0, %v2828
        %v2830 = vpop.f32.mrf.mxu0
        %v2831 = vadd.f32 0.0, %v2830
        %2832 = vmatmul.bf16.gmra.mxu0 %v2767
        %v2833 = vpop.f32.mrf.mxu0
        %v2834 = vadd.f32 0.0, %v2833
        %v2835 = vpop.f32.mrf.mxu0
        %v2836 = vadd.f32 0.0, %v2835
        %2837 = vmatmul.bf16.gmra.mxu0 %v2770
        %v2838 = vpop.f32.mrf.mxu0
        %v2839 = vadd.f32 0.0, %v2838
        %v2840 = vpop.f32.mrf.mxu0
        %v2841 = vadd.f32 0.0, %v2840
        %2842 = vmatmul.bf16.gmra.mxu0 %v2773
        %v2843 = vpop.f32.mrf.mxu0
        %v2844 = vadd.f32 0.0, %v2843
        %v2845 = vpop.f32.mrf.mxu0
        %v2846 = vadd.f32 0.0, %v2845
        %2847 = vmatmul.bf16.gmra.mxu0 %v2776
        %v2848 = vpop.f32.mrf.mxu0
        %v2849 = vadd.f32 0.0, %v2848
        %v2850 = vpop.f32.mrf.mxu0
        %v2851 = vadd.f32 0.0, %v2850
        %2852 = vmatmul.bf16.gmra.mxu0 %v2779
        %v2853 = vpop.f32.mrf.mxu0
        %v2854 = vadd.f32 0.0, %v2853
        %v2855 = vpop.f32.mrf.mxu0
        %v2856 = vadd.f32 0.0, %v2855
        %2857 = vmatmul.bf16.gmra.mxu0 %v2782
        %v2858 = vpop.f32.mrf.mxu0
        %v2859 = vadd.f32 0.0, %v2858
        %v2860 = vpop.f32.mrf.mxu0
        %v2861 = vadd.f32 0.0, %v2860
        %2862 = vmatmul.bf16.gmra.mxu0 %v2785
        %v2863 = vpop.f32.mrf.mxu0
        %v2864 = vadd.f32 0.0, %v2863
        %v2865 = vpop.f32.mrf.mxu0
        %v2866 = vadd.f32 0.0, %v2865
        %2867 = vmatmul.bf16.gmra.mxu0 %v2788
        %v2868 = vpop.f32.mrf.mxu0
        %v2869 = vadd.f32 0.0, %v2868
        %v2870 = vpop.f32.mrf.mxu0
        %v2871 = vadd.f32 0.0, %v2870
        %2872 = vmatmul.bf16.gmra.mxu0 %v2791
        %v2873 = vpop.f32.mrf.mxu0
        %v2874 = vadd.f32 0.0, %v2873
        %v2875 = vpop.f32.mrf.mxu0
        %v2876 = vadd.f32 0.0, %v2875
        %2877 = vmatmul.bf16.gmra.mxu0 %v2794
        %v2878 = vpop.f32.mrf.mxu0
        %v2879 = vadd.f32 0.0, %v2878
        %v2880 = vpop.f32.mrf.mxu0
        %v2881 = vadd.f32 0.0, %v2880
        %2882 = vmatmul.bf16.gmra.mxu0 %v2797
        %v2883 = vpop.f32.mrf.mxu0
        %v2884 = vadd.f32 0.0, %v2883
        %v2885 = vpop.f32.mrf.mxu0
        %v2886 = vadd.f32 0.0, %v2885
        %2887 = vmatmul.bf16.gmra.mxu0 %v2800
        %v2888 = vpop.f32.mrf.mxu0
        %v2889 = vadd.f32 0.0, %v2888
        %v2890 = vpop.f32.mrf.mxu0
        %v2891 = vadd.f32 0.0, %v2890
        %2892 = vmatmul.bf16.gmra.mxu0 %v2803
        %v2893 = vpop.f32.mrf.mxu0
        %v2894 = vadd.f32 0.0, %v2893
        %v2895 = vpop.f32.mrf.mxu0
        %v2896 = vadd.f32 0.0, %v2895
        %2897 = vmatmul.bf16.gmra.mxu0 %v2806
        %v2898 = vpop.f32.mrf.mxu0
        %v2899 = vadd.f32 0.0, %v2898
        %v2900 = vpop.f32.mrf.mxu0
        %v2901 = vadd.f32 0.0, %v2900
        %2902 = vdwg.mxu0
        %2903 = vmatpush.bf16.msra.mxu0 0
        %2904 = vmatpush.bf16.msra.mxu0 0
        %2905 = vmatpush.bf16.msra.mxu0 0
        %2906 = vmatpush.bf16.msra.mxu0 0
        %2907 = vmatpush.bf16.msra.mxu0 0
        %2908 = vmatpush.bf16.msra.mxu0 0
        %2909 = vmatpush.bf16.msra.mxu0 0
        %2910 = vmatpush.bf16.msra.mxu0 %v2812
        %2911 = vmatmul.bf16.gmra.mxu0 %v2761
        %v2912 = vpop.f32.mrf.mxu0
        %v2913 = vadd.f32 0.0, %v2912
        %v2914 = vpop.f32.mrf.mxu0
        %v2915 = vadd.f32 0.0, %v2914
        %2916 = vmatmul.bf16.gmra.mxu0 %v2764
        %v2917 = vpop.f32.mrf.mxu0
        %v2918 = vadd.f32 0.0, %v2917
        %v2919 = vpop.f32.mrf.mxu0
        %v2920 = vadd.f32 0.0, %v2919
        %2921 = vmatmul.bf16.gmra.mxu0 %v2767
        %v2922 = vpop.f32.mrf.mxu0
        %v2923 = vadd.f32 0.0, %v2922
        %v2924 = vpop.f32.mrf.mxu0
        %v2925 = vadd.f32 0.0, %v2924
        %2926 = vmatmul.bf16.gmra.mxu0 %v2770
        %v2927 = vpop.f32.mrf.mxu0
        %v2928 = vadd.f32 0.0, %v2927
        %v2929 = vpop.f32.mrf.mxu0
        %v2930 = vadd.f32 0.0, %v2929
        %2931 = vmatmul.bf16.gmra.mxu0 %v2773
        %v2932 = vpop.f32.mrf.mxu0
        %v2933 = vadd.f32 0.0, %v2932
        %v2934 = vpop.f32.mrf.mxu0
        %v2935 = vadd.f32 0.0, %v2934
        %2936 = vmatmul.bf16.gmra.mxu0 %v2776
        %v2937 = vpop.f32.mrf.mxu0
        %v2938 = vadd.f32 0.0, %v2937
        %v2939 = vpop.f32.mrf.mxu0
        %v2940 = vadd.f32 0.0, %v2939
        %2941 = vmatmul.bf16.gmra.mxu0 %v2779
        %v2942 = vpop.f32.mrf.mxu0
        %v2943 = vadd.f32 0.0, %v2942
        %v2944 = vpop.f32.mrf.mxu0
        %v2945 = vadd.f32 0.0, %v2944
        %2946 = vmatmul.bf16.gmra.mxu0 %v2782
        %v2947 = vpop.f32.mrf.mxu0
        %v2948 = vadd.f32 0.0, %v2947
        %v2949 = vpop.f32.mrf.mxu0
        %v2950 = vadd.f32 0.0, %v2949
        %2951 = vmatmul.bf16.gmra.mxu0 %v2785
        %v2952 = vpop.f32.mrf.mxu0
        %v2953 = vadd.f32 0.0, %v2952
        %v2954 = vpop.f32.mrf.mxu0
        %v2955 = vadd.f32 0.0, %v2954
        %2956 = vmatmul.bf16.gmra.mxu0 %v2788
        %v2957 = vpop.f32.mrf.mxu0
        %v2958 = vadd.f32 0.0, %v2957
        %v2959 = vpop.f32.mrf.mxu0
        %v2960 = vadd.f32 0.0, %v2959
        %2961 = vmatmul.bf16.gmra.mxu0 %v2791
        %v2962 = vpop.f32.mrf.mxu0
        %v2963 = vadd.f32 0.0, %v2962
        %v2964 = vpop.f32.mrf.mxu0
        %v2965 = vadd.f32 0.0, %v2964
        %2966 = vmatmul.bf16.gmra.mxu0 %v2794
        %v2967 = vpop.f32.mrf.mxu0
        %v2968 = vadd.f32 0.0, %v2967
        %v2969 = vpop.f32.mrf.mxu0
        %v2970 = vadd.f32 0.0, %v2969
        %2971 = vmatmul.bf16.gmra.mxu0 %v2797
        %v2972 = vpop.f32.mrf.mxu0
        %v2973 = vadd.f32 0.0, %v2972
        %v2974 = vpop.f32.mrf.mxu0
        %v2975 = vadd.f32 0.0, %v2974
        %2976 = vmatmul.bf16.gmra.mxu0 %v2800
        %v2977 = vpop.f32.mrf.mxu0
        %v2978 = vadd.f32 0.0, %v2977
        %v2979 = vpop.f32.mrf.mxu0
        %v2980 = vadd.f32 0.0, %v2979
        %2981 = vmatmul.bf16.gmra.mxu0 %v2803
        %v2982 = vpop.f32.mrf.mxu0
        %v2983 = vadd.f32 0.0, %v2982
        %v2984 = vpop.f32.mrf.mxu0
        %v2985 = vadd.f32 0.0, %v2984
        %2986 = vmatmul.bf16.gmra.mxu0 %v2806
        %v2987 = vpop.f32.mrf.mxu0
        %v2988 = vadd.f32 0.0, %v2987
        %v2989 = vpop.f32.mrf.mxu0
        %v2990 = vadd.f32 0.0, %v2989
        %2991 = vdwg.mxu0
        %v2992 = vmax.f32 %v2824, %v2913
        %2993 = vmax.xlane.f32.xlu0 %v2992
        %v2994 = vpop.xlane.xlu0 %2993
        %v2995 = vmax.f32 %v2826, %v2915
        %2996 = vmax.xlane.f32.xlu0 %v2995
        %v2997 = vpop.xlane.xlu0 %2996
        %v2998 = vmax.f32 %v2829, %v2918
        %2999 = vmax.xlane.f32.xlu0 %v2998
        %v3000 = vpop.xlane.xlu0 %2999
        %v3001 = vmax.f32 %v2831, %v2920
        %3002 = vmax.xlane.f32.xlu0 %v3001
        %v3003 = vpop.xlane.xlu0 %3002
        %v3004 = vmax.f32 %v2834, %v2923
        %3005 = vmax.xlane.f32.xlu0 %v3004
        %v3006 = vpop.xlane.xlu0 %3005
        %v3007 = vmax.f32 %v2836, %v2925
        %3008 = vmax.xlane.f32.xlu0 %v3007
        %v3009 = vpop.xlane.xlu0 %3008
        %v3010 = vmax.f32 %v2839, %v2928
        %3011 = vmax.xlane.f32.xlu0 %v3010
        %v3012 = vpop.xlane.xlu0 %3011
        %v3013 = vmax.f32 %v2841, %v2930
        %3014 = vmax.xlane.f32.xlu0 %v3013
        %v3015 = vpop.xlane.xlu0 %3014
        %v3016 = vmax.f32 %v2844, %v2933
        %3017 = vmax.xlane.f32.xlu0 %v3016
        %v3018 = vpop.xlane.xlu0 %3017
        %v3019 = vmax.f32 %v2846, %v2935
        %3020 = vmax.xlane.f32.xlu0 %v3019
        %v3021 = vpop.xlane.xlu0 %3020
        %v3022 = vmax.f32 %v2849, %v2938
        %3023 = vmax.xlane.f32.xlu0 %v3022
        %v3024 = vpop.xlane.xlu0 %3023
        %v3025 = vmax.f32 %v2851, %v2940
        %3026 = vmax.xlane.f32.xlu0 %v3025
        %v3027 = vpop.xlane.xlu0 %3026
        %v3028 = vmax.f32 %v2854, %v2943
        %3029 = vmax.xlane.f32.xlu0 %v3028
        %v3030 = vpop.xlane.xlu0 %3029
        %v3031 = vmax.f32 %v2856, %v2945
        %3032 = vmax.xlane.f32.xlu0 %v3031
        %v3033 = vpop.xlane.xlu0 %3032
        %v3034 = vmax.f32 %v2859, %v2948
        %3035 = vmax.xlane.f32.xlu0 %v3034
        %v3036 = vpop.xlane.xlu0 %3035
        %v3037 = vmax.f32 %v2861, %v2950
        %3038 = vmax.xlane.f32.xlu0 %v3037
        %v3039 = vpop.xlane.xlu0 %3038
        %v3040 = vmax.f32 %v2864, %v2953
        %3041 = vmax.xlane.f32.xlu0 %v3040
        %v3042 = vpop.xlane.xlu0 %3041
        %v3043 = vmax.f32 %v2866, %v2955
        %3044 = vmax.xlane.f32.xlu0 %v3043
        %v3045 = vpop.xlane.xlu0 %3044
        %v3046 = vmax.f32 %v2869, %v2958
        %3047 = vmax.xlane.f32.xlu0 %v3046
        %v3048 = vpop.xlane.xlu0 %3047
        %v3049 = vmax.f32 %v2871, %v2960
        %3050 = vmax.xlane.f32.xlu0 %v3049
        %v3051 = vpop.xlane.xlu0 %3050
        %v3052 = vmax.f32 %v2874, %v2963
        %3053 = vmax.xlane.f32.xlu0 %v3052
        %v3054 = vpop.xlane.xlu0 %3053
        %v3055 = vmax.f32 %v2876, %v2965
        %3056 = vmax.xlane.f32.xlu0 %v3055
        %v3057 = vpop.xlane.xlu0 %3056
        %v3058 = vmax.f32 %v2879, %v2968
        %3059 = vmax.xlane.f32.xlu0 %v3058
        %v3060 = vpop.xlane.xlu0 %3059
        %v3061 = vmax.f32 %v2881, %v2970
        %3062 = vmax.xlane.f32.xlu0 %v3061
        %v3063 = vpop.xlane.xlu0 %3062
        %v3064 = vmax.f32 %v2884, %v2973
        %3065 = vmax.xlane.f32.xlu0 %v3064
        %v3066 = vpop.xlane.xlu0 %3065
        %v3067 = vmax.f32 %v2886, %v2975
        %3068 = vmax.xlane.f32.xlu0 %v3067
        %v3069 = vpop.xlane.xlu0 %3068
        %v3070 = vmax.f32 %v2889, %v2978
        %3071 = vmax.xlane.f32.xlu0 %v3070
        %v3072 = vpop.xlane.xlu0 %3071
        %v3073 = vmax.f32 %v2891, %v2980
        %3074 = vmax.xlane.f32.xlu0 %v3073
        %v3075 = vpop.xlane.xlu0 %3074
        %v3076 = vmax.f32 %v2894, %v2983
        %3077 = vmax.xlane.f32.xlu0 %v3076
        %v3078 = vpop.xlane.xlu0 %3077
        %v3079 = vmax.f32 %v2896, %v2985
        %3080 = vmax.xlane.f32.xlu0 %v3079
        %v3081 = vpop.xlane.xlu0 %3080
        %v3082 = vmax.f32 %v2899, %v2988
        %3083 = vmax.xlane.f32.xlu0 %v3082
        %v3084 = vpop.xlane.xlu0 %3083
        %v3085 = vmax.f32 %v2901, %v2990
        %3086 = vmax.xlane.f32.xlu0 %v3085
        %v3087 = vpop.xlane.xlu0 %3086
        %v3088 = vsub.f32 %v2824, %v2994
        %v3089 = vsub.f32 %v2913, %v2994
        %v3090 = vsub.f32 %v2826, %v2997
        %v3091 = vsub.f32 %v2915, %v2997
        %v3092 = vsub.f32 %v2829, %v3000
        %v3093 = vsub.f32 %v2918, %v3000
        %v3094 = vsub.f32 %v2831, %v3003
        %v3095 = vsub.f32 %v2920, %v3003
        %v3096 = vsub.f32 %v2834, %v3006
        %v3097 = vsub.f32 %v2923, %v3006
        %v3098 = vsub.f32 %v2836, %v3009
        %v3099 = vsub.f32 %v2925, %v3009
        %v3100 = vsub.f32 %v2839, %v3012
        %v3101 = vsub.f32 %v2928, %v3012
        %v3102 = vsub.f32 %v2841, %v3015
        %v3103 = vsub.f32 %v2930, %v3015
        %v3104 = vsub.f32 %v2844, %v3018
        %v3105 = vsub.f32 %v2933, %v3018
        %v3106 = vsub.f32 %v2846, %v3021
        %v3107 = vsub.f32 %v2935, %v3021
        %v3108 = vsub.f32 %v2849, %v3024
        %v3109 = vsub.f32 %v2938, %v3024
        %v3110 = vsub.f32 %v2851, %v3027
        %v3111 = vsub.f32 %v2940, %v3027
        %v3112 = vsub.f32 %v2854, %v3030
        %v3113 = vsub.f32 %v2943, %v3030
        %v3114 = vsub.f32 %v2856, %v3033
        %v3115 = vsub.f32 %v2945, %v3033
        %v3116 = vsub.f32 %v2859, %v3036
        %v3117 = vsub.f32 %v2948, %v3036
        %v3118 = vsub.f32 %v2861, %v3039
        %v3119 = vsub.f32 %v2950, %v3039
        %v3120 = vsub.f32 %v2864, %v3042
        %v3121 = vsub.f32 %v2953, %v3042
        %v3122 = vsub.f32 %v2866, %v3045
        %v3123 = vsub.f32 %v2955, %v3045
        %v3124 = vsub.f32 %v2869, %v3048
        %v3125 = vsub.f32 %v2958, %v3048
        %v3126 = vsub.f32 %v2871, %v3051
        %v3127 = vsub.f32 %v2960, %v3051
        %v3128 = vsub.f32 %v2874, %v3054
        %v3129 = vsub.f32 %v2963, %v3054
        %v3130 = vsub.f32 %v2876, %v3057
        %v3131 = vsub.f32 %v2965, %v3057
        %v3132 = vsub.f32 %v2879, %v3060
        %v3133 = vsub.f32 %v2968, %v3060
        %v3134 = vsub.f32 %v2881, %v3063
        %v3135 = vsub.f32 %v2970, %v3063
        %v3136 = vsub.f32 %v2884, %v3066
        %v3137 = vsub.f32 %v2973, %v3066
        %v3138 = vsub.f32 %v2886, %v3069
        %v3139 = vsub.f32 %v2975, %v3069
        %v3140 = vsub.f32 %v2889, %v3072
        %v3141 = vsub.f32 %v2978, %v3072
        %v3142 = vsub.f32 %v2891, %v3075
        %v3143 = vsub.f32 %v2980, %v3075
        %v3144 = vsub.f32 %v2894, %v3078
        %v3145 = vsub.f32 %v2983, %v3078
        %v3146 = vsub.f32 %v2896, %v3081
        %v3147 = vsub.f32 %v2985, %v3081
        %v3148 = vsub.f32 %v2899, %v3084
        %v3149 = vsub.f32 %v2988, %v3084
        %v3150 = vsub.f32 %v2901, %v3087
        %v3151 = vsub.f32 %v2990, %v3087
        %v3152 = vmul.f32 %v3088, 1.442695
        %v3153 = vpow.pop %v3152
        %v3154 = vmul.f32 %v3089, 1.442695
        %v3155 = vpow.pop %v3154
        %v3156 = vmul.f32 %v3090, 1.442695
        %v3157 = vpow.pop %v3156
        %v3158 = vmul.f32 %v3091, 1.442695
        %v3159 = vpow.pop %v3158
        %v3160 = vmul.f32 %v3092, 1.442695
        %v3161 = vpow.pop %v3160
        %v3162 = vmul.f32 %v3093, 1.442695
        %v3163 = vpow.pop %v3162
        %v3164 = vmul.f32 %v3094, 1.442695
        %v3165 = vpow.pop %v3164
        %v3166 = vmul.f32 %v3095, 1.442695
        %v3167 = vpow.pop %v3166
        %v3168 = vmul.f32 %v3096, 1.442695
        %v3169 = vpow.pop %v3168
        %v3170 = vmul.f32 %v3097, 1.442695
        %v3171 = vpow.pop %v3170
        %v3172 = vmul.f32 %v3098, 1.442695
        %v3173 = vpow.pop %v3172
        %v3174 = vmul.f32 %v3099, 1.442695
        %v3175 = vpow.pop %v3174
        %v3176 = vmul.f32 %v3100, 1.442695
        %v3177 = vpow.pop %v3176
        %v3178 = vmul.f32 %v3101, 1.442695
        %v3179 = vpow.pop %v3178
        %v3180 = vmul.f32 %v3102, 1.442695
        %v3181 = vpow.pop %v3180
        %v3182 = vmul.f32 %v3103, 1.442695
        %v3183 = vpow.pop %v3182
        %v3184 = vmul.f32 %v3104, 1.442695
        %v3185 = vpow.pop %v3184
        %v3186 = vmul.f32 %v3105, 1.442695
        %v3187 = vpow.pop %v3186
        %v3188 = vmul.f32 %v3106, 1.442695
        %v3189 = vpow.pop %v3188
        %v3190 = vmul.f32 %v3107, 1.442695
        %v3191 = vpow.pop %v3190
        %v3192 = vmul.f32 %v3108, 1.442695
        %v3193 = vpow.pop %v3192
        %v3194 = vmul.f32 %v3109, 1.442695
        %v3195 = vpow.pop %v3194
        %v3196 = vmul.f32 %v3110, 1.442695
        %v3197 = vpow.pop %v3196
        %v3198 = vmul.f32 %v3111, 1.442695
        %v3199 = vpow.pop %v3198
        %v3200 = vmul.f32 %v3112, 1.442695
        %v3201 = vpow.pop %v3200
        %v3202 = vmul.f32 %v3113, 1.442695
        %v3203 = vpow.pop %v3202
        %v3204 = vmul.f32 %v3114, 1.442695
        %v3205 = vpow.pop %v3204
        %v3206 = vmul.f32 %v3115, 1.442695
        %v3207 = vpow.pop %v3206
        %v3208 = vmul.f32 %v3116, 1.442695
        %v3209 = vpow.pop %v3208
        %v3210 = vmul.f32 %v3117, 1.442695
        %v3211 = vpow.pop %v3210
        %v3212 = vmul.f32 %v3118, 1.442695
        %v3213 = vpow.pop %v3212
        %v3214 = vmul.f32 %v3119, 1.442695
        %v3215 = vpow.pop %v3214
        %v3216 = vmul.f32 %v3120, 1.442695
        %v3217 = vpow.pop %v3216
        %v3218 = vmul.f32 %v3121, 1.442695
        %v3219 = vpow.pop %v3218
        %v3220 = vmul.f32 %v3122, 1.442695
        %v3221 = vpow.pop %v3220
        %v3222 = vmul.f32 %v3123, 1.442695
        %v3223 = vpow.pop %v3222
        %v3224 = vmul.f32 %v3124, 1.442695
        %v3225 = vpow.pop %v3224
        %v3226 = vmul.f32 %v3125, 1.442695
        %v3227 = vpow.pop %v3226
        %v3228 = vmul.f32 %v3126, 1.442695
        %v3229 = vpow.pop %v3228
        %v3230 = vmul.f32 %v3127, 1.442695
        %v3231 = vpow.pop %v3230
        %v3232 = vmul.f32 %v3128, 1.442695
        %v3233 = vpow.pop %v3232
        %v3234 = vmul.f32 %v3129, 1.442695
        %v3235 = vpow.pop %v3234
        %v3236 = vmul.f32 %v3130, 1.442695
        %v3237 = vpow.pop %v3236
        %v3238 = vmul.f32 %v3131, 1.442695
        %v3239 = vpow.pop %v3238
        %v3240 = vmul.f32 %v3132, 1.442695
        %v3241 = vpow.pop %v3240
        %v3242 = vmul.f32 %v3133, 1.442695
        %v3243 = vpow.pop %v3242
        %v3244 = vmul.f32 %v3134, 1.442695
        %v3245 = vpow.pop %v3244
        %v3246 = vmul.f32 %v3135, 1.442695
        %v3247 = vpow.pop %v3246
        %v3248 = vmul.f32 %v3136, 1.442695
        %v3249 = vpow.pop %v3248
        %v3250 = vmul.f32 %v3137, 1.442695
        %v3251 = vpow.pop %v3250
        %v3252 = vmul.f32 %v3138, 1.442695
        %v3253 = vpow.pop %v3252
        %v3254 = vmul.f32 %v3139, 1.442695
        %v3255 = vpow.pop %v3254
        %v3256 = vmul.f32 %v3140, 1.442695
        %v3257 = vpow.pop %v3256
        %v3258 = vmul.f32 %v3141, 1.442695
        %v3259 = vpow.pop %v3258
        %v3260 = vmul.f32 %v3142, 1.442695
        %v3261 = vpow.pop %v3260
        %v3262 = vmul.f32 %v3143, 1.442695
        %v3263 = vpow.pop %v3262
        %v3264 = vmul.f32 %v3144, 1.442695
        %v3265 = vpow.pop %v3264
        %v3266 = vmul.f32 %v3145, 1.442695
        %v3267 = vpow.pop %v3266
        %v3268 = vmul.f32 %v3146, 1.442695
        %v3269 = vpow.pop %v3268
        %v3270 = vmul.f32 %v3147, 1.442695
        %v3271 = vpow.pop %v3270
        %v3272 = vmul.f32 %v3148, 1.442695
        %v3273 = vpow.pop %v3272
        %v3274 = vmul.f32 %v3149, 1.442695
        %v3275 = vpow.pop %v3274
        %v3276 = vmul.f32 %v3150, 1.442695
        %v3277 = vpow.pop %v3276
        %v3278 = vmul.f32 %v3151, 1.442695
        %v3279 = vpow.pop %v3278
        %v3280 = vadd.f32 %v3153, %v3155
        %3281 = vadd.xlane.f32.xlu0 %v3280
        %v3282 = vpop.xlane.xlu0 %3281
        %v3283 = vadd.f32 %v3157, %v3159
        %3284 = vadd.xlane.f32.xlu0 %v3283
        %v3285 = vpop.xlane.xlu0 %3284
        %v3286 = vadd.f32 %v3161, %v3163
        %3287 = vadd.xlane.f32.xlu0 %v3286
        %v3288 = vpop.xlane.xlu0 %3287
        %v3289 = vadd.f32 %v3165, %v3167
        %3290 = vadd.xlane.f32.xlu0 %v3289
        %v3291 = vpop.xlane.xlu0 %3290
        %v3292 = vadd.f32 %v3169, %v3171
        %3293 = vadd.xlane.f32.xlu0 %v3292
        %v3294 = vpop.xlane.xlu0 %3293
        %v3295 = vadd.f32 %v3173, %v3175
        %3296 = vadd.xlane.f32.xlu0 %v3295
        %v3297 = vpop.xlane.xlu0 %3296
        %v3298 = vadd.f32 %v3177, %v3179
        %3299 = vadd.xlane.f32.xlu0 %v3298
        %v3300 = vpop.xlane.xlu0 %3299
        %v3301 = vadd.f32 %v3181, %v3183
        %3302 = vadd.xlane.f32.xlu0 %v3301
        %v3303 = vpop.xlane.xlu0 %3302
        %v3304 = vadd.f32 %v3185, %v3187
        %3305 = vadd.xlane.f32.xlu0 %v3304
        %v3306 = vpop.xlane.xlu0 %3305
        %v3307 = vadd.f32 %v3189, %v3191
        %3308 = vadd.xlane.f32.xlu0 %v3307
        %v3309 = vpop.xlane.xlu0 %3308
        %v3310 = vadd.f32 %v3193, %v3195
        %3311 = vadd.xlane.f32.xlu0 %v3310
        %v3312 = vpop.xlane.xlu0 %3311
        %v3313 = vadd.f32 %v3197, %v3199
        %3314 = vadd.xlane.f32.xlu0 %v3313
        %v3315 = vpop.xlane.xlu0 %3314
        %v3316 = vadd.f32 %v3201, %v3203
        %3317 = vadd.xlane.f32.xlu0 %v3316
        %v3318 = vpop.xlane.xlu0 %3317
        %v3319 = vadd.f32 %v3205, %v3207
        %3320 = vadd.xlane.f32.xlu0 %v3319
        %v3321 = vpop.xlane.xlu0 %3320
        %v3322 = vadd.f32 %v3209, %v3211
        %3323 = vadd.xlane.f32.xlu0 %v3322
        %v3324 = vpop.xlane.xlu0 %3323
        %v3325 = vadd.f32 %v3213, %v3215
        %3326 = vadd.xlane.f32.xlu0 %v3325
        %v3327 = vpop.xlane.xlu0 %3326
        %v3328 = vadd.f32 %v3217, %v3219
        %3329 = vadd.xlane.f32.xlu0 %v3328
        %v3330 = vpop.xlane.xlu0 %3329
        %v3331 = vadd.f32 %v3221, %v3223
        %3332 = vadd.xlane.f32.xlu0 %v3331
        %v3333 = vpop.xlane.xlu0 %3332
        %v3334 = vadd.f32 %v3225, %v3227
        %3335 = vadd.xlane.f32.xlu0 %v3334
        %v3336 = vpop.xlane.xlu0 %3335
        %v3337 = vadd.f32 %v3229, %v3231
        %3338 = vadd.xlane.f32.xlu0 %v3337
        %v3339 = vpop.xlane.xlu0 %3338
        %v3340 = vadd.f32 %v3233, %v3235
        %3341 = vadd.xlane.f32.xlu0 %v3340
        %v3342 = vpop.xlane.xlu0 %3341
        %v3343 = vadd.f32 %v3237, %v3239
        %3344 = vadd.xlane.f32.xlu0 %v3343
        %v3345 = vpop.xlane.xlu0 %3344
        %v3346 = vadd.f32 %v3241, %v3243
        %3347 = vadd.xlane.f32.xlu0 %v3346
        %v3348 = vpop.xlane.xlu0 %3347
        %v3349 = vadd.f32 %v3245, %v3247
        %3350 = vadd.xlane.f32.xlu0 %v3349
        %v3351 = vpop.xlane.xlu0 %3350
        %v3352 = vadd.f32 %v3249, %v3251
        %3353 = vadd.xlane.f32.xlu0 %v3352
        %v3354 = vpop.xlane.xlu0 %3353
        %v3355 = vadd.f32 %v3253, %v3255
        %3356 = vadd.xlane.f32.xlu0 %v3355
        %v3357 = vpop.xlane.xlu0 %3356
        %v3358 = vadd.f32 %v3257, %v3259
        %3359 = vadd.xlane.f32.xlu0 %v3358
        %v3360 = vpop.xlane.xlu0 %3359
        %v3361 = vadd.f32 %v3261, %v3263
        %3362 = vadd.xlane.f32.xlu0 %v3361
        %v3363 = vpop.xlane.xlu0 %3362
        %v3364 = vadd.f32 %v3265, %v3267
        %3365 = vadd.xlane.f32.xlu0 %v3364
        %v3366 = vpop.xlane.xlu0 %3365
        %v3367 = vadd.f32 %v3269, %v3271
        %3368 = vadd.xlane.f32.xlu0 %v3367
        %v3369 = vpop.xlane.xlu0 %3368
        %v3370 = vadd.f32 %v3273, %v3275
        %3371 = vadd.xlane.f32.xlu0 %v3370
        %v3372 = vpop.xlane.xlu0 %3371
        %v3373 = vadd.f32 %v3277, %v3279
        %3374 = vadd.xlane.f32.xlu0 %v3373
        %v3375 = vpop.xlane.xlu0 %3374
        %v3376 = vpack.c.bf16 %v3157, %v3153
        %v3377 = vpack.c.bf16 %v3159, %v3155
        %v3378 = vpack.c.bf16 %v3165, %v3161
        %v3379 = vpack.c.bf16 %v3167, %v3163
        %v3380 = vpack.c.bf16 %v3173, %v3169
        %v3381 = vpack.c.bf16 %v3175, %v3171
        %v3382 = vpack.c.bf16 %v3181, %v3177
        %v3383 = vpack.c.bf16 %v3183, %v3179
        %v3384 = vpack.c.bf16 %v3189, %v3185
        %v3385 = vpack.c.bf16 %v3191, %v3187
        %v3386 = vpack.c.bf16 %v3197, %v3193
        %v3387 = vpack.c.bf16 %v3199, %v3195
        %v3388 = vpack.c.bf16 %v3205, %v3201
        %v3389 = vpack.c.bf16 %v3207, %v3203
        %v3390 = vpack.c.bf16 %v3213, %v3209
        %v3391 = vpack.c.bf16 %v3215, %v3211
        %v3392 = vpack.c.bf16 %v3221, %v3217
        %v3393 = vpack.c.bf16 %v3223, %v3219
        %v3394 = vpack.c.bf16 %v3229, %v3225
        %v3395 = vpack.c.bf16 %v3231, %v3227
        %v3396 = vpack.c.bf16 %v3237, %v3233
        %v3397 = vpack.c.bf16 %v3239, %v3235
        %v3398 = vpack.c.bf16 %v3245, %v3241
        %v3399 = vpack.c.bf16 %v3247, %v3243
        %v3400 = vpack.c.bf16 %v3253, %v3249
        %v3401 = vpack.c.bf16 %v3255, %v3251
        %v3402 = vpack.c.bf16 %v3261, %v3257
        %v3403 = vpack.c.bf16 %v3263, %v3259
        %v3404 = vpack.c.bf16 %v3269, %v3265
        %v3405 = vpack.c.bf16 %v3271, %v3267
        %v3406 = vpack.c.bf16 %v3277, %v3273
        %v3407 = vpack.c.bf16 %v3279, %v3275
        %v3408 = vpack.c.bf16 %v447, %v445
        %v3409 = vpack.c.bf16 %v452, %v450
        %v3410 = vpack.c.bf16 %v457, %v455
        %v3411 = vpack.c.bf16 %v462, %v460
        %v3412 = vpack.c.bf16 %v467, %v465
        %v3413 = vpack.c.bf16 %v472, %v470
        %v3414 = vpack.c.bf16 %v477, %v475
        %v3415 = vpack.c.bf16 %v482, %v480
        %v3416 = vpack.c.bf16 %v487, %v485
        %v3417 = vpack.c.bf16 %v492, %v490
        %v3418 = vpack.c.bf16 %v497, %v495
        %v3419 = vpack.c.bf16 %v502, %v500
        %v3420 = vpack.c.bf16 %v507, %v505
        %v3421 = vpack.c.bf16 %v512, %v510
        %v3422 = vpack.c.bf16 %v517, %v515
        %v3423 = vpack.c.bf16 %v522, %v520
        %3424 = vmatpush.bf16.msra.mxu0 %v3415
        %3425 = vmatpush.bf16.msra.mxu0 %v3414
        %3426 = vmatpush.bf16.msra.mxu0 %v3413
        %3427 = vmatpush.bf16.msra.mxu0 %v3412
        %3428 = vmatpush.bf16.msra.mxu0 %v3411
        %3429 = vmatpush.bf16.msra.mxu0 %v3410
        %3430 = vmatpush.bf16.msra.mxu0 %v3409
        %3431 = vmatpush.bf16.msra.mxu0 %v3408
        %3432 = vmatmul.bf16.gmra.mxu0 %v3376
        %v3433 = vpop.f32.mrf.mxu0
        %v3434 = vadd.f32 0.0, %v3433
        %v3435 = vpop.f32.mrf.mxu0
        %v3436 = vadd.f32 0.0, %v3435
        %3437 = vmatmul.bf16.gmra.mxu0 %v3378
        %v3438 = vpop.f32.mrf.mxu0
        %v3439 = vadd.f32 0.0, %v3438
        %v3440 = vpop.f32.mrf.mxu0
        %v3441 = vadd.f32 0.0, %v3440
        %3442 = vmatmul.bf16.gmra.mxu0 %v3380
        %v3443 = vpop.f32.mrf.mxu0
        %v3444 = vadd.f32 0.0, %v3443
        %v3445 = vpop.f32.mrf.mxu0
        %v3446 = vadd.f32 0.0, %v3445
        %3447 = vmatmul.bf16.gmra.mxu0 %v3382
        %v3448 = vpop.f32.mrf.mxu0
        %v3449 = vadd.f32 0.0, %v3448
        %v3450 = vpop.f32.mrf.mxu0
        %v3451 = vadd.f32 0.0, %v3450
        %3452 = vmatmul.bf16.gmra.mxu0 %v3384
        %v3453 = vpop.f32.mrf.mxu0
        %v3454 = vadd.f32 0.0, %v3453
        %v3455 = vpop.f32.mrf.mxu0
        %v3456 = vadd.f32 0.0, %v3455
        %3457 = vmatmul.bf16.gmra.mxu0 %v3386
        %v3458 = vpop.f32.mrf.mxu0
        %v3459 = vadd.f32 0.0, %v3458
        %v3460 = vpop.f32.mrf.mxu0
        %v3461 = vadd.f32 0.0, %v3460
        %3462 = vmatmul.bf16.gmra.mxu0 %v3388
        %v3463 = vpop.f32.mrf.mxu0
        %v3464 = vadd.f32 0.0, %v3463
        %v3465 = vpop.f32.mrf.mxu0
        %v3466 = vadd.f32 0.0, %v3465
        %3467 = vmatmul.bf16.gmra.mxu0 %v3390
        %v3468 = vpop.f32.mrf.mxu0
        %v3469 = vadd.f32 0.0, %v3468
        %v3470 = vpop.f32.mrf.mxu0
        %v3471 = vadd.f32 0.0, %v3470
        %3472 = vmatmul.bf16.gmra.mxu0 %v3392
        %v3473 = vpop.f32.mrf.mxu0
        %v3474 = vadd.f32 0.0, %v3473
        %v3475 = vpop.f32.mrf.mxu0
        %v3476 = vadd.f32 0.0, %v3475
        %3477 = vmatmul.bf16.gmra.mxu0 %v3394
        %v3478 = vpop.f32.mrf.mxu0
        %v3479 = vadd.f32 0.0, %v3478
        %v3480 = vpop.f32.mrf.mxu0
        %v3481 = vadd.f32 0.0, %v3480
        %3482 = vmatmul.bf16.gmra.mxu0 %v3396
        %v3483 = vpop.f32.mrf.mxu0
        %v3484 = vadd.f32 0.0, %v3483
        %v3485 = vpop.f32.mrf.mxu0
        %v3486 = vadd.f32 0.0, %v3485
        %3487 = vmatmul.bf16.gmra.mxu0 %v3398
        %v3488 = vpop.f32.mrf.mxu0
        %v3489 = vadd.f32 0.0, %v3488
        %v3490 = vpop.f32.mrf.mxu0
        %v3491 = vadd.f32 0.0, %v3490
        %3492 = vmatmul.bf16.gmra.mxu0 %v3400
        %v3493 = vpop.f32.mrf.mxu0
        %v3494 = vadd.f32 0.0, %v3493
        %v3495 = vpop.f32.mrf.mxu0
        %v3496 = vadd.f32 0.0, %v3495
        %3497 = vmatmul.bf16.gmra.mxu0 %v3402
        %v3498 = vpop.f32.mrf.mxu0
        %v3499 = vadd.f32 0.0, %v3498
        %v3500 = vpop.f32.mrf.mxu0
        %v3501 = vadd.f32 0.0, %v3500
        %3502 = vmatmul.bf16.gmra.mxu0 %v3404
        %v3503 = vpop.f32.mrf.mxu0
        %v3504 = vadd.f32 0.0, %v3503
        %v3505 = vpop.f32.mrf.mxu0
        %v3506 = vadd.f32 0.0, %v3505
        %3507 = vmatmul.bf16.gmra.mxu0 %v3406
        %v3508 = vpop.f32.mrf.mxu0
        %v3509 = vadd.f32 0.0, %v3508
        %v3510 = vpop.f32.mrf.mxu0
        %v3511 = vadd.f32 0.0, %v3510
        %3512 = vdwg.mxu0
        %3513 = vmatpush.bf16.msra.mxu0 %v3423
        %3514 = vmatpush.bf16.msra.mxu0 %v3422
        %3515 = vmatpush.bf16.msra.mxu0 %v3421
        %3516 = vmatpush.bf16.msra.mxu0 %v3420
        %3517 = vmatpush.bf16.msra.mxu0 %v3419
        %3518 = vmatpush.bf16.msra.mxu0 %v3418
        %3519 = vmatpush.bf16.msra.mxu0 %v3417
        %3520 = vmatpush.bf16.msra.mxu0 %v3416
        %3521 = vmatmul.bf16.gmra.mxu0 %v3377
        %v3522 = vpop.f32.mrf.mxu0
        %v3523 = vadd.f32 %v3434, %v3522
        %v3524 = vpop.f32.mrf.mxu0
        %v3525 = vadd.f32 %v3436, %v3524
        %3526 = vmatmul.bf16.gmra.mxu0 %v3379
        %v3527 = vpop.f32.mrf.mxu0
        %v3528 = vadd.f32 %v3439, %v3527
        %v3529 = vpop.f32.mrf.mxu0
        %v3530 = vadd.f32 %v3441, %v3529
        %3531 = vmatmul.bf16.gmra.mxu0 %v3381
        %v3532 = vpop.f32.mrf.mxu0
        %v3533 = vadd.f32 %v3444, %v3532
        %v3534 = vpop.f32.mrf.mxu0
        %v3535 = vadd.f32 %v3446, %v3534
        %3536 = vmatmul.bf16.gmra.mxu0 %v3383
        %v3537 = vpop.f32.mrf.mxu0
        %v3538 = vadd.f32 %v3449, %v3537
        %v3539 = vpop.f32.mrf.mxu0
        %v3540 = vadd.f32 %v3451, %v3539
        %3541 = vmatmul.bf16.gmra.mxu0 %v3385
        %v3542 = vpop.f32.mrf.mxu0
        %v3543 = vadd.f32 %v3454, %v3542
        %v3544 = vpop.f32.mrf.mxu0
        %v3545 = vadd.f32 %v3456, %v3544
        %3546 = vmatmul.bf16.gmra.mxu0 %v3387
        %v3547 = vpop.f32.mrf.mxu0
        %v3548 = vadd.f32 %v3459, %v3547
        %v3549 = vpop.f32.mrf.mxu0
        %v3550 = vadd.f32 %v3461, %v3549
        %3551 = vmatmul.bf16.gmra.mxu0 %v3389
        %v3552 = vpop.f32.mrf.mxu0
        %v3553 = vadd.f32 %v3464, %v3552
        %v3554 = vpop.f32.mrf.mxu0
        %v3555 = vadd.f32 %v3466, %v3554
        %3556 = vmatmul.bf16.gmra.mxu0 %v3391
        %v3557 = vpop.f32.mrf.mxu0
        %v3558 = vadd.f32 %v3469, %v3557
        %v3559 = vpop.f32.mrf.mxu0
        %v3560 = vadd.f32 %v3471, %v3559
        %3561 = vmatmul.bf16.gmra.mxu0 %v3393
        %v3562 = vpop.f32.mrf.mxu0
        %v3563 = vadd.f32 %v3474, %v3562
        %v3564 = vpop.f32.mrf.mxu0
        %v3565 = vadd.f32 %v3476, %v3564
        %3566 = vmatmul.bf16.gmra.mxu0 %v3395
        %v3567 = vpop.f32.mrf.mxu0
        %v3568 = vadd.f32 %v3479, %v3567
        %v3569 = vpop.f32.mrf.mxu0
        %v3570 = vadd.f32 %v3481, %v3569
        %3571 = vmatmul.bf16.gmra.mxu0 %v3397
        %v3572 = vpop.f32.mrf.mxu0
        %v3573 = vadd.f32 %v3484, %v3572
        %v3574 = vpop.f32.mrf.mxu0
        %v3575 = vadd.f32 %v3486, %v3574
        %3576 = vmatmul.bf16.gmra.mxu0 %v3399
        %v3577 = vpop.f32.mrf.mxu0
        %v3578 = vadd.f32 %v3489, %v3577
        %v3579 = vpop.f32.mrf.mxu0
        %v3580 = vadd.f32 %v3491, %v3579
        %3581 = vmatmul.bf16.gmra.mxu0 %v3401
        %v3582 = vpop.f32.mrf.mxu0
        %v3583 = vadd.f32 %v3494, %v3582
        %v3584 = vpop.f32.mrf.mxu0
        %v3585 = vadd.f32 %v3496, %v3584
        %3586 = vmatmul.bf16.gmra.mxu0 %v3403
        %v3587 = vpop.f32.mrf.mxu0
        %v3588 = vadd.f32 %v3499, %v3587
        %v3589 = vpop.f32.mrf.mxu0
        %v3590 = vadd.f32 %v3501, %v3589
        %3591 = vmatmul.bf16.gmra.mxu0 %v3405
        %v3592 = vpop.f32.mrf.mxu0
        %v3593 = vadd.f32 %v3504, %v3592
        %v3594 = vpop.f32.mrf.mxu0
        %v3595 = vadd.f32 %v3506, %v3594
        %3596 = vmatmul.bf16.gmra.mxu0 %v3407
        %v3597 = vpop.f32.mrf.mxu0
        %v3598 = vadd.f32 %v3509, %v3597
        %v3599 = vpop.f32.mrf.mxu0
        %v3600 = vadd.f32 %v3511, %v3599
        %3601 = vdwg.mxu0
        %v3602 = vrcp.pop %v3282
        %v3603 = vrcp.pop %v3285
        %v3604 = vrcp.pop %v3288
        %v3605 = vrcp.pop %v3291
        %v3606 = vrcp.pop %v3294
        %v3607 = vrcp.pop %v3297
        %v3608 = vrcp.pop %v3300
        %v3609 = vrcp.pop %v3303
        %v3610 = vrcp.pop %v3306
        %v3611 = vrcp.pop %v3309
        %v3612 = vrcp.pop %v3312
        %v3613 = vrcp.pop %v3315
        %v3614 = vrcp.pop %v3318
        %v3615 = vrcp.pop %v3321
        %v3616 = vrcp.pop %v3324
        %v3617 = vrcp.pop %v3327
        %v3618 = vrcp.pop %v3330
        %v3619 = vrcp.pop %v3333
        %v3620 = vrcp.pop %v3336
        %v3621 = vrcp.pop %v3339
        %v3622 = vrcp.pop %v3342
        %v3623 = vrcp.pop %v3345
        %v3624 = vrcp.pop %v3348
        %v3625 = vrcp.pop %v3351
        %v3626 = vrcp.pop %v3354
        %v3627 = vrcp.pop %v3357
        %v3628 = vrcp.pop %v3360
        %v3629 = vrcp.pop %v3363
        %v3630 = vrcp.pop %v3366
        %v3631 = vrcp.pop %v3369
        %v3632 = vrcp.pop %v3372
        %v3633 = vrcp.pop %v3375
        %v3634 = vmul.f32 %v3523, %v3602
        %v3635 = vmul.f32 %v3525, %v3603
        %v3636 = vmul.f32 %v3528, %v3604
        %v3637 = vmul.f32 %v3530, %v3605
        %v3638 = vmul.f32 %v3533, %v3606
        %v3639 = vmul.f32 %v3535, %v3607
        %v3640 = vmul.f32 %v3538, %v3608
        %v3641 = vmul.f32 %v3540, %v3609
        %v3642 = vmul.f32 %v3543, %v3610
        %v3643 = vmul.f32 %v3545, %v3611
        %v3644 = vmul.f32 %v3548, %v3612
        %v3645 = vmul.f32 %v3550, %v3613
        %v3646 = vmul.f32 %v3553, %v3614
        %v3647 = vmul.f32 %v3555, %v3615
        %v3648 = vmul.f32 %v3558, %v3616
        %v3649 = vmul.f32 %v3560, %v3617
        %v3650 = vmul.f32 %v3563, %v3618
        %v3651 = vmul.f32 %v3565, %v3619
        %v3652 = vmul.f32 %v3568, %v3620
        %v3653 = vmul.f32 %v3570, %v3621
        %v3654 = vmul.f32 %v3573, %v3622
        %v3655 = vmul.f32 %v3575, %v3623
        %v3656 = vmul.f32 %v3578, %v3624
        %v3657 = vmul.f32 %v3580, %v3625
        %v3658 = vmul.f32 %v3583, %v3626
        %v3659 = vmul.f32 %v3585, %v3627
        %v3660 = vmul.f32 %v3588, %v3628
        %v3661 = vmul.f32 %v3590, %v3629
        %v3662 = vmul.f32 %v3593, %v3630
        %v3663 = vmul.f32 %v3595, %v3631
        %v3664 = vmul.f32 %v3598, %v3632
        %v3665 = vmul.f32 %v3600, %v3633
        %v3666 = vadd.f32 %v2694, %v3634
        %v3667 = vadd.f32 %v2695, %v3635
        %v3668 = vadd.f32 %v2696, %v3636
        %v3669 = vadd.f32 %v2697, %v3637
        %v3670 = vadd.f32 %v2698, %v3638
        %v3671 = vadd.f32 %v2699, %v3639
        %v3672 = vadd.f32 %v2700, %v3640
        %v3673 = vadd.f32 %v2701, %v3641
        %v3674 = vadd.f32 %v2702, %v3642
        %v3675 = vadd.f32 %v2703, %v3643
        %v3676 = vadd.f32 %v2704, %v3644
        %v3677 = vadd.f32 %v2705, %v3645
        %v3678 = vadd.f32 %v2706, %v3646
        %v3679 = vadd.f32 %v2707, %v3647
        %v3680 = vadd.f32 %v2708, %v3648
        %v3681 = vadd.f32 %v2709, %v3649
        %v3682 = vadd.f32 %v2710, %v3650
        %v3683 = vadd.f32 %v2711, %v3651
        %v3684 = vadd.f32 %v2712, %v3652
        %v3685 = vadd.f32 %v2713, %v3653
        %v3686 = vadd.f32 %v2714, %v3654
        %v3687 = vadd.f32 %v2715, %v3655
        %v3688 = vadd.f32 %v2716, %v3656
        %v3689 = vadd.f32 %v2717, %v3657
        %v3690 = vadd.f32 %v2718, %v3658
        %v3691 = vadd.f32 %v2719, %v3659
        %v3692 = vadd.f32 %v2720, %v3660
        %v3693 = vadd.f32 %v2721, %v3661
        %v3694 = vadd.f32 %v2722, %v3662
        %v3695 = vadd.f32 %v2723, %v3663
        %v3696 = vadd.f32 %v2724, %v3664
        %v3697 = vadd.f32 %v2725, %v3665
        %v3698 = vpack.c.bf16 %v671, %v671
        %v3699 = vpack.c.bf16 %v703, %v703
        %3700 = vrot.lane.b32.xlu0 %v716, 104
        %v3701 = vpop.permute.xlu0 %3700
        %3702 = vrot.lane.b32.xlu0 %v717, 104
        %v3703 = vpop.permute.xlu0 %3702
        %3704 = vrot.lane.b32.xlu0 %v718, 104
        %v3705 = vpop.permute.xlu0 %3704
        %3706 = vrot.lane.b32.xlu0 %v719, 104
        %v3707 = vpop.permute.xlu0 %3706
        %3708 = vrot.lane.b32.xlu0 %v720, 104
        %v3709 = vpop.permute.xlu0 %3708
        %3710 = vrot.lane.b32.xlu0 %v721, 104
        %v3711 = vpop.permute.xlu0 %3710
        %3712 = vrot.lane.b32.xlu0 %v722, 104
        %v3713 = vpop.permute.xlu0 %3712
        %3714 = vrot.lane.b32.xlu0 %v723, 104
        %v3715 = vpop.permute.xlu0 %3714
        %3716 = vrot.lane.b32.xlu0 %v724, 104
        %v3717 = vpop.permute.xlu0 %3716
        %3718 = vrot.lane.b32.xlu0 %v725, 104
        %v3719 = vpop.permute.xlu0 %3718
        %3720 = vrot.lane.b32.xlu0 %v726, 104
        %v3721 = vpop.permute.xlu0 %3720
        %3722 = vrot.lane.b32.xlu0 %v727, 104
        %v3723 = vpop.permute.xlu0 %3722
        %3724 = vrot.lane.b32.xlu0 %v728, 104
        %v3725 = vpop.permute.xlu0 %3724
        %3726 = vrot.lane.b32.xlu0 %v729, 104
        %v3727 = vpop.permute.xlu0 %3726
        %3728 = vrot.lane.b32.xlu0 %v730, 104
        %v3729 = vpop.permute.xlu0 %3728
        %3730 = vrot.lane.b32.xlu0 %v731, 104
        %v3731 = vpop.permute.xlu0 %3730
        %v3733 = vsel %vm734, %v3701, 0
        %v3736 = vsel %vm734, %v3703, 0
        %v3739 = vsel %vm734, %v3705, 0
        %v3742 = vsel %vm734, %v3707, 0
        %v3745 = vsel %vm734, %v3709, 0
        %v3748 = vsel %vm734, %v3711, 0
        %v3751 = vsel %vm734, %v3713, 0
        %v3754 = vsel %vm734, %v3715, 0
        %v3757 = vsel %vm734, %v3717, 0
        %v3760 = vsel %vm734, %v3719, 0
        %v3763 = vsel %vm734, %v3721, 0
        %v3766 = vsel %vm734, %v3723, 0
        %v3769 = vsel %vm734, %v3725, 0
        %v3772 = vsel %vm734, %v3727, 0
        %v3775 = vsel %vm734, %v3729, 0
        %v3778 = vsel %vm734, %v3731, 0
        %v3781 = vsel %vm783, %v3698, 0
        %v3784 = vsel %vm783, %v3699, 0
        %3786 = vmatpush.bf16.msra.mxu0 0
        %3787 = vmatpush.bf16.msra.mxu0 0
        %3788 = vmatpush.bf16.msra.mxu0 0
        %3789 = vmatpush.bf16.msra.mxu0 0
        %3790 = vmatpush.bf16.msra.mxu0 0
        %3791 = vmatpush.bf16.msra.mxu0 0
        %3792 = vmatpush.bf16.msra.mxu0 0
        %3793 = vmatpush.bf16.msra.mxu0 %v3781
        %3794 = vmatmul.bf16.gmra.mxu0 %v3733
        %v3795 = vpop.f32.mrf.mxu0
        %v3796 = vadd.f32 0.0, %v3795
        %v3797 = vpop.f32.mrf.mxu0
        %v3798 = vadd.f32 0.0, %v3797
        %3799 = vmatmul.bf16.gmra.mxu0 %v3736
        %v3800 = vpop.f32.mrf.mxu0
        %v3801 = vadd.f32 0.0, %v3800
        %v3802 = vpop.f32.mrf.mxu0
        %v3803 = vadd.f32 0.0, %v3802
        %3804 = vmatmul.bf16.gmra.mxu0 %v3739
        %v3805 = vpop.f32.mrf.mxu0
        %v3806 = vadd.f32 0.0, %v3805
        %v3807 = vpop.f32.mrf.mxu0
        %v3808 = vadd.f32 0.0, %v3807
        %3809 = vmatmul.bf16.gmra.mxu0 %v3742
        %v3810 = vpop.f32.mrf.mxu0
        %v3811 = vadd.f32 0.0, %v3810
        %v3812 = vpop.f32.mrf.mxu0
        %v3813 = vadd.f32 0.0, %v3812
        %3814 = vmatmul.bf16.gmra.mxu0 %v3745
        %v3815 = vpop.f32.mrf.mxu0
        %v3816 = vadd.f32 0.0, %v3815
        %v3817 = vpop.f32.mrf.mxu0
        %v3818 = vadd.f32 0.0, %v3817
        %3819 = vmatmul.bf16.gmra.mxu0 %v3748
        %v3820 = vpop.f32.mrf.mxu0
        %v3821 = vadd.f32 0.0, %v3820
        %v3822 = vpop.f32.mrf.mxu0
        %v3823 = vadd.f32 0.0, %v3822
        %3824 = vmatmul.bf16.gmra.mxu0 %v3751
        %v3825 = vpop.f32.mrf.mxu0
        %v3826 = vadd.f32 0.0, %v3825
        %v3827 = vpop.f32.mrf.mxu0
        %v3828 = vadd.f32 0.0, %v3827
        %3829 = vmatmul.bf16.gmra.mxu0 %v3754
        %v3830 = vpop.f32.mrf.mxu0
        %v3831 = vadd.f32 0.0, %v3830
        %v3832 = vpop.f32.mrf.mxu0
        %v3833 = vadd.f32 0.0, %v3832
        %3834 = vmatmul.bf16.gmra.mxu0 %v3757
        %v3835 = vpop.f32.mrf.mxu0
        %v3836 = vadd.f32 0.0, %v3835
        %v3837 = vpop.f32.mrf.mxu0
        %v3838 = vadd.f32 0.0, %v3837
        %3839 = vmatmul.bf16.gmra.mxu0 %v3760
        %v3840 = vpop.f32.mrf.mxu0
        %v3841 = vadd.f32 0.0, %v3840
        %v3842 = vpop.f32.mrf.mxu0
        %v3843 = vadd.f32 0.0, %v3842
        %3844 = vmatmul.bf16.gmra.mxu0 %v3763
        %v3845 = vpop.f32.mrf.mxu0
        %v3846 = vadd.f32 0.0, %v3845
        %v3847 = vpop.f32.mrf.mxu0
        %v3848 = vadd.f32 0.0, %v3847
        %3849 = vmatmul.bf16.gmra.mxu0 %v3766
        %v3850 = vpop.f32.mrf.mxu0
        %v3851 = vadd.f32 0.0, %v3850
        %v3852 = vpop.f32.mrf.mxu0
        %v3853 = vadd.f32 0.0, %v3852
        %3854 = vmatmul.bf16.gmra.mxu0 %v3769
        %v3855 = vpop.f32.mrf.mxu0
        %v3856 = vadd.f32 0.0, %v3855
        %v3857 = vpop.f32.mrf.mxu0
        %v3858 = vadd.f32 0.0, %v3857
        %3859 = vmatmul.bf16.gmra.mxu0 %v3772
        %v3860 = vpop.f32.mrf.mxu0
        %v3861 = vadd.f32 0.0, %v3860
        %v3862 = vpop.f32.mrf.mxu0
        %v3863 = vadd.f32 0.0, %v3862
        %3864 = vmatmul.bf16.gmra.mxu0 %v3775
        %v3865 = vpop.f32.mrf.mxu0
        %v3866 = vadd.f32 0.0, %v3865
        %v3867 = vpop.f32.mrf.mxu0
        %v3868 = vadd.f32 0.0, %v3867
        %3869 = vmatmul.bf16.gmra.mxu0 %v3778
        %v3870 = vpop.f32.mrf.mxu0
        %v3871 = vadd.f32 0.0, %v3870
        %v3872 = vpop.f32.mrf.mxu0
        %v3873 = vadd.f32 0.0, %v3872
        %3874 = vdwg.mxu0
        %3875 = vmatpush.bf16.msra.mxu0 0
        %3876 = vmatpush.bf16.msra.mxu0 0
        %3877 = vmatpush.bf16.msra.mxu0 0
        %3878 = vmatpush.bf16.msra.mxu0 0
        %3879 = vmatpush.bf16.msra.mxu0 0
        %3880 = vmatpush.bf16.msra.mxu0 0
        %3881 = vmatpush.bf16.msra.mxu0 0
        %3882 = vmatpush.bf16.msra.mxu0 %v3784
        %3883 = vmatmul.bf16.gmra.mxu0 %v3733
        %v3884 = vpop.f32.mrf.mxu0
        %v3885 = vadd.f32 0.0, %v3884
        %v3886 = vpop.f32.mrf.mxu0
        %v3887 = vadd.f32 0.0, %v3886
        %3888 = vmatmul.bf16.gmra.mxu0 %v3736
        %v3889 = vpop.f32.mrf.mxu0
        %v3890 = vadd.f32 0.0, %v3889
        %v3891 = vpop.f32.mrf.mxu0
        %v3892 = vadd.f32 0.0, %v3891
        %3893 = vmatmul.bf16.gmra.mxu0 %v3739
        %v3894 = vpop.f32.mrf.mxu0
        %v3895 = vadd.f32 0.0, %v3894
        %v3896 = vpop.f32.mrf.mxu0
        %v3897 = vadd.f32 0.0, %v3896
        %3898 = vmatmul.bf16.gmra.mxu0 %v3742
        %v3899 = vpop.f32.mrf.mxu0
        %v3900 = vadd.f32 0.0, %v3899
        %v3901 = vpop.f32.mrf.mxu0
        %v3902 = vadd.f32 0.0, %v3901
        %3903 = vmatmul.bf16.gmra.mxu0 %v3745
        %v3904 = vpop.f32.mrf.mxu0
        %v3905 = vadd.f32 0.0, %v3904
        %v3906 = vpop.f32.mrf.mxu0
        %v3907 = vadd.f32 0.0, %v3906
        %3908 = vmatmul.bf16.gmra.mxu0 %v3748
        %v3909 = vpop.f32.mrf.mxu0
        %v3910 = vadd.f32 0.0, %v3909
        %v3911 = vpop.f32.mrf.mxu0
        %v3912 = vadd.f32 0.0, %v3911
        %3913 = vmatmul.bf16.gmra.mxu0 %v3751
        %v3914 = vpop.f32.mrf.mxu0
        %v3915 = vadd.f32 0.0, %v3914
        %v3916 = vpop.f32.mrf.mxu0
        %v3917 = vadd.f32 0.0, %v3916
        %3918 = vmatmul.bf16.gmra.mxu0 %v3754
        %v3919 = vpop.f32.mrf.mxu0
        %v3920 = vadd.f32 0.0, %v3919
        %v3921 = vpop.f32.mrf.mxu0
        %v3922 = vadd.f32 0.0, %v3921
        %3923 = vmatmul.bf16.gmra.mxu0 %v3757
        %v3924 = vpop.f32.mrf.mxu0
        %v3925 = vadd.f32 0.0, %v3924
        %v3926 = vpop.f32.mrf.mxu0
        %v3927 = vadd.f32 0.0, %v3926
        %3928 = vmatmul.bf16.gmra.mxu0 %v3760
        %v3929 = vpop.f32.mrf.mxu0
        %v3930 = vadd.f32 0.0, %v3929
        %v3931 = vpop.f32.mrf.mxu0
        %v3932 = vadd.f32 0.0, %v3931
        %3933 = vmatmul.bf16.gmra.mxu0 %v3763
        %v3934 = vpop.f32.mrf.mxu0
        %v3935 = vadd.f32 0.0, %v3934
        %v3936 = vpop.f32.mrf.mxu0
        %v3937 = vadd.f32 0.0, %v3936
        %3938 = vmatmul.bf16.gmra.mxu0 %v3766
        %v3939 = vpop.f32.mrf.mxu0
        %v3940 = vadd.f32 0.0, %v3939
        %v3941 = vpop.f32.mrf.mxu0
        %v3942 = vadd.f32 0.0, %v3941
        %3943 = vmatmul.bf16.gmra.mxu0 %v3769
        %v3944 = vpop.f32.mrf.mxu0
        %v3945 = vadd.f32 0.0, %v3944
        %v3946 = vpop.f32.mrf.mxu0
        %v3947 = vadd.f32 0.0, %v3946
        %3948 = vmatmul.bf16.gmra.mxu0 %v3772
        %v3949 = vpop.f32.mrf.mxu0
        %v3950 = vadd.f32 0.0, %v3949
        %v3951 = vpop.f32.mrf.mxu0
        %v3952 = vadd.f32 0.0, %v3951
        %3953 = vmatmul.bf16.gmra.mxu0 %v3775
        %v3954 = vpop.f32.mrf.mxu0
        %v3955 = vadd.f32 0.0, %v3954
        %v3956 = vpop.f32.mrf.mxu0
        %v3957 = vadd.f32 0.0, %v3956
        %3958 = vmatmul.bf16.gmra.mxu0 %v3778
        %v3959 = vpop.f32.mrf.mxu0
        %v3960 = vadd.f32 0.0, %v3959
        %v3961 = vpop.f32.mrf.mxu0
        %v3962 = vadd.f32 0.0, %v3961
        %3963 = vdwg.mxu0
        %v3964 = vmax.f32 %v3796, %v3885
        %3965 = vmax.xlane.f32.xlu0 %v3964
        %v3966 = vpop.xlane.xlu0 %3965
        %v3967 = vmax.f32 %v3798, %v3887
        %3968 = vmax.xlane.f32.xlu0 %v3967
        %v3969 = vpop.xlane.xlu0 %3968
        %v3970 = vmax.f32 %v3801, %v3890
        %3971 = vmax.xlane.f32.xlu0 %v3970
        %v3972 = vpop.xlane.xlu0 %3971
        %v3973 = vmax.f32 %v3803, %v3892
        %3974 = vmax.xlane.f32.xlu0 %v3973
        %v3975 = vpop.xlane.xlu0 %3974
        %v3976 = vmax.f32 %v3806, %v3895
        %3977 = vmax.xlane.f32.xlu0 %v3976
        %v3978 = vpop.xlane.xlu0 %3977
        %v3979 = vmax.f32 %v3808, %v3897
        %3980 = vmax.xlane.f32.xlu0 %v3979
        %v3981 = vpop.xlane.xlu0 %3980
        %v3982 = vmax.f32 %v3811, %v3900
        %3983 = vmax.xlane.f32.xlu0 %v3982
        %v3984 = vpop.xlane.xlu0 %3983
        %v3985 = vmax.f32 %v3813, %v3902
        %3986 = vmax.xlane.f32.xlu0 %v3985
        %v3987 = vpop.xlane.xlu0 %3986
        %v3988 = vmax.f32 %v3816, %v3905
        %3989 = vmax.xlane.f32.xlu0 %v3988
        %v3990 = vpop.xlane.xlu0 %3989
        %v3991 = vmax.f32 %v3818, %v3907
        %3992 = vmax.xlane.f32.xlu0 %v3991
        %v3993 = vpop.xlane.xlu0 %3992
        %v3994 = vmax.f32 %v3821, %v3910
        %3995 = vmax.xlane.f32.xlu0 %v3994
        %v3996 = vpop.xlane.xlu0 %3995
        %v3997 = vmax.f32 %v3823, %v3912
        %3998 = vmax.xlane.f32.xlu0 %v3997
        %v3999 = vpop.xlane.xlu0 %3998
        %v4000 = vmax.f32 %v3826, %v3915
        %4001 = vmax.xlane.f32.xlu0 %v4000
        %v4002 = vpop.xlane.xlu0 %4001
        %v4003 = vmax.f32 %v3828, %v3917
        %4004 = vmax.xlane.f32.xlu0 %v4003
        %v4005 = vpop.xlane.xlu0 %4004
        %v4006 = vmax.f32 %v3831, %v3920
        %4007 = vmax.xlane.f32.xlu0 %v4006
        %v4008 = vpop.xlane.xlu0 %4007
        %v4009 = vmax.f32 %v3833, %v3922
        %4010 = vmax.xlane.f32.xlu0 %v4009
        %v4011 = vpop.xlane.xlu0 %4010
        %v4012 = vmax.f32 %v3836, %v3925
        %4013 = vmax.xlane.f32.xlu0 %v4012
        %v4014 = vpop.xlane.xlu0 %4013
        %v4015 = vmax.f32 %v3838, %v3927
        %4016 = vmax.xlane.f32.xlu0 %v4015
        %v4017 = vpop.xlane.xlu0 %4016
        %v4018 = vmax.f32 %v3841, %v3930
        %4019 = vmax.xlane.f32.xlu0 %v4018
        %v4020 = vpop.xlane.xlu0 %4019
        %v4021 = vmax.f32 %v3843, %v3932
        %4022 = vmax.xlane.f32.xlu0 %v4021
        %v4023 = vpop.xlane.xlu0 %4022
        %v4024 = vmax.f32 %v3846, %v3935
        %4025 = vmax.xlane.f32.xlu0 %v4024
        %v4026 = vpop.xlane.xlu0 %4025
        %v4027 = vmax.f32 %v3848, %v3937
        %4028 = vmax.xlane.f32.xlu0 %v4027
        %v4029 = vpop.xlane.xlu0 %4028
        %v4030 = vmax.f32 %v3851, %v3940
        %4031 = vmax.xlane.f32.xlu0 %v4030
        %v4032 = vpop.xlane.xlu0 %4031
        %v4033 = vmax.f32 %v3853, %v3942
        %4034 = vmax.xlane.f32.xlu0 %v4033
        %v4035 = vpop.xlane.xlu0 %4034
        %v4036 = vmax.f32 %v3856, %v3945
        %4037 = vmax.xlane.f32.xlu0 %v4036
        %v4038 = vpop.xlane.xlu0 %4037
        %v4039 = vmax.f32 %v3858, %v3947
        %4040 = vmax.xlane.f32.xlu0 %v4039
        %v4041 = vpop.xlane.xlu0 %4040
        %v4042 = vmax.f32 %v3861, %v3950
        %4043 = vmax.xlane.f32.xlu0 %v4042
        %v4044 = vpop.xlane.xlu0 %4043
        %v4045 = vmax.f32 %v3863, %v3952
        %4046 = vmax.xlane.f32.xlu0 %v4045
        %v4047 = vpop.xlane.xlu0 %4046
        %v4048 = vmax.f32 %v3866, %v3955
        %4049 = vmax.xlane.f32.xlu0 %v4048
        %v4050 = vpop.xlane.xlu0 %4049
        %v4051 = vmax.f32 %v3868, %v3957
        %4052 = vmax.xlane.f32.xlu0 %v4051
        %v4053 = vpop.xlane.xlu0 %4052
        %v4054 = vmax.f32 %v3871, %v3960
        %4055 = vmax.xlane.f32.xlu0 %v4054
        %v4056 = vpop.xlane.xlu0 %4055
        %v4057 = vmax.f32 %v3873, %v3962
        %4058 = vmax.xlane.f32.xlu0 %v4057
        %v4059 = vpop.xlane.xlu0 %4058
        %v4060 = vsub.f32 %v3796, %v3966
        %v4061 = vsub.f32 %v3885, %v3966
        %v4062 = vsub.f32 %v3798, %v3969
        %v4063 = vsub.f32 %v3887, %v3969
        %v4064 = vsub.f32 %v3801, %v3972
        %v4065 = vsub.f32 %v3890, %v3972
        %v4066 = vsub.f32 %v3803, %v3975
        %v4067 = vsub.f32 %v3892, %v3975
        %v4068 = vsub.f32 %v3806, %v3978
        %v4069 = vsub.f32 %v3895, %v3978
        %v4070 = vsub.f32 %v3808, %v3981
        %v4071 = vsub.f32 %v3897, %v3981
        %v4072 = vsub.f32 %v3811, %v3984
        %v4073 = vsub.f32 %v3900, %v3984
        %v4074 = vsub.f32 %v3813, %v3987
        %v4075 = vsub.f32 %v3902, %v3987
        %v4076 = vsub.f32 %v3816, %v3990
        %v4077 = vsub.f32 %v3905, %v3990
        %v4078 = vsub.f32 %v3818, %v3993
        %v4079 = vsub.f32 %v3907, %v3993
        %v4080 = vsub.f32 %v3821, %v3996
        %v4081 = vsub.f32 %v3910, %v3996
        %v4082 = vsub.f32 %v3823, %v3999
        %v4083 = vsub.f32 %v3912, %v3999
        %v4084 = vsub.f32 %v3826, %v4002
        %v4085 = vsub.f32 %v3915, %v4002
        %v4086 = vsub.f32 %v3828, %v4005
        %v4087 = vsub.f32 %v3917, %v4005
        %v4088 = vsub.f32 %v3831, %v4008
        %v4089 = vsub.f32 %v3920, %v4008
        %v4090 = vsub.f32 %v3833, %v4011
        %v4091 = vsub.f32 %v3922, %v4011
        %v4092 = vsub.f32 %v3836, %v4014
        %v4093 = vsub.f32 %v3925, %v4014
        %v4094 = vsub.f32 %v3838, %v4017
        %v4095 = vsub.f32 %v3927, %v4017
        %v4096 = vsub.f32 %v3841, %v4020
        %v4097 = vsub.f32 %v3930, %v4020
        %v4098 = vsub.f32 %v3843, %v4023
        %v4099 = vsub.f32 %v3932, %v4023
        %v4100 = vsub.f32 %v3846, %v4026
        %v4101 = vsub.f32 %v3935, %v4026
        %v4102 = vsub.f32 %v3848, %v4029
        %v4103 = vsub.f32 %v3937, %v4029
        %v4104 = vsub.f32 %v3851, %v4032
        %v4105 = vsub.f32 %v3940, %v4032
        %v4106 = vsub.f32 %v3853, %v4035
        %v4107 = vsub.f32 %v3942, %v4035
        %v4108 = vsub.f32 %v3856, %v4038
        %v4109 = vsub.f32 %v3945, %v4038
        %v4110 = vsub.f32 %v3858, %v4041
        %v4111 = vsub.f32 %v3947, %v4041
        %v4112 = vsub.f32 %v3861, %v4044
        %v4113 = vsub.f32 %v3950, %v4044
        %v4114 = vsub.f32 %v3863, %v4047
        %v4115 = vsub.f32 %v3952, %v4047
        %v4116 = vsub.f32 %v3866, %v4050
        %v4117 = vsub.f32 %v3955, %v4050
        %v4118 = vsub.f32 %v3868, %v4053
        %v4119 = vsub.f32 %v3957, %v4053
        %v4120 = vsub.f32 %v3871, %v4056
        %v4121 = vsub.f32 %v3960, %v4056
        %v4122 = vsub.f32 %v3873, %v4059
        %v4123 = vsub.f32 %v3962, %v4059
        %v4124 = vmul.f32 %v4060, 1.442695
        %v4125 = vpow.pop %v4124
        %v4126 = vmul.f32 %v4061, 1.442695
        %v4127 = vpow.pop %v4126
        %v4128 = vmul.f32 %v4062, 1.442695
        %v4129 = vpow.pop %v4128
        %v4130 = vmul.f32 %v4063, 1.442695
        %v4131 = vpow.pop %v4130
        %v4132 = vmul.f32 %v4064, 1.442695
        %v4133 = vpow.pop %v4132
        %v4134 = vmul.f32 %v4065, 1.442695
        %v4135 = vpow.pop %v4134
        %v4136 = vmul.f32 %v4066, 1.442695
        %v4137 = vpow.pop %v4136
        %v4138 = vmul.f32 %v4067, 1.442695
        %v4139 = vpow.pop %v4138
        %v4140 = vmul.f32 %v4068, 1.442695
        %v4141 = vpow.pop %v4140
        %v4142 = vmul.f32 %v4069, 1.442695
        %v4143 = vpow.pop %v4142
        %v4144 = vmul.f32 %v4070, 1.442695
        %v4145 = vpow.pop %v4144
        %v4146 = vmul.f32 %v4071, 1.442695
        %v4147 = vpow.pop %v4146
        %v4148 = vmul.f32 %v4072, 1.442695
        %v4149 = vpow.pop %v4148
        %v4150 = vmul.f32 %v4073, 1.442695
        %v4151 = vpow.pop %v4150
        %v4152 = vmul.f32 %v4074, 1.442695
        %v4153 = vpow.pop %v4152
        %v4154 = vmul.f32 %v4075, 1.442695
        %v4155 = vpow.pop %v4154
        %v4156 = vmul.f32 %v4076, 1.442695
        %v4157 = vpow.pop %v4156
        %v4158 = vmul.f32 %v4077, 1.442695
        %v4159 = vpow.pop %v4158
        %v4160 = vmul.f32 %v4078, 1.442695
        %v4161 = vpow.pop %v4160
        %v4162 = vmul.f32 %v4079, 1.442695
        %v4163 = vpow.pop %v4162
        %v4164 = vmul.f32 %v4080, 1.442695
        %v4165 = vpow.pop %v4164
        %v4166 = vmul.f32 %v4081, 1.442695
        %v4167 = vpow.pop %v4166
        %v4168 = vmul.f32 %v4082, 1.442695
        %v4169 = vpow.pop %v4168
        %v4170 = vmul.f32 %v4083, 1.442695
        %v4171 = vpow.pop %v4170
        %v4172 = vmul.f32 %v4084, 1.442695
        %v4173 = vpow.pop %v4172
        %v4174 = vmul.f32 %v4085, 1.442695
        %v4175 = vpow.pop %v4174
        %v4176 = vmul.f32 %v4086, 1.442695
        %v4177 = vpow.pop %v4176
        %v4178 = vmul.f32 %v4087, 1.442695
        %v4179 = vpow.pop %v4178
        %v4180 = vmul.f32 %v4088, 1.442695
        %v4181 = vpow.pop %v4180
        %v4182 = vmul.f32 %v4089, 1.442695
        %v4183 = vpow.pop %v4182
        %v4184 = vmul.f32 %v4090, 1.442695
        %v4185 = vpow.pop %v4184
        %v4186 = vmul.f32 %v4091, 1.442695
        %v4187 = vpow.pop %v4186
        %v4188 = vmul.f32 %v4092, 1.442695
        %v4189 = vpow.pop %v4188
        %v4190 = vmul.f32 %v4093, 1.442695
        %v4191 = vpow.pop %v4190
        %v4192 = vmul.f32 %v4094, 1.442695
        %v4193 = vpow.pop %v4192
        %v4194 = vmul.f32 %v4095, 1.442695
        %v4195 = vpow.pop %v4194
        %v4196 = vmul.f32 %v4096, 1.442695
        %v4197 = vpow.pop %v4196
        %v4198 = vmul.f32 %v4097, 1.442695
        %v4199 = vpow.pop %v4198
        %v4200 = vmul.f32 %v4098, 1.442695
        %v4201 = vpow.pop %v4200
        %v4202 = vmul.f32 %v4099, 1.442695
        %v4203 = vpow.pop %v4202
        %v4204 = vmul.f32 %v4100, 1.442695
        %v4205 = vpow.pop %v4204
        %v4206 = vmul.f32 %v4101, 1.442695
        %v4207 = vpow.pop %v4206
        %v4208 = vmul.f32 %v4102, 1.442695
        %v4209 = vpow.pop %v4208
        %v4210 = vmul.f32 %v4103, 1.442695
        %v4211 = vpow.pop %v4210
        %v4212 = vmul.f32 %v4104, 1.442695
        %v4213 = vpow.pop %v4212
        %v4214 = vmul.f32 %v4105, 1.442695
        %v4215 = vpow.pop %v4214
        %v4216 = vmul.f32 %v4106, 1.442695
        %v4217 = vpow.pop %v4216
        %v4218 = vmul.f32 %v4107, 1.442695
        %v4219 = vpow.pop %v4218
        %v4220 = vmul.f32 %v4108, 1.442695
        %v4221 = vpow.pop %v4220
        %v4222 = vmul.f32 %v4109, 1.442695
        %v4223 = vpow.pop %v4222
        %v4224 = vmul.f32 %v4110, 1.442695
        %v4225 = vpow.pop %v4224
        %v4226 = vmul.f32 %v4111, 1.442695
        %v4227 = vpow.pop %v4226
        %v4228 = vmul.f32 %v4112, 1.442695
        %v4229 = vpow.pop %v4228
        %v4230 = vmul.f32 %v4113, 1.442695
        %v4231 = vpow.pop %v4230
        %v4232 = vmul.f32 %v4114, 1.442695
        %v4233 = vpow.pop %v4232
        %v4234 = vmul.f32 %v4115, 1.442695
        %v4235 = vpow.pop %v4234
        %v4236 = vmul.f32 %v4116, 1.442695
        %v4237 = vpow.pop %v4236
        %v4238 = vmul.f32 %v4117, 1.442695
        %v4239 = vpow.pop %v4238
        %v4240 = vmul.f32 %v4118, 1.442695
        %v4241 = vpow.pop %v4240
        %v4242 = vmul.f32 %v4119, 1.442695
        %v4243 = vpow.pop %v4242
        %v4244 = vmul.f32 %v4120, 1.442695
        %v4245 = vpow.pop %v4244
        %v4246 = vmul.f32 %v4121, 1.442695
        %v4247 = vpow.pop %v4246
        %v4248 = vmul.f32 %v4122, 1.442695
        %v4249 = vpow.pop %v4248
        %v4250 = vmul.f32 %v4123, 1.442695
        %v4251 = vpow.pop %v4250
        %v4252 = vadd.f32 %v4125, %v4127
        %4253 = vadd.xlane.f32.xlu0 %v4252
        %v4254 = vpop.xlane.xlu0 %4253
        %v4255 = vadd.f32 %v4129, %v4131
        %4256 = vadd.xlane.f32.xlu0 %v4255
        %v4257 = vpop.xlane.xlu0 %4256
        %v4258 = vadd.f32 %v4133, %v4135
        %4259 = vadd.xlane.f32.xlu0 %v4258
        %v4260 = vpop.xlane.xlu0 %4259
        %v4261 = vadd.f32 %v4137, %v4139
        %4262 = vadd.xlane.f32.xlu0 %v4261
        %v4263 = vpop.xlane.xlu0 %4262
        %v4264 = vadd.f32 %v4141, %v4143
        %4265 = vadd.xlane.f32.xlu0 %v4264
        %v4266 = vpop.xlane.xlu0 %4265
        %v4267 = vadd.f32 %v4145, %v4147
        %4268 = vadd.xlane.f32.xlu0 %v4267
        %v4269 = vpop.xlane.xlu0 %4268
        %v4270 = vadd.f32 %v4149, %v4151
        %4271 = vadd.xlane.f32.xlu0 %v4270
        %v4272 = vpop.xlane.xlu0 %4271
        %v4273 = vadd.f32 %v4153, %v4155
        %4274 = vadd.xlane.f32.xlu0 %v4273
        %v4275 = vpop.xlane.xlu0 %4274
        %v4276 = vadd.f32 %v4157, %v4159
        %4277 = vadd.xlane.f32.xlu0 %v4276
        %v4278 = vpop.xlane.xlu0 %4277
        %v4279 = vadd.f32 %v4161, %v4163
        %4280 = vadd.xlane.f32.xlu0 %v4279
        %v4281 = vpop.xlane.xlu0 %4280
        %v4282 = vadd.f32 %v4165, %v4167
        %4283 = vadd.xlane.f32.xlu0 %v4282
        %v4284 = vpop.xlane.xlu0 %4283
        %v4285 = vadd.f32 %v4169, %v4171
        %4286 = vadd.xlane.f32.xlu0 %v4285
        %v4287 = vpop.xlane.xlu0 %4286
        %v4288 = vadd.f32 %v4173, %v4175
        %4289 = vadd.xlane.f32.xlu0 %v4288
        %v4290 = vpop.xlane.xlu0 %4289
        %v4291 = vadd.f32 %v4177, %v4179
        %4292 = vadd.xlane.f32.xlu0 %v4291
        %v4293 = vpop.xlane.xlu0 %4292
        %v4294 = vadd.f32 %v4181, %v4183
        %4295 = vadd.xlane.f32.xlu0 %v4294
        %v4296 = vpop.xlane.xlu0 %4295
        %v4297 = vadd.f32 %v4185, %v4187
        %4298 = vadd.xlane.f32.xlu0 %v4297
        %v4299 = vpop.xlane.xlu0 %4298
        %v4300 = vadd.f32 %v4189, %v4191
        %4301 = vadd.xlane.f32.xlu0 %v4300
        %v4302 = vpop.xlane.xlu0 %4301
        %v4303 = vadd.f32 %v4193, %v4195
        %4304 = vadd.xlane.f32.xlu0 %v4303
        %v4305 = vpop.xlane.xlu0 %4304
        %v4306 = vadd.f32 %v4197, %v4199
        %4307 = vadd.xlane.f32.xlu0 %v4306
        %v4308 = vpop.xlane.xlu0 %4307
        %v4309 = vadd.f32 %v4201, %v4203
        %4310 = vadd.xlane.f32.xlu0 %v4309
        %v4311 = vpop.xlane.xlu0 %4310
        %v4312 = vadd.f32 %v4205, %v4207
        %4313 = vadd.xlane.f32.xlu0 %v4312
        %v4314 = vpop.xlane.xlu0 %4313
        %v4315 = vadd.f32 %v4209, %v4211
        %4316 = vadd.xlane.f32.xlu0 %v4315
        %v4317 = vpop.xlane.xlu0 %4316
        %v4318 = vadd.f32 %v4213, %v4215
        %4319 = vadd.xlane.f32.xlu0 %v4318
        %v4320 = vpop.xlane.xlu0 %4319
        %v4321 = vadd.f32 %v4217, %v4219
        %4322 = vadd.xlane.f32.xlu0 %v4321
        %v4323 = vpop.xlane.xlu0 %4322
        %v4324 = vadd.f32 %v4221, %v4223
        %4325 = vadd.xlane.f32.xlu0 %v4324
        %v4326 = vpop.xlane.xlu0 %4325
        %v4327 = vadd.f32 %v4225, %v4227
        %4328 = vadd.xlane.f32.xlu0 %v4327
        %v4329 = vpop.xlane.xlu0 %4328
        %v4330 = vadd.f32 %v4229, %v4231
        %4331 = vadd.xlane.f32.xlu0 %v4330
        %v4332 = vpop.xlane.xlu0 %4331
        %v4333 = vadd.f32 %v4233, %v4235
        %4334 = vadd.xlane.f32.xlu0 %v4333
        %v4335 = vpop.xlane.xlu0 %4334
        %v4336 = vadd.f32 %v4237, %v4239
        %4337 = vadd.xlane.f32.xlu0 %v4336
        %v4338 = vpop.xlane.xlu0 %4337
        %v4339 = vadd.f32 %v4241, %v4243
        %4340 = vadd.xlane.f32.xlu0 %v4339
        %v4341 = vpop.xlane.xlu0 %4340
        %v4342 = vadd.f32 %v4245, %v4247
        %4343 = vadd.xlane.f32.xlu0 %v4342
        %v4344 = vpop.xlane.xlu0 %4343
        %v4345 = vadd.f32 %v4249, %v4251
        %4346 = vadd.xlane.f32.xlu0 %v4345
        %v4347 = vpop.xlane.xlu0 %4346
        %v4348 = vpack.c.bf16 %v4129, %v4125
        %v4349 = vpack.c.bf16 %v4131, %v4127
        %v4350 = vpack.c.bf16 %v4137, %v4133
        %v4351 = vpack.c.bf16 %v4139, %v4135
        %v4352 = vpack.c.bf16 %v4145, %v4141
        %v4353 = vpack.c.bf16 %v4147, %v4143
        %v4354 = vpack.c.bf16 %v4153, %v4149
        %v4355 = vpack.c.bf16 %v4155, %v4151
        %v4356 = vpack.c.bf16 %v4161, %v4157
        %v4357 = vpack.c.bf16 %v4163, %v4159
        %v4358 = vpack.c.bf16 %v4169, %v4165
        %v4359 = vpack.c.bf16 %v4171, %v4167
        %v4360 = vpack.c.bf16 %v4177, %v4173
        %v4361 = vpack.c.bf16 %v4179, %v4175
        %v4362 = vpack.c.bf16 %v4185, %v4181
        %v4363 = vpack.c.bf16 %v4187, %v4183
        %v4364 = vpack.c.bf16 %v4193, %v4189
        %v4365 = vpack.c.bf16 %v4195, %v4191
        %v4366 = vpack.c.bf16 %v4201, %v4197
        %v4367 = vpack.c.bf16 %v4203, %v4199
        %v4368 = vpack.c.bf16 %v4209, %v4205
        %v4369 = vpack.c.bf16 %v4211, %v4207
        %v4370 = vpack.c.bf16 %v4217, %v4213
        %v4371 = vpack.c.bf16 %v4219, %v4215
        %v4372 = vpack.c.bf16 %v4225, %v4221
        %v4373 = vpack.c.bf16 %v4227, %v4223
        %v4374 = vpack.c.bf16 %v4233, %v4229
        %v4375 = vpack.c.bf16 %v4235, %v4231
        %v4376 = vpack.c.bf16 %v4241, %v4237
        %v4377 = vpack.c.bf16 %v4243, %v4239
        %v4378 = vpack.c.bf16 %v4249, %v4245
        %v4379 = vpack.c.bf16 %v4251, %v4247
        %4396 = vrot.lane.b32.xlu0 %v3408, 96
        %v4397 = vpop.permute.xlu0 %4396
        %4398 = vrot.lane.b32.xlu0 %v3409, 96
        %v4399 = vpop.permute.xlu0 %4398
        %4400 = vrot.lane.b32.xlu0 %v3410, 96
        %v4401 = vpop.permute.xlu0 %4400
        %4402 = vrot.lane.b32.xlu0 %v3411, 96
        %v4403 = vpop.permute.xlu0 %4402
        %4404 = vrot.lane.b32.xlu0 %v3412, 96
        %v4405 = vpop.permute.xlu0 %4404
        %4406 = vrot.lane.b32.xlu0 %v3413, 96
        %v4407 = vpop.permute.xlu0 %4406
        %4408 = vrot.lane.b32.xlu0 %v3414, 96
        %v4409 = vpop.permute.xlu0 %4408
        %4410 = vrot.lane.b32.xlu0 %v3415, 96
        %v4411 = vpop.permute.xlu0 %4410
        %4412 = vrot.lane.b32.xlu0 %v3416, 96
        %v4413 = vpop.permute.xlu0 %4412
        %4414 = vrot.lane.b32.xlu0 %v3417, 96
        %v4415 = vpop.permute.xlu0 %4414
        %4416 = vrot.lane.b32.xlu0 %v3418, 96
        %v4417 = vpop.permute.xlu0 %4416
        %4418 = vrot.lane.b32.xlu0 %v3419, 96
        %v4419 = vpop.permute.xlu0 %4418
        %4420 = vrot.lane.b32.xlu0 %v3420, 96
        %v4421 = vpop.permute.xlu0 %4420
        %4422 = vrot.lane.b32.xlu0 %v3421, 96
        %v4423 = vpop.permute.xlu0 %4422
        %4424 = vrot.lane.b32.xlu0 %v3422, 96
        %v4425 = vpop.permute.xlu0 %4424
        %4426 = vrot.lane.b32.xlu0 %v3423, 96
        %v4427 = vpop.permute.xlu0 %4426
        %4444 = vmatpush.bf16.msra.mxu0 %v4411
        %4445 = vmatpush.bf16.msra.mxu0 %v4409
        %4446 = vmatpush.bf16.msra.mxu0 %v4407
        %4447 = vmatpush.bf16.msra.mxu0 %v4405
        %4448 = vmatpush.bf16.msra.mxu0 %v4403
        %4449 = vmatpush.bf16.msra.mxu0 %v4401
        %4450 = vmatpush.bf16.msra.mxu0 %v4399
        %4451 = vmatpush.bf16.msra.mxu0 %v4397
        %4452 = vmatmul.bf16.gmra.mxu0 %v4348
        %v4453 = vpop.f32.mrf.mxu0
        %v4454 = vadd.f32 0.0, %v4453
        %v4455 = vpop.f32.mrf.mxu0
        %v4456 = vadd.f32 0.0, %v4455
        %4457 = vmatmul.bf16.gmra.mxu0 %v4350
        %v4458 = vpop.f32.mrf.mxu0
        %v4459 = vadd.f32 0.0, %v4458
        %v4460 = vpop.f32.mrf.mxu0
        %v4461 = vadd.f32 0.0, %v4460
        %4462 = vmatmul.bf16.gmra.mxu0 %v4352
        %v4463 = vpop.f32.mrf.mxu0
        %v4464 = vadd.f32 0.0, %v4463
        %v4465 = vpop.f32.mrf.mxu0
        %v4466 = vadd.f32 0.0, %v4465
        %4467 = vmatmul.bf16.gmra.mxu0 %v4354
        %v4468 = vpop.f32.mrf.mxu0
        %v4469 = vadd.f32 0.0, %v4468
        %v4470 = vpop.f32.mrf.mxu0
        %v4471 = vadd.f32 0.0, %v4470
        %4472 = vmatmul.bf16.gmra.mxu0 %v4356
        %v4473 = vpop.f32.mrf.mxu0
        %v4474 = vadd.f32 0.0, %v4473
        %v4475 = vpop.f32.mrf.mxu0
        %v4476 = vadd.f32 0.0, %v4475
        %4477 = vmatmul.bf16.gmra.mxu0 %v4358
        %v4478 = vpop.f32.mrf.mxu0
        %v4479 = vadd.f32 0.0, %v4478
        %v4480 = vpop.f32.mrf.mxu0
        %v4481 = vadd.f32 0.0, %v4480
        %4482 = vmatmul.bf16.gmra.mxu0 %v4360
        %v4483 = vpop.f32.mrf.mxu0
        %v4484 = vadd.f32 0.0, %v4483
        %v4485 = vpop.f32.mrf.mxu0
        %v4486 = vadd.f32 0.0, %v4485
        %4487 = vmatmul.bf16.gmra.mxu0 %v4362
        %v4488 = vpop.f32.mrf.mxu0
        %v4489 = vadd.f32 0.0, %v4488
        %v4490 = vpop.f32.mrf.mxu0
        %v4491 = vadd.f32 0.0, %v4490
        %4492 = vmatmul.bf16.gmra.mxu0 %v4364
        %v4493 = vpop.f32.mrf.mxu0
        %v4494 = vadd.f32 0.0, %v4493
        %v4495 = vpop.f32.mrf.mxu0
        %v4496 = vadd.f32 0.0, %v4495
        %4497 = vmatmul.bf16.gmra.mxu0 %v4366
        %v4498 = vpop.f32.mrf.mxu0
        %v4499 = vadd.f32 0.0, %v4498
        %v4500 = vpop.f32.mrf.mxu0
        %v4501 = vadd.f32 0.0, %v4500
        %4502 = vmatmul.bf16.gmra.mxu0 %v4368
        %v4503 = vpop.f32.mrf.mxu0
        %v4504 = vadd.f32 0.0, %v4503
        %v4505 = vpop.f32.mrf.mxu0
        %v4506 = vadd.f32 0.0, %v4505
        %4507 = vmatmul.bf16.gmra.mxu0 %v4370
        %v4508 = vpop.f32.mrf.mxu0
        %v4509 = vadd.f32 0.0, %v4508
        %v4510 = vpop.f32.mrf.mxu0
        %v4511 = vadd.f32 0.0, %v4510
        %4512 = vmatmul.bf16.gmra.mxu0 %v4372
        %v4513 = vpop.f32.mrf.mxu0
        %v4514 = vadd.f32 0.0, %v4513
        %v4515 = vpop.f32.mrf.mxu0
        %v4516 = vadd.f32 0.0, %v4515
        %4517 = vmatmul.bf16.gmra.mxu0 %v4374
        %v4518 = vpop.f32.mrf.mxu0
        %v4519 = vadd.f32 0.0, %v4518
        %v4520 = vpop.f32.mrf.mxu0
        %v4521 = vadd.f32 0.0, %v4520
        %4522 = vmatmul.bf16.gmra.mxu0 %v4376
        %v4523 = vpop.f32.mrf.mxu0
        %v4524 = vadd.f32 0.0, %v4523
        %v4525 = vpop.f32.mrf.mxu0
        %v4526 = vadd.f32 0.0, %v4525
        %4527 = vmatmul.bf16.gmra.mxu0 %v4378
        %v4528 = vpop.f32.mrf.mxu0
        %v4529 = vadd.f32 0.0, %v4528
        %v4530 = vpop.f32.mrf.mxu0
        %v4531 = vadd.f32 0.0, %v4530
        %4532 = vdwg.mxu0
        %4533 = vmatpush.bf16.msra.mxu0 %v4427
        %4534 = vmatpush.bf16.msra.mxu0 %v4425
        %4535 = vmatpush.bf16.msra.mxu0 %v4423
        %4536 = vmatpush.bf16.msra.mxu0 %v4421
        %4537 = vmatpush.bf16.msra.mxu0 %v4419
        %4538 = vmatpush.bf16.msra.mxu0 %v4417
        %4539 = vmatpush.bf16.msra.mxu0 %v4415
        %4540 = vmatpush.bf16.msra.mxu0 %v4413
        %4541 = vmatmul.bf16.gmra.mxu0 %v4349
        %v4542 = vpop.f32.mrf.mxu0
        %v4543 = vadd.f32 %v4454, %v4542
        %v4544 = vpop.f32.mrf.mxu0
        %v4545 = vadd.f32 %v4456, %v4544
        %4546 = vmatmul.bf16.gmra.mxu0 %v4351
        %v4547 = vpop.f32.mrf.mxu0
        %v4548 = vadd.f32 %v4459, %v4547
        %v4549 = vpop.f32.mrf.mxu0
        %v4550 = vadd.f32 %v4461, %v4549
        %4551 = vmatmul.bf16.gmra.mxu0 %v4353
        %v4552 = vpop.f32.mrf.mxu0
        %v4553 = vadd.f32 %v4464, %v4552
        %v4554 = vpop.f32.mrf.mxu0
        %v4555 = vadd.f32 %v4466, %v4554
        %4556 = vmatmul.bf16.gmra.mxu0 %v4355
        %v4557 = vpop.f32.mrf.mxu0
        %v4558 = vadd.f32 %v4469, %v4557
        %v4559 = vpop.f32.mrf.mxu0
        %v4560 = vadd.f32 %v4471, %v4559
        %4561 = vmatmul.bf16.gmra.mxu0 %v4357
        %v4562 = vpop.f32.mrf.mxu0
        %v4563 = vadd.f32 %v4474, %v4562
        %v4564 = vpop.f32.mrf.mxu0
        %v4565 = vadd.f32 %v4476, %v4564
        %4566 = vmatmul.bf16.gmra.mxu0 %v4359
        %v4567 = vpop.f32.mrf.mxu0
        %v4568 = vadd.f32 %v4479, %v4567
        %v4569 = vpop.f32.mrf.mxu0
        %v4570 = vadd.f32 %v4481, %v4569
        %4571 = vmatmul.bf16.gmra.mxu0 %v4361
        %v4572 = vpop.f32.mrf.mxu0
        %v4573 = vadd.f32 %v4484, %v4572
        %v4574 = vpop.f32.mrf.mxu0
        %v4575 = vadd.f32 %v4486, %v4574
        %4576 = vmatmul.bf16.gmra.mxu0 %v4363
        %v4577 = vpop.f32.mrf.mxu0
        %v4578 = vadd.f32 %v4489, %v4577
        %v4579 = vpop.f32.mrf.mxu0
        %v4580 = vadd.f32 %v4491, %v4579
        %4581 = vmatmul.bf16.gmra.mxu0 %v4365
        %v4582 = vpop.f32.mrf.mxu0
        %v4583 = vadd.f32 %v4494, %v4582
        %v4584 = vpop.f32.mrf.mxu0
        %v4585 = vadd.f32 %v4496, %v4584
        %4586 = vmatmul.bf16.gmra.mxu0 %v4367
        %v4587 = vpop.f32.mrf.mxu0
        %v4588 = vadd.f32 %v4499, %v4587
        %v4589 = vpop.f32.mrf.mxu0
        %v4590 = vadd.f32 %v4501, %v4589
        %4591 = vmatmul.bf16.gmra.mxu0 %v4369
        %v4592 = vpop.f32.mrf.mxu0
        %v4593 = vadd.f32 %v4504, %v4592
        %v4594 = vpop.f32.mrf.mxu0
        %v4595 = vadd.f32 %v4506, %v4594
        %4596 = vmatmul.bf16.gmra.mxu0 %v4371
        %v4597 = vpop.f32.mrf.mxu0
        %v4598 = vadd.f32 %v4509, %v4597
        %v4599 = vpop.f32.mrf.mxu0
        %v4600 = vadd.f32 %v4511, %v4599
        %4601 = vmatmul.bf16.gmra.mxu0 %v4373
        %v4602 = vpop.f32.mrf.mxu0
        %v4603 = vadd.f32 %v4514, %v4602
        %v4604 = vpop.f32.mrf.mxu0
        %v4605 = vadd.f32 %v4516, %v4604
        %4606 = vmatmul.bf16.gmra.mxu0 %v4375
        %v4607 = vpop.f32.mrf.mxu0
        %v4608 = vadd.f32 %v4519, %v4607
        %v4609 = vpop.f32.mrf.mxu0
        %v4610 = vadd.f32 %v4521, %v4609
        %4611 = vmatmul.bf16.gmra.mxu0 %v4377
        %v4612 = vpop.f32.mrf.mxu0
        %v4613 = vadd.f32 %v4524, %v4612
        %v4614 = vpop.f32.mrf.mxu0
        %v4615 = vadd.f32 %v4526, %v4614
        %4616 = vmatmul.bf16.gmra.mxu0 %v4379
        %v4617 = vpop.f32.mrf.mxu0
        %v4618 = vadd.f32 %v4529, %v4617
        %v4619 = vpop.f32.mrf.mxu0
        %v4620 = vadd.f32 %v4531, %v4619
        %4621 = vdwg.mxu0
        %v4622 = vrcp.pop %v4254
        %v4623 = vrcp.pop %v4257
        %v4624 = vrcp.pop %v4260
        %v4625 = vrcp.pop %v4263
        %v4626 = vrcp.pop %v4266
        %v4627 = vrcp.pop %v4269
        %v4628 = vrcp.pop %v4272
        %v4629 = vrcp.pop %v4275
        %v4630 = vrcp.pop %v4278
        %v4631 = vrcp.pop %v4281
        %v4632 = vrcp.pop %v4284
        %v4633 = vrcp.pop %v4287
        %v4634 = vrcp.pop %v4290
        %v4635 = vrcp.pop %v4293
        %v4636 = vrcp.pop %v4296
        %v4637 = vrcp.pop %v4299
        %v4638 = vrcp.pop %v4302
        %v4639 = vrcp.pop %v4305
        %v4640 = vrcp.pop %v4308
        %v4641 = vrcp.pop %v4311
        %v4642 = vrcp.pop %v4314
        %v4643 = vrcp.pop %v4317
        %v4644 = vrcp.pop %v4320
        %v4645 = vrcp.pop %v4323
        %v4646 = vrcp.pop %v4326
        %v4647 = vrcp.pop %v4329
        %v4648 = vrcp.pop %v4332
        %v4649 = vrcp.pop %v4335
        %v4650 = vrcp.pop %v4338
        %v4651 = vrcp.pop %v4341
        %v4652 = vrcp.pop %v4344
        %v4653 = vrcp.pop %v4347
        %v4654 = vmul.f32 %v4543, %v4622
        %v4655 = vmul.f32 %v4545, %v4623
        %v4656 = vmul.f32 %v4548, %v4624
        %v4657 = vmul.f32 %v4550, %v4625
        %v4658 = vmul.f32 %v4553, %v4626
        %v4659 = vmul.f32 %v4555, %v4627
        %v4660 = vmul.f32 %v4558, %v4628
        %v4661 = vmul.f32 %v4560, %v4629
        %v4662 = vmul.f32 %v4563, %v4630
        %v4663 = vmul.f32 %v4565, %v4631
        %v4664 = vmul.f32 %v4568, %v4632
        %v4665 = vmul.f32 %v4570, %v4633
        %v4666 = vmul.f32 %v4573, %v4634
        %v4667 = vmul.f32 %v4575, %v4635
        %v4668 = vmul.f32 %v4578, %v4636
        %v4669 = vmul.f32 %v4580, %v4637
        %v4670 = vmul.f32 %v4583, %v4638
        %v4671 = vmul.f32 %v4585, %v4639
        %v4672 = vmul.f32 %v4588, %v4640
        %v4673 = vmul.f32 %v4590, %v4641
        %v4674 = vmul.f32 %v4593, %v4642
        %v4675 = vmul.f32 %v4595, %v4643
        %v4676 = vmul.f32 %v4598, %v4644
        %v4677 = vmul.f32 %v4600, %v4645
        %v4678 = vmul.f32 %v4603, %v4646
        %v4679 = vmul.f32 %v4605, %v4647
        %v4680 = vmul.f32 %v4608, %v4648
        %v4681 = vmul.f32 %v4610, %v4649
        %v4682 = vmul.f32 %v4613, %v4650
        %v4683 = vmul.f32 %v4615, %v4651
        %v4684 = vmul.f32 %v4618, %v4652
        %v4685 = vmul.f32 %v4620, %v4653
        %v4686 = vadd.f32 %v3666, %v4654
        %v4687 = vadd.f32 %v3667, %v4655
        %v4688 = vadd.f32 %v3668, %v4656
        %v4689 = vadd.f32 %v3669, %v4657
        %v4690 = vadd.f32 %v3670, %v4658
        %v4691 = vadd.f32 %v3671, %v4659
        %v4692 = vadd.f32 %v3672, %v4660
        %v4693 = vadd.f32 %v3673, %v4661
        %v4694 = vadd.f32 %v3674, %v4662
        %v4695 = vadd.f32 %v3675, %v4663
        %v4696 = vadd.f32 %v3676, %v4664
        %v4697 = vadd.f32 %v3677, %v4665
        %v4698 = vadd.f32 %v3678, %v4666
        %v4699 = vadd.f32 %v3679, %v4667
        %v4700 = vadd.f32 %v3680, %v4668
        %v4701 = vadd.f32 %v3681, %v4669
        %v4702 = vadd.f32 %v3682, %v4670
        %v4703 = vadd.f32 %v3683, %v4671
        %v4704 = vadd.f32 %v3684, %v4672
        %v4705 = vadd.f32 %v3685, %v4673
        %v4706 = vadd.f32 %v3686, %v4674
        %v4707 = vadd.f32 %v3687, %v4675
        %v4708 = vadd.f32 %v3688, %v4676
        %v4709 = vadd.f32 %v3689, %v4677
        %v4710 = vadd.f32 %v3690, %v4678
        %v4711 = vadd.f32 %v3691, %v4679
        %v4712 = vadd.f32 %v3692, %v4680
        %v4713 = vadd.f32 %v3693, %v4681
        %v4714 = vadd.f32 %v3694, %v4682
        %v4715 = vadd.f32 %v3695, %v4683
        %v4716 = vadd.f32 %v3696, %v4684
        %v4717 = vadd.f32 %v3697, %v4685
        %v4718 = vld [vmem:[%s3] sm:$0x1]
        %v4720 = vperm.slane %v4718, 0
        %v4722 = vadd.f32 %v4686, %v4720
        %v4723 = vadd.f32 %v4687, %v4720
        %v4724 = vadd.f32 %v4688, %v4720
        %v4725 = vadd.f32 %v4689, %v4720
        %v4726 = vadd.f32 %v4690, %v4720
        %v4727 = vadd.f32 %v4691, %v4720
        %v4728 = vadd.f32 %v4692, %v4720
        %v4729 = vadd.f32 %v4693, %v4720
        %v4730 = vadd.f32 %v4694, %v4720
        %v4731 = vadd.f32 %v4695, %v4720
        %v4732 = vadd.f32 %v4696, %v4720
        %v4733 = vadd.f32 %v4697, %v4720
        %v4734 = vadd.f32 %v4698, %v4720
        %v4735 = vadd.f32 %v4699, %v4720
        %v4736 = vadd.f32 %v4700, %v4720
        %v4737 = vadd.f32 %v4701, %v4720
        %v4738 = vadd.f32 %v4702, %v4720
        %v4739 = vadd.f32 %v4703, %v4720
        %v4740 = vadd.f32 %v4704, %v4720
        %v4741 = vadd.f32 %v4705, %v4720
        %v4742 = vadd.f32 %v4706, %v4720
        %v4743 = vadd.f32 %v4707, %v4720
        %v4744 = vadd.f32 %v4708, %v4720
        %v4745 = vadd.f32 %v4709, %v4720
        %v4746 = vadd.f32 %v4710, %v4720
        %v4747 = vadd.f32 %v4711, %v4720
        %v4748 = vadd.f32 %v4712, %v4720
        %v4749 = vadd.f32 %v4713, %v4720
        %v4750 = vadd.f32 %v4714, %v4720
        %v4751 = vadd.f32 %v4715, %v4720
        %v4752 = vadd.f32 %v4716, %v4720
        %v4753 = vadd.f32 %v4717, %v4720
        %4754 = vst.msk [vmem:[%s217] sm:$0xff] %vm297, %v4722
        %4755 = vst.msk [vmem:[%s217 + $0x8] sm:$0xff] %vm297, %v4723
        %4756 = vst.msk [vmem:[%s217 + $0x10] sm:$0xff] %vm297, %v4724
        %4757 = vst.msk [vmem:[%s217 + $0x18] sm:$0xff] %vm297, %v4725
        %4758 = vst.msk [vmem:[%s217 + $0x20] sm:$0xff] %vm297, %v4726
        %4759 = vst.msk [vmem:[%s217 + $0x28] sm:$0xff] %vm297, %v4727
        %4760 = vst.msk [vmem:[%s217 + $0x30] sm:$0xff] %vm297, %v4728
        %4761 = vst.msk [vmem:[%s217 + $0x38] sm:$0xff] %vm297, %v4729
        %4762 = vst.msk [vmem:[%s217 + $0x40] sm:$0xff] %vm297, %v4730
        %4763 = vst.msk [vmem:[%s217 + $0x48] sm:$0xff] %vm297, %v4731
        %4764 = vst.msk [vmem:[%s217 + $0x50] sm:$0xff] %vm297, %v4732
        %4765 = vst.msk [vmem:[%s217 + $0x58] sm:$0xff] %vm297, %v4733
        %4766 = vst.msk [vmem:[%s217 + $0x60] sm:$0xff] %vm297, %v4734
        %4767 = vst.msk [vmem:[%s217 + $0x68] sm:$0xff] %vm297, %v4735
        %4768 = vst.msk [vmem:[%s217 + $0x70] sm:$0xff] %vm297, %v4736
        %4769 = vst.msk [vmem:[%s217 + $0x78] sm:$0xff] %vm297, %v4737
        %4770 = vst.msk [vmem:[%s217 + $0x80] sm:$0xff] %vm297, %v4738
        %4771 = vst.msk [vmem:[%s217 + $0x88] sm:$0xff] %vm297, %v4739
        %4772 = vst.msk [vmem:[%s217 + $0x90] sm:$0xff] %vm297, %v4740
        %4773 = vst.msk [vmem:[%s217 + $0x98] sm:$0xff] %vm297, %v4741
        %4774 = vst.msk [vmem:[%s217 + $0xa0] sm:$0xff] %vm297, %v4742
        %4775 = vst.msk [vmem:[%s217 + $0xa8] sm:$0xff] %vm297, %v4743
        %4776 = vst.msk [vmem:[%s217 + $0xb0] sm:$0xff] %vm297, %v4744
        %4777 = vst.msk [vmem:[%s217 + $0xb8] sm:$0xff] %vm297, %v4745
        %4778 = vst.msk [vmem:[%s217 + $0xc0] sm:$0xff] %vm297, %v4746
        %4779 = vst.msk [vmem:[%s217 + $0xc8] sm:$0xff] %vm297, %v4747
        %4780 = vst.msk [vmem:[%s217 + $0xd0] sm:$0xff] %vm297, %v4748
        %4781 = vst.msk [vmem:[%s217 + $0xd8] sm:$0xff] %vm297, %v4749
        %4782 = vst.msk [vmem:[%s217 + $0xe0] sm:$0xff] %vm297, %v4750
        %4783 = vst.msk [vmem:[%s217 + $0xe8] sm:$0xff] %vm297, %v4751
        %4784 = vst.msk [vmem:[%s217 + $0xf0] sm:$0xff] %vm297, %v4752
        %4785 = vst.msk [vmem:[%s217 + $0xf8] sm:$0xff] %vm297, %v4753
        %s4786 = sand.u32 %s118, 1
        %s4787 = scalar_lea.sflag [#allocation4], %s4786
        %s4788 = sand.u32 %s118, 1
        %s4789 = smul.addr %s4788, 256
        %s4790 = scalar_lea.vmem [#allocation5], %s4789
        // Predicated region
        $region41: #{attention_forward.1} parent=35 // pred_check
          %p4791 = pneg %p128
        $region42: #{attention_forward.1} parent=35 // pred_check_branch
          %4793 = sbr.rel (%p4791) target = $region44
        $region43: #{attention_forward.1} parent=35 // pred_region
          %4795 = vsyncadd %s4787, 0
          %s4796 = smul.addr %s21, 32
          %s4797 = smul.addr %s4796, 8
          %s4798 = scalar_lea.hbm %s4, %s4797
          %s4799 = sshll.u32 %s4790, 4
          %s4800 = int_to_ptr.vmem [resolvable:$true] %s4799
          %s4801 = sshll.u32 %s4798, 4
          %s4802 = int_to_ptr.hbm [resolvable:$true] %s4801
          %4807 = dma.vmem_to_hbm [thread:$0]  %s4800, 4096, %s4802, %s4787, 128, 128, 8
        $region44: #{attention_forward.1} parent=35 // pred_fallthru
          _
      $region36: #{attention_forward.1} parent=5 // pred_fallthru
        _
      %p4808 = scmp.le.s32.totalorder 2, %s16
      // Predicated region
      $region45: #{attention_forward.1} parent=5 // pred_check
        %p4809 = pneg %p4808
      $region46: #{attention_forward.1} parent=5 // pred_check_branch
        %4811 = sbr.rel (%p4809) target = $region48
      $region47: #{attention_forward.1} parent=5 // pred_region
        %s4812 = ssub.s32 %s16, 2
        // Predicated region
        $region49: #{attention_forward.1} parent=47 // pred_check
          %p4813 = pneg %p134
        $region50: #{attention_forward.1} parent=47 // pred_check_branch
          %4815 = sbr.rel (%p4813) target = $region52
        $region51: #{attention_forward.1} parent=47 // pred_region
          %s4816 = sand.u32 %s119, 1
          %s4817 = scalar_lea.sflag [#allocation4], %s4816
          %s4818 = sand.u32 %s119, 1
          %s4819 = smul.addr %s4818, 256
          %s4820 = scalar_lea.vmem [#allocation5], %s4819
          %4822 = dma.done %s4817, 4096
        $region52: #{attention_forward.1} parent=47 // pred_fallthru
          _
      $region48: #{attention_forward.1} parent=5 // pred_fallthru
        _
    $region6: #{attention_forward.1} parent=1 // loop_footer
      %s20 = sadd.s32 1, %s16
    $region7: #{attention_forward.1} parent=1 // loop_footer_branch
      %15 = sbr.rel target = $region3
    $region8: #{attention_forward.1} parent=1 // loop_exit
      _
    %4823 = vsyncpa [#allocation3], 1
    %s4824 = scalar_lea.sflag [#allocation3], 1
    %4825 = vsyncpa %s4824, 1
    %4826 = vsyncpa [#allocation4], 1
    %s4827 = scalar_lea.sflag [#allocation4], 1
    %4828 = vsyncpa %s4827, 1

</llo_original>
